<compile_context>
chip_gen: v6e
topology: v6e:2x2x1
jax: 0.10.0
libtpu: 0.0.40
codegen_flags: <defaults>
</compile_context>

<pallas_src>
import functools
import math

import jax
import jax.numpy as jnp
from jax.experimental import pallas as pl
from jax.experimental.pallas import tpu as pltpu


_INV_SQRT2 = 0.7071067811865476


def _erf_in_kernel(x):
    # Abramowitz & Stegun 7.1.26 rational approx, |error| <= 1.5e-7.
    # Avoids relying on an erf primitive lowering inside Mosaic.
    a1, a2, a3, a4, a5 = (0.254829592, -0.284496736, 1.421413741,
                          -1.453152027, 1.061405429)
    p = 0.3275911
    sgn = jnp.where(x >= 0.0, 1.0, -1.0)
    ax = jnp.abs(x)
    t = 1.0 / (1.0 + p * ax)
    poly = ((((a5 * t + a4) * t + a3) * t + a2) * t + a1) * t
    y = 1.0 - poly * jnp.exp(-ax * ax)
    return sgn * y


def _gelu(x):
    # exact (erf-based) GELU to match torch.nn.functional.gelu default
    return 0.5 * x * (1.0 + _erf_in_kernel(x * _INV_SQRT2))


# ----------------------------- Pallas kernels ------------------------------

def _fused_block_kernel(*refs, n_heads, has_pos):
    """One full pre-norm transformer block for a single batch element."""
    if has_pos:
        (x_ref, pos_ref, ln1g, ln1b, wqkv, bqkv, wo, bo,
         ln2g, ln2b, w1, b1, w2, b2, o_ref) = refs
    else:
        (x_ref, ln1g, ln1b, wqkv, bqkv, wo, bo,
         ln2g, ln2b, w1, b1, w2, b2, o_ref) = refs
        pos_ref = None

    x = x_ref[0].astype(jnp.float32)                       # (N, D)
    if has_pos:
        x = x + pos_ref[0].astype(jnp.float32)

    def layernorm(v, g_ref, b_ref):
        mean = jnp.mean(v, axis=-1, keepdims=True)
        var = jnp.mean(jnp.square(v - mean), axis=-1, keepdims=True)
        return (v - mean) * jax.lax.rsqrt(var + 1e-5) * g_ref[...] + b_ref[...]

    N, D = x.shape
    Dh = D // n_heads
    scale = 1.0 / math.sqrt(Dh)

    # ---- attention (fused QKV, all heads in one invocation) ----
    h = layernorm(x, ln1g, ln1b)
    qkv = jnp.dot(h, wqkv[...], preferred_element_type=jnp.float32) + bqkv[...]

    attn_proj = jnp.zeros((N, D), jnp.float32)
    for hh in range(n_heads):                               # static unrolled loop
        q = qkv[:, hh * Dh:(hh + 1) * Dh] * scale           # (N, Dh)
        k = qkv[:, D + hh * Dh:D + (hh + 1) * Dh]
        v = qkv[:, 2 * D + hh * Dh:2 * D + (hh + 1) * Dh]
        s = jax.lax.dot_general(q, k, (((1,), (1,)), ((), ())),
                                preferred_element_type=jnp.float32)   # (N, N)
        s = s - jnp.max(s, axis=-1, keepdims=True)
        p = jnp.exp(s)
        p = p * pl.reciprocal(jnp.sum(p, axis=-1, keepdims=True), approx=True)
        oh = jnp.dot(p, v, preferred_element_type=jnp.float32)        # (N, Dh)
        # accumulate output projection per head (== concat(heads) @ wo)
        attn_proj = attn_proj + jnp.dot(
            oh, wo[hh * Dh:(hh + 1) * Dh, :], preferred_element_type=jnp.float32)

    x = x + attn_proj + bo[...]

    # ---- MLP (GELU) + residual ----
    h = layernorm(x, ln2g, ln2b)
    h = jnp.dot(h, w1[...], preferred_element_type=jnp.float32) + b1[...]
    h = _gelu(h)
    x = x + jnp.dot(h, w2[...], preferred_element_type=jnp.float32) + b2[...]

    o_ref[0] = x.astype(o_ref.dtype)


def fused_transformer_block(x, pos, p, n_heads):
    """x: (B, N, D); pos: optional (B, N, D) added before the block."""
    B, N, D = x.shape
    tok_spec = pl.BlockSpec((1, N, D), lambda b: (b, 0, 0))

    def full(a):
        return pl.BlockSpec(a.shape, lambda b, _nd=a.ndim: (0,) * _nd)

    inputs = [x]
    in_specs = [tok_spec]
    if pos is not None:
        inputs.append(pos)
        in_specs.append(tok_spec)
    weights = [p["ln1_g"], p["ln1_b"], p["wqkv"], p["bqkv"], p["wo"], p["bo"],
               p["ln2_g"], p["ln2_b"], p["w1"], p["b1"], p["w2"], p["b2"]]
    inputs.extend(weights)
    in_specs.extend(full(w) for w in weights)

    return pl.pallas_call(
        functools.partial(_fused_block_kernel, n_heads=n_heads,
                          has_pos=pos is not None),
        out_shape=jax.ShapeDtypeStruct((B, N, D), x.dtype),
        grid=(B,),
        in_specs=in_specs,
        out_specs=tok_spec,
        compiler_params=pltpu.CompilerParams(
            dimension_semantics=("parallel",)),
    )(*inputs)


def _linear_kernel(x_ref, w_ref, b_ref, o_ref):
    y = jnp.dot(x_ref[...], w_ref[...],
                preferred_element_type=jnp.float32) + b_ref[...]
    o_ref[...] = y.astype(o_ref.dtype)


def pallas_linear(x2d, w, b2d):
    """y = x2d @ w + b.  x2d: (M, K), w: (K, N), b2d: (1, N).
    Row-tiled grid; K/N untiled (weights resident in VMEM).
    # TODO(synk): for large configs add K-axis tiling with an f32 accumulator
    # and generation-aware VMEM budgets (v7x has only 64 MiB physical VMEM).
    """
    M, K = x2d.shape
    K2, N = w.shape
    assert K == K2, (x2d.shape, w.shape)
    tm = M if M <= 512 else 512
    grid = (pl.cdiv(M, tm),)
    return pl.pallas_call(
        _linear_kernel,
        out_shape=jax.ShapeDtypeStruct((M, N), x2d.dtype),
        grid=grid,
        in_specs=[pl.BlockSpec((tm, K), lambda i: (i, 0)),
                  pl.BlockSpec((K, N), lambda i: (0, 0)),
                  pl.BlockSpec((1, N), lambda i: (0, 0))],
        out_specs=pl.BlockSpec((tm, N), lambda i: (i, 0)),
        compiler_params=pltpu.CompilerParams(
            dimension_semantics=("parallel",)),
    )(x2d, w, b2d)


def _recon_head_kernel(x_ref, lie_wt, lie_b, w1, b1, w2, b2, o_ref):
    x = x_ref[0].astype(jnp.float32)                         # (Nt, D)
    # Linear_Interpolated_Expansion over the token axis:
    #   y[m, d] = sum_n lie_w[n, m] * x[n, d] + lie_b[m]
    # lie_wt is stored pre-transposed as (M, Nt) -> plain MXU matmul.
    y = jnp.dot(lie_wt[...], x, preferred_element_type=jnp.float32)   # (M, D)
    y = y + lie_b[...]                                       # (M, 1) broadcast
    h = jnp.dot(y, w1[...], preferred_element_type=jnp.float32) + b1[...]
    h = _gelu(h)
    out = jnp.dot(h, w2[...], preferred_element_type=jnp.float32) + b2[...]
    o_ref[0] = out.astype(o_ref.dtype)


def recon_head_forward(p, x):
    """x: (B, Nt, D) -> (B, Nt*ppt, out_dim). One fused kernel per batch."""
    B, Nt, D = x.shape
    M = p["lie_wt"].shape[0]
    out_dim = p["w2"].shape[1]

    def full(a):
        return pl.BlockSpec(a.shape, lambda b, _nd=a.ndim: (0,) * _nd)

    weights = [p["lie_wt"], p["lie_b"], p["w1"], p["b1"], p["w2"], p["b2"]]
    return pl.pallas_call(
        _recon_head_kernel,
        out_shape=jax.ShapeDtypeStruct((B, M, out_dim), x.dtype),
        grid=(B,),
        in_specs=[pl.BlockSpec((1, Nt, D), lambda b: (b, 0, 0))]
                 + [full(w) for w in weights],
        out_specs=pl.BlockSpec((1, M, out_dim), lambda b: (b, 0, 0)),
        compiler_params=pltpu.CompilerParams(
            dimension_semantics=("parallel",)),
    )(x, *weights)


# --------------------------- model forward (glue) ---------------------------

def transformer_forward(blocks, x, embedded_position, n_heads):
    # TODO(synk): exact `Transformer` source not provided; Point-MAE convention
    # assumed (pos added to tokens before every block, pre-norm, no cross-attn
    # since mae_cross_attention_input is None).
    for p in blocks:
        x = fused_transformer_block(x, embedded_position, p, n_heads)
    return x, None, embedded_position


def mae_decoder_forward(p, x_unmasked, unmasked_idx, masked_idx,
                        input_positions, n_heads):
    B, N1, D = x_unmasked.shape
    N2 = masked_idx.shape[1]
    N = N1 + N2
    masked_tokens = jnp.broadcast_to(p["masked_token"][None, None, :], (B, N2, D))
    inter = jnp.concatenate([x_unmasked, masked_tokens], axis=1)          # (B, N, D)
    rearrange = jnp.concatenate([unmasked_idx, masked_idx], axis=1)       # (B, N)
    b_idx = jnp.arange(B)[:, None]
    # batch_index_rearrange: scatter tokens back to their original per-batch order.
    # TODO(synk): scatter/gather left to XLA (could move into the Pallas path
    # via PrefetchScalarGridSpec index_maps if activation traffic ever dominates).
    full_tok = jnp.zeros((B, N, D), inter.dtype).at[b_idx, rearrange].set(inter)
    embedded_position = None
    if input_positions is not None:
        C = input_positions.shape[-1]
        embedded_position = pallas_linear(
            input_positions.reshape(B * N, C), p["pos_w"], p["pos_b"]
        ).reshape(B, N, D)
    out, _, _ = transformer_forward(p["blocks"], full_tok, embedded_position, n_heads)
    # batch_index_select: gather the masked-token positions
    return out[b_idx, masked_idx]                                         # (B, N2, D)


def mae_branch_forward(params, unmasked_input, unmasked_idx, masked_idx,
                       backbone_output, embedded_unmasked_token_positions,
                       mae_cross_attention_input=None, input_positions=None,
                       *, enc_n_heads, dec_n_heads):
    del unmasked_input, mae_cross_attention_input   # cross-attn input is None here
    seg_cross_attention_input, _, _ = transformer_forward(
        params["enc_blocks"], backbone_output,
        embedded_unmasked_token_positions, enc_n_heads)
    out = mae_decoder_forward(params["dec"], seg_cross_attention_input,
                              unmasked_idx, masked_idx, input_positions, dec_n_heads)
    out = recon_head_forward(params["head"], out)
    return out, seg_cross_attention_input


# ------------------------- pure-JAX reference (check) -----------------------

def _ref_gelu(x):
    return 0.5 * x * (1.0 + jax.lax.erf(x * _INV_SQRT2))


def _ref_block(x, pos, p, n_heads):
    if pos is not None:
        x = x + pos

    def ln(v, g, b):
        m = v.mean(-1, keepdims=True)
        var = ((v - m) ** 2).mean(-1, keepdims=True)
        return (v - m) * jax.lax.rsqrt(var + 1e-5) * g + b

    B, N, D = x.shape
    Dh = D // n_heads
    h = ln(x, p["ln1_g"], p["ln1_b"])
    qkv = h @ p["wqkv"] + p["bqkv"]
    q, k, v = qkv[..., :D], qkv[..., D:2 * D], qkv[..., 2 * D:]
    q = q.reshape(B, N, n_heads, Dh).transpose(0, 2, 1, 3) / math.sqrt(Dh)
    k = k.reshape(B, N, n_heads, Dh).transpose(0, 2, 1, 3)
    v = v.reshape(B, N, n_heads, Dh).transpose(0, 2, 1, 3)
    s = jnp.einsum('bhqd,bhkd->bhqk', q, k)
    pa = jax.nn.softmax(s, axis=-1)
    o = jnp.einsum('bhqk,bhkd->bhqd', pa, v).transpose(0, 2, 1, 3).reshape(B, N, D)
    x = x + o @ p["wo"] + p["bo"]
    h = ln(x, p["ln2_g"], p["ln2_b"])
    h = _ref_gelu(h @ p["w1"] + p["b1"])
    return x + h @ p["w2"] + p["b2"]


def _ref_forward(params, unmasked_idx, masked_idx, backbone_output,
                 pos_unmasked, input_positions, n_heads):
    x = backbone_output
    for p in params["enc_blocks"]:
        x = _ref_block(x, pos_unmasked, p, n_heads)
    seg = x
    dec = params["dec"]
    B, N1, D = x.shape
    N2 = masked_idx.shape[1]
    N = N1 + N2
    masked = jnp.broadcast_to(dec["masked_token"][None, None, :], (B, N2, D))
    inter = jnp.concatenate([x, masked], axis=1)
    rearr = jnp.concatenate([unmasked_idx, masked_idx], axis=1)
    b_idx = jnp.arange(B)[:, None]
    full_tok = jnp.zeros((B, N, D), inter.dtype).at[b_idx, rearr].set(inter)
    pos = (input_positions @ dec["pos_w"] + dec["pos_b"]
           ) if input_positions is not None else None
    y = full_tok
    for p in dec["blocks"]:
        y = _ref_block(y, pos, p, n_heads)
    y = y[b_idx, masked_idx]
    head = params["head"]
    z = jnp.einsum('mn,bnd->bmd', head["lie_wt"], y) + head["lie_b"][None]
    z = _ref_gelu(z @ head["w1"] + head["b1"])
    z = z @ head["w2"] + head["b2"]
    return z, seg


# ------------------------------ parameter init ------------------------------

def _init_linear(key, din, dout):
    k1, k2 = jax.random.split(key)
    bound = 1.0 / math.sqrt(din)
    w = jax.random.uniform(k1, (din, dout), jnp.float32, -bound, bound)
    b = jax.random.uniform(k2, (dout,), jnp.float32, -bound, bound)
    return w, b


def _init_block(key, d):
    ks = jax.random.split(key, 6)
    wq, bq = _init_linear(ks[0], d, d)
    wk, bk = _init_linear(ks[1], d, d)
    wv, bv = _init_linear(ks[2], d, d)
    wo, bo = _init_linear(ks[3], d, d)
    w1, b1 = _init_linear(ks[4], d, 4 * d)
    w2, b2 = _init_linear(ks[5], 4 * d, d)
    return dict(
        ln1_g=jnp.ones((1, d), jnp.float32), ln1_b=jnp.zeros((1, d), jnp.float32),
        ln2_g=jnp.ones((1, d), jnp.float32), ln2_b=jnp.zeros((1, d), jnp.float32),
        wqkv=jnp.concatenate([wq, wk, wv], axis=1),                  # (d, 3d)
        bqkv=jnp.concatenate([bq, bk, bv]).reshape(1, 3 * d),
        wo=wo, bo=bo.reshape(1, d),
        w1=w1, b1=b1.reshape(1, 4 * d),
        w2=w2, b2=b2.reshape(1, d),
    )


def init_mae_branch_params(key, *, mae_transformer_sequence_len,
                           decoder_transformer_sequence_len, n_features,
                           input_dimension, output_dimension,
                           n_tokens, n_points_per_token):
    keys = jax.random.split(key, 6)
    enc_blocks = [_init_block(k, n_features)
                  for k in jax.random.split(keys[0], mae_transformer_sequence_len)]
    dec_blocks = [_init_block(k, n_features)
                  for k in jax.random.split(keys[1], decoder_transformer_sequence_len)]
    pos_w, pos_b = _init_linear(keys[2], input_dimension, n_features)
    lie_w, lie_b = _init_linear(keys[3], n_tokens, n_tokens * n_points_per_token)
    w1, b1 = _init_linear(keys[4], n_features, n_features // 2)
    w2, b2 = _init_linear(keys[5], n_features // 2, output_dimension)
    return dict(
        enc_blocks=enc_blocks,
        dec=dict(masked_token=jnp.ones((n_features,), jnp.float32),  # torch.ones init
                 pos_w=pos_w, pos_b=pos_b.reshape(1, n_features), blocks=dec_blocks),
        head=dict(lie_wt=lie_w.T,                                    # (M, n_tokens)
                  lie_b=lie_b.reshape(-1, 1),                        # (M, 1)
                  w1=w1, b1=b1.reshape(1, -1),
                  w2=w2, b2=b2.reshape(1, -1)),
    )


# ----------------------------------- main -----------------------------------

if __name__ == "__main__":
    B = 2
    N1 = 8               # number of unmasked tokens
    n_tokens = 8         # number of masked tokens == recon head n_tokens
    N = N1 + n_tokens
    D = 32               # mae_enc_n_features == mae_dec_n_features
    n_heads = 4
    input_dim = 3        # positional input dimension
    out_dim = 3          # output_dimension
    ppt = 4              # n_points_per_token

    root = jax.random.PRNGKey(0)
    k_par, k_in = jax.random.split(root)
    params = init_mae_branch_params(
        k_par,
        mae_transformer_sequence_len=2,
        decoder_transformer_sequence_len=2,
        n_features=D,
        input_dimension=input_dim,
        output_dimension=out_dim,
        n_tokens=n_tokens,
        n_points_per_token=ppt)

    ks = jax.random.split(k_in, 5)
    backbone_output = jax.random.normal(ks[0], (B, N1, D), jnp.float32)
    embedded_unmasked_token_positions = jax.random.normal(ks[1], (B, N1, D), jnp.float32)
    unmasked_input = jax.random.normal(ks[2], (B, N1, D), jnp.float32)
    input_positions = jax.random.normal(ks[3], (B, N, input_dim), jnp.float32)

    perms = jnp.stack([jax.random.permutation(k, N)
                       for k in jax.random.split(ks[4], B)]).astype(jnp.int32)
    unmasked_idx = perms[:, :N1]
    masked_idx = perms[:, N1:]

    fwd = jax.jit(functools.partial(mae_branch_forward,
                                    enc_n_heads=n_heads, dec_n_heads=n_heads))
    recon, seg = fwd(params, unmasked_input, unmasked_idx, masked_idx,
                     backbone_output, embedded_unmasked_token_positions,
                     None, input_positions)
    jax.block_until_ready((recon, seg))

    assert recon.shape == (B, n_tokens * ppt, out_dim), recon.shape
    assert seg.shape == (B, N1, D), seg.shape
    assert jnp.all(jnp.isfinite(recon)) and jnp.all(jnp.isfinite(seg))

    # Cross-check against a pure-JAX reference (loose tol: approx reciprocal
    # in softmax + polynomial erf introduce ~1e-4-level deviations).
    recon_ref, seg_ref = _ref_forward(params, unmasked_idx, masked_idx,
                                      backbone_output,
                                      embedded_unmasked_token_positions,
                                      input_positions, n_heads)
    assert float(jnp.max(jnp.abs(recon - recon_ref))) < 2e-2
    assert float(jnp.max(jnp.abs(seg - seg_ref))) < 2e-2

    print("KERNEL_OK")
</pallas_src>

<mosaic_0001>
module attributes {stable_mosaic.version = 11 : i64} {
  func.func @_linear_kernel(%arg0: i32, %arg1: memref<32x3xf32, #tpu.memory_space<vmem>>, %arg2: memref<3x32xf32, #tpu.memory_space<vmem>>, %arg3: memref<1x32xf32, #tpu.memory_space<vmem>>, %arg4: memref<32x32xf32, #tpu.memory_space<vmem>>) attributes {dimension_semantics = [#tpu.dimension_semantics<parallel>], iteration_bounds = array<i64: 1>, scalar_prefetch = 0 : i64, scratch_operands = 0 : i64, tpu.core_type = #tpu.core_type<tc>, window_params = [{transform_indices = @transform_0, window_bounds = array<i64: 32, 3>}, {pipeline_mode = #tpu.pipeline_mode<synchronous>, transform_indices = @transform_1, window_bounds = array<i64: 3, 32>}, {pipeline_mode = #tpu.pipeline_mode<synchronous>, transform_indices = @transform_2, window_bounds = array<i64: 1, 32>}, {transform_indices = @transform_3, window_bounds = array<i64: 32, 32>}]} {
    %c0 = arith.constant 0 : index
    %c0_0 = arith.constant 0 : index
    %0 = vector.load %arg1[%c0, %c0_0] : memref<32x3xf32, #tpu.memory_space<vmem>>, vector<32x3xf32>
    %c0_1 = arith.constant 0 : index
    %c0_2 = arith.constant 0 : index
    %1 = vector.load %arg2[%c0_1, %c0_2] : memref<3x32xf32, #tpu.memory_space<vmem>>, vector<3x32xf32>
    %cst = arith.constant dense<0.000000e+00> : vector<32x32xf32>
    %2 = tpu.matmul %0, %1, %cst {dimension_numbers = #tpu.dot_dimension_numbers<[1], [0], [0], [1], [0, 0, 1, 1], [], []>} : vector<32x3xf32>, vector<3x32xf32>, vector<32x32xf32> -> vector<32x32xf32>
    %c0_3 = arith.constant 0 : index
    %c0_4 = arith.constant 0 : index
    %3 = vector.load %arg3[%c0_3, %c0_4] : memref<1x32xf32, #tpu.memory_space<vmem>>, vector<1x32xf32>
    %4 = vector.broadcast %3 : vector<1x32xf32> to vector<32x32xf32>
    %5 = arith.addf %2, %4 : vector<32x32xf32>
    %c0_5 = arith.constant 0 : index
    %c0_6 = arith.constant 0 : index
    %6 = vector.load %arg4[%c0_5, %c0_6] : memref<32x32xf32, #tpu.memory_space<vmem>>, vector<32x32xf32>
    tpu.vector_store %arg4[%c0_5, %c0_6], %5 {strides = array<i32>} : memref<32x32xf32, #tpu.memory_space<vmem>>, vector<32x32xf32>,
    return
  }
  func.func @transform_0(%arg0: i32) -> (i32, i32) {
    %c0_i32 = arith.constant 0 : i32
    %c0_i32_0 = arith.constant 0 : i32
    return %arg0, %c0_i32 : i32, i32
  }
  func.func @transform_1(%arg0: i32) -> (i32, i32) {
    %c0_i32 = arith.constant 0 : i32
    %c0_i32_0 = arith.constant 0 : i32
    %c0_i32_1 = arith.constant 0 : i32
    return %c0_i32, %c0_i32_0 : i32, i32
  }
  func.func @transform_2(%arg0: i32) -> (i32, i32) {
    %c0_i32 = arith.constant 0 : i32
    %c0_i32_0 = arith.constant 0 : i32
    %c0_i32_1 = arith.constant 0 : i32
    return %c0_i32, %c0_i32_0 : i32, i32
  }
  func.func @transform_3(%arg0: i32) -> (i32, i32) {
    %c0_i32 = arith.constant 0 : i32
    %c0_i32_0 = arith.constant 0 : i32
    return %arg0, %c0_i32 : i32, i32
  }
}

module attributes {stable_mosaic.version = 11 : i64} {
  func.func @_fused_block_kernel(%arg0: i32, %arg1: memref<1x8x32xf32, #tpu.memory_space<vmem>>, %arg2: memref<1x8x32xf32, #tpu.memory_space<vmem>>, %arg3: memref<1x32xf32, #tpu.memory_space<vmem>>, %arg4: memref<1x32xf32, #tpu.memory_space<vmem>>, %arg5: memref<32x96xf32, #tpu.memory_space<vmem>>, %arg6: memref<1x96xf32, #tpu.memory_space<vmem>>, %arg7: memref<32x32xf32, #tpu.memory_space<vmem>>, %arg8: memref<1x32xf32, #tpu.memory_space<vmem>>, %arg9: memref<1x32xf32, #tpu.memory_space<vmem>>, %arg10: memref<1x32xf32, #tpu.memory_space<vmem>>, %arg11: memref<32x128xf32, #tpu.memory_space<vmem>>, %arg12: memref<1x128xf32, #tpu.memory_space<vmem>>, %arg13: memref<128x32xf32, #tpu.memory_space<vmem>>, %arg14: memref<1x32xf32, #tpu.memory_space<vmem>>, %arg15: memref<1x8x32xf32, #tpu.memory_space<vmem>>) attributes {dimension_semantics = [#tpu.dimension_semantics<parallel>], iteration_bounds = array<i64: 2>, scalar_prefetch = 0 : i64, scratch_operands = 0 : i64, tpu.core_type = #tpu.core_type<tc>, window_params = [{transform_indices = @transform_0, window_bounds = array<i64: 1, 8, 32>}, {transform_indices = @transform_1, window_bounds = array<i64: 1, 8, 32>}, {pipeline_mode = #tpu.pipeline_mode<synchronous>, transform_indices = @transform_2, window_bounds = array<i64: 1, 32>}, {pipeline_mode = #tpu.pipeline_mode<synchronous>, transform_indices = @transform_3, window_bounds = array<i64: 1, 32>}, {pipeline_mode = #tpu.pipeline_mode<synchronous>, transform_indices = @transform_4, window_bounds = array<i64: 32, 96>}, {pipeline_mode = #tpu.pipeline_mode<synchronous>, transform_indices = @transform_5, window_bounds = array<i64: 1, 96>}, {pipeline_mode = #tpu.pipeline_mode<synchronous>, transform_indices = @transform_6, window_bounds = array<i64: 32, 32>}, {pipeline_mode = #tpu.pipeline_mode<synchronous>, transform_indices = @transform_7, window_bounds = array<i64: 1, 32>}, {pipeline_mode = #tpu.pipeline_mode<synchronous>, transform_indices = @transform_8, window_bounds = array<i64: 1, 32>}, {pipeline_mode = #tpu.pipeline_mode<synchronous>, transform_indices = @transform_9, window_bounds = array<i64: 1, 32>}, {pipeline_mode = #tpu.pipeline_mode<synchronous>, transform_indices = @transform_10, window_bounds = array<i64: 32, 128>}, {pipeline_mode = #tpu.pipeline_mode<synchronous>, transform_indices = @transform_11, window_bounds = array<i64: 1, 128>}, {pipeline_mode = #tpu.pipeline_mode<synchronous>, transform_indices = @transform_12, window_bounds = array<i64: 128, 32>}, {pipeline_mode = #tpu.pipeline_mode<synchronous>, transform_indices = @transform_13, window_bounds = array<i64: 1, 32>}, {transform_indices = @transform_14, window_bounds = array<i64: 1, 8, 32>}]} {
    %c0 = arith.constant 0 : index
    %c0_0 = arith.constant 0 : index
    %c0_1 = arith.constant 0 : index
    %0 = vector.load %arg1[%c0, %c0_0, %c0_1] : memref<1x8x32xf32, #tpu.memory_space<vmem>>, vector<1x8x32xf32>
    %1 = vector.shape_cast %0 : vector<1x8x32xf32> to vector<8x32xf32>
    %c0_2 = arith.constant 0 : index
    %c0_3 = arith.constant 0 : index
    %c0_4 = arith.constant 0 : index
    %2 = vector.load %arg2[%c0_2, %c0_3, %c0_4] : memref<1x8x32xf32, #tpu.memory_space<vmem>>, vector<1x8x32xf32>
    %3 = vector.shape_cast %2 : vector<1x8x32xf32> to vector<8x32xf32>
    %4 = arith.addf %1, %3 : vector<8x32xf32>
    %cst = arith.constant dense<0.000000e+00> : vector<8xf32>
    %5 = vector.multi_reduction <add>, %4, %cst [1] : vector<8x32xf32> to vector<8xf32>
    %6 = vector.shape_cast %5 : vector<8xf32> to vector<8x1xf32>
    %cst_5 = arith.constant 3.200000e+01 : f32
    %7 = vector.broadcast %cst_5 : f32 to vector<8x1xf32>
    %8 = arith.divf %6, %7 : vector<8x1xf32>
    %9 = vector.broadcast %8 : vector<8x1xf32> to vector<8x32xf32>
    %10 = arith.subf %4, %9 : vector<8x32xf32>
    %11 = arith.mulf %10, %10 : vector<8x32xf32>
    %cst_6 = arith.constant dense<0.000000e+00> : vector<8xf32>
    %12 = vector.multi_reduction <add>, %11, %cst_6 [1] : vector<8x32xf32> to vector<8xf32>
    %13 = vector.shape_cast %12 : vector<8xf32> to vector<8x1xf32>
    %cst_7 = arith.constant 3.200000e+01 : f32
    %14 = vector.broadcast %cst_7 : f32 to vector<8x1xf32>
    %15 = arith.divf %13, %14 : vector<8x1xf32>
    %16 = vector.broadcast %8 : vector<8x1xf32> to vector<8x32xf32>
    %17 = arith.subf %4, %16 : vector<8x32xf32>
    %cst_8 = arith.constant 9.99999974E-6 : f32
    %18 = vector.broadcast %cst_8 : f32 to vector<8x1xf32>
    %19 = arith.addf %15, %18 : vector<8x1xf32>
    %20 = math.rsqrt %19 : vector<8x1xf32>
    %21 = vector.broadcast %20 : vector<8x1xf32> to vector<8x32xf32>
    %22 = arith.mulf %17, %21 : vector<8x32xf32>
    %c0_9 = arith.constant 0 : index
    %c0_10 = arith.constant 0 : index
    %23 = vector.load %arg3[%c0_9, %c0_10] : memref<1x32xf32, #tpu.memory_space<vmem>>, vector<1x32xf32>
    %24 = vector.broadcast %23 : vector<1x32xf32> to vector<8x32xf32>
    %25 = arith.mulf %22, %24 : vector<8x32xf32>
    %c0_11 = arith.constant 0 : index
    %c0_12 = arith.constant 0 : index
    %26 = vector.load %arg4[%c0_11, %c0_12] : memref<1x32xf32, #tpu.memory_space<vmem>>, vector<1x32xf32>
    %27 = vector.broadcast %26 : vector<1x32xf32> to vector<8x32xf32>
    %28 = arith.addf %25, %27 : vector<8x32xf32>
    %c0_13 = arith.constant 0 : index
    %c0_14 = arith.constant 0 : index
    %29 = vector.load %arg5[%c0_13, %c0_14] : memref<32x96xf32, #tpu.memory_space<vmem>>, vector<32x96xf32>
    %cst_15 = arith.constant dense<0.000000e+00> : vector<8x96xf32>
    %30 = tpu.matmul %28, %29, %cst_15 {dimension_numbers = #tpu.dot_dimension_numbers<[1], [0], [0], [1], [0, 0, 1, 1], [], []>} : vector<8x32xf32>, vector<32x96xf32>, vector<8x96xf32> -> vector<8x96xf32>
    %c0_16 = arith.constant 0 : index
    %c0_17 = arith.constant 0 : index
    %31 = vector.load %arg6[%c0_16, %c0_17] : memref<1x96xf32, #tpu.memory_space<vmem>>, vector<1x96xf32>
    %32 = vector.broadcast %31 : vector<1x96xf32> to vector<8x96xf32>
    %33 = arith.addf %30, %32 : vector<8x96xf32>
    %cst_18 = arith.constant 0.000000e+00 : f32
    %34 = vector.broadcast %cst_18 : f32 to vector<8x32xf32>
    %35 = vector.extract_strided_slice %33 {offsets = [0, 0], sizes = [8, 8], strides = [1, 1]} : vector<8x96xf32> to vector<8x8xf32>
    %cst_19 = arith.constant 0.353553385 : f32
    %36 = vector.broadcast %cst_19 : f32 to vector<8x8xf32>
    %37 = arith.mulf %35, %36 : vector<8x8xf32>
    %38 = vector.extract_strided_slice %33 {offsets = [0, 32], sizes = [8, 8], strides = [1, 1]} : vector<8x96xf32> to vector<8x8xf32>
    %39 = vector.extract_strided_slice %33 {offsets = [0, 64], sizes = [8, 8], strides = [1, 1]} : vector<8x96xf32> to vector<8x8xf32>
    %cst_20 = arith.constant dense<0.000000e+00> : vector<8x8xf32>
    %40 = tpu.matmul %37, %38, %cst_20 {dimension_numbers = #tpu.dot_dimension_numbers<[1], [1], [0], [0], [0, 0, 1, 0], [], []>} : vector<8x8xf32>, vector<8x8xf32>, vector<8x8xf32> -> vector<8x8xf32>
    %cst_21 = arith.constant dense<0xFF800000> : vector<8xf32>
    %41 = vector.multi_reduction <maximumf>, %40, %cst_21 [1] : vector<8x8xf32> to vector<8xf32>
    %42 = vector.shape_cast %41 : vector<8xf32> to vector<8x1xf32>
    %43 = vector.broadcast %42 : vector<8x1xf32> to vector<8x8xf32>
    %44 = arith.subf %40, %43 : vector<8x8xf32>
    %45 = math.exp %44 : vector<8x8xf32>
    %cst_22 = arith.constant dense<0.000000e+00> : vector<8xf32>
    %46 = vector.multi_reduction <add>, %45, %cst_22 [1] : vector<8x8xf32> to vector<8xf32>
    %47 = vector.shape_cast %46 : vector<8xf32> to vector<8x1xf32>
    %48 = tpu.reciprocal %47 {approx = true} : vector<8x1xf32> -> vector<8x1xf32>
    %49 = vector.broadcast %48 : vector<8x1xf32> to vector<8x8xf32>
    %50 = arith.mulf %45, %49 : vector<8x8xf32>
    %cst_23 = arith.constant dense<0.000000e+00> : vector<8x8xf32>
    %51 = tpu.matmul %50, %39, %cst_23 {dimension_numbers = #tpu.dot_dimension_numbers<[1], [0], [0], [1], [0, 0, 1, 1], [], []>} : vector<8x8xf32>, vector<8x8xf32>, vector<8x8xf32> -> vector<8x8xf32>
    %c0_24 = arith.constant 0 : index
    %c0_25 = arith.constant 0 : index
    %52 = vector.load %arg7[%c0_24, %c0_25] : memref<32x32xf32, #tpu.memory_space<vmem>>, vector<8x32xf32>
    %cst_26 = arith.constant dense<0.000000e+00> : vector<8x32xf32>
    %53 = tpu.matmul %51, %52, %cst_26 {dimension_numbers = #tpu.dot_dimension_numbers<[1], [0], [0], [1], [0, 0, 1, 1], [], []>} : vector<8x8xf32>, vector<8x32xf32>, vector<8x32xf32> -> vector<8x32xf32>
    %54 = arith.addf %34, %53 : vector<8x32xf32>
    %55 = vector.extract_strided_slice %33 {offsets = [0, 8], sizes = [8, 8], strides = [1, 1]} : vector<8x96xf32> to vector<8x8xf32>
    %cst_27 = arith.constant 0.353553385 : f32
    %56 = vector.broadcast %cst_27 : f32 to vector<8x8xf32>
    %57 = arith.mulf %55, %56 : vector<8x8xf32>
    %58 = vector.extract_strided_slice %33 {offsets = [0, 40], sizes = [8, 8], strides = [1, 1]} : vector<8x96xf32> to vector<8x8xf32>
    %59 = vector.extract_strided_slice %33 {offsets = [0, 72], sizes = [8, 8], strides = [1, 1]} : vector<8x96xf32> to vector<8x8xf32>
    %cst_28 = arith.constant dense<0.000000e+00> : vector<8x8xf32>
    %60 = tpu.matmul %57, %58, %cst_28 {dimension_numbers = #tpu.dot_dimension_numbers<[1], [1], [0], [0], [0, 0, 1, 0], [], []>} : vector<8x8xf32>, vector<8x8xf32>, vector<8x8xf32> -> vector<8x8xf32>
    %cst_29 = arith.constant dense<0xFF800000> : vector<8xf32>
    %61 = vector.multi_reduction <maximumf>, %60, %cst_29 [1] : vector<8x8xf32> to vector<8xf32>
    %62 = vector.shape_cast %61 : vector<8xf32> to vector<8x1xf32>
    %63 = vector.broadcast %62 : vector<8x1xf32> to vector<8x8xf32>
    %64 = arith.subf %60, %63 : vector<8x8xf32>
    %65 = math.exp %64 : vector<8x8xf32>
    %cst_30 = arith.constant dense<0.000000e+00> : vector<8xf32>
    %66 = vector.multi_reduction <add>, %65, %cst_30 [1] : vector<8x8xf32> to vector<8xf32>
    %67 = vector.shape_cast %66 : vector<8xf32> to vector<8x1xf32>
    %68 = tpu.reciprocal %67 {approx = true} : vector<8x1xf32> -> vector<8x1xf32>
    %69 = vector.broadcast %68 : vector<8x1xf32> to vector<8x8xf32>
    %70 = arith.mulf %65, %69 : vector<8x8xf32>
    %cst_31 = arith.constant dense<0.000000e+00> : vector<8x8xf32>
    %71 = tpu.matmul %70, %59, %cst_31 {dimension_numbers = #tpu.dot_dimension_numbers<[1], [0], [0], [1], [0, 0, 1, 1], [], []>} : vector<8x8xf32>, vector<8x8xf32>, vector<8x8xf32> -> vector<8x8xf32>
    %c8 = arith.constant 8 : index
    %c0_32 = arith.constant 0 : index
    %72 = vector.load %arg7[%c8, %c0_32] : memref<32x32xf32, #tpu.memory_space<vmem>>, vector<8x32xf32>
    %cst_33 = arith.constant dense<0.000000e+00> : vector<8x32xf32>
    %73 = tpu.matmul %71, %72, %cst_33 {dimension_numbers = #tpu.dot_dimension_numbers<[1], [0], [0], [1], [0, 0, 1, 1], [], []>} : vector<8x8xf32>, vector<8x32xf32>, vector<8x32xf32> -> vector<8x32xf32>
    %74 = arith.addf %54, %73 : vector<8x32xf32>
    %75 = vector.extract_strided_slice %33 {offsets = [0, 16], sizes = [8, 8], strides = [1, 1]} : vector<8x96xf32> to vector<8x8xf32>
    %cst_34 = arith.constant 0.353553385 : f32
    %76 = vector.broadcast %cst_34 : f32 to vector<8x8xf32>
    %77 = arith.mulf %75, %76 : vector<8x8xf32>
    %78 = vector.extract_strided_slice %33 {offsets = [0, 48], sizes = [8, 8], strides = [1, 1]} : vector<8x96xf32> to vector<8x8xf32>
    %79 = vector.extract_strided_slice %33 {offsets = [0, 80], sizes = [8, 8], strides = [1, 1]} : vector<8x96xf32> to vector<8x8xf32>
    %cst_35 = arith.constant dense<0.000000e+00> : vector<8x8xf32>
    %80 = tpu.matmul %77, %78, %cst_35 {dimension_numbers = #tpu.dot_dimension_numbers<[1], [1], [0], [0], [0, 0, 1, 0], [], []>} : vector<8x8xf32>, vector<8x8xf32>, vector<8x8xf32> -> vector<8x8xf32>
    %cst_36 = arith.constant dense<0xFF800000> : vector<8xf32>
    %81 = vector.multi_reduction <maximumf>, %80, %cst_36 [1] : vector<8x8xf32> to vector<8xf32>
    %82 = vector.shape_cast %81 : vector<8xf32> to vector<8x1xf32>
    %83 = vector.broadcast %82 : vector<8x1xf32> to vector<8x8xf32>
    %84 = arith.subf %80, %83 : vector<8x8xf32>
    %85 = math.exp %84 : vector<8x8xf32>
    %cst_37 = arith.constant dense<0.000000e+00> : vector<8xf32>
    %86 = vector.multi_reduction <add>, %85, %cst_37 [1] : vector<8x8xf32> to vector<8xf32>
    %87 = vector.shape_cast %86 : vector<8xf32> to vector<8x1xf32>
    %88 = tpu.reciprocal %87 {approx = true} : vector<8x1xf32> -> vector<8x1xf32>
    %89 = vector.broadcast %88 : vector<8x1xf32> to vector<8x8xf32>
    %90 = arith.mulf %85, %89 : vector<8x8xf32>
    %cst_38 = arith.constant dense<0.000000e+00> : vector<8x8xf32>
    %91 = tpu.matmul %90, %79, %cst_38 {dimension_numbers = #tpu.dot_dimension_numbers<[1], [0], [0], [1], [0, 0, 1, 1], [], []>} : vector<8x8xf32>, vector<8x8xf32>, vector<8x8xf32> -> vector<8x8xf32>
    %c16 = arith.constant 16 : index
    %c0_39 = arith.constant 0 : index
    %92 = vector.load %arg7[%c16, %c0_39] : memref<32x32xf32, #tpu.memory_space<vmem>>, vector<8x32xf32>
    %cst_40 = arith.constant dense<0.000000e+00> : vector<8x32xf32>
    %93 = tpu.matmul %91, %92, %cst_40 {dimension_numbers = #tpu.dot_dimension_numbers<[1], [0], [0], [1], [0, 0, 1, 1], [], []>} : vector<8x8xf32>, vector<8x32xf32>, vector<8x32xf32> -> vector<8x32xf32>
    %94 = arith.addf %74, %93 : vector<8x32xf32>
    %95 = vector.extract_strided_slice %33 {offsets = [0, 24], sizes = [8, 8], strides = [1, 1]} : vector<8x96xf32> to vector<8x8xf32>
    %cst_41 = arith.constant 0.353553385 : f32
    %96 = vector.broadcast %cst_41 : f32 to vector<8x8xf32>
    %97 = arith.mulf %95, %96 : vector<8x8xf32>
    %98 = vector.extract_strided_slice %33 {offsets = [0, 56], sizes = [8, 8], strides = [1, 1]} : vector<8x96xf32> to vector<8x8xf32>
    %99 = vector.extract_strided_slice %33 {offsets = [0, 88], sizes = [8, 8], strides = [1, 1]} : vector<8x96xf32> to vector<8x8xf32>
    %cst_42 = arith.constant dense<0.000000e+00> : vector<8x8xf32>
    %100 = tpu.matmul %97, %98, %cst_42 {dimension_numbers = #tpu.dot_dimension_numbers<[1], [1], [0], [0], [0, 0, 1, 0], [], []>} : vector<8x8xf32>, vector<8x8xf32>, vector<8x8xf32> -> vector<8x8xf32>
    %cst_43 = arith.constant dense<0xFF800000> : vector<8xf32>
    %101 = vector.multi_reduction <maximumf>, %100, %cst_43 [1] : vector<8x8xf32> to vector<8xf32>
    %102 = vector.shape_cast %101 : vector<8xf32> to vector<8x1xf32>
    %103 = vector.broadcast %102 : vector<8x1xf32> to vector<8x8xf32>
    %104 = arith.subf %100, %103 : vector<8x8xf32>
    %105 = math.exp %104 : vector<8x8xf32>
    %cst_44 = arith.constant dense<0.000000e+00> : vector<8xf32>
    %106 = vector.multi_reduction <add>, %105, %cst_44 [1] : vector<8x8xf32> to vector<8xf32>
    %107 = vector.shape_cast %106 : vector<8xf32> to vector<8x1xf32>
    %108 = tpu.reciprocal %107 {approx = true} : vector<8x1xf32> -> vector<8x1xf32>
    %109 = vector.broadcast %108 : vector<8x1xf32> to vector<8x8xf32>
    %110 = arith.mulf %105, %109 : vector<8x8xf32>
    %cst_45 = arith.constant dense<0.000000e+00> : vector<8x8xf32>
    %111 = tpu.matmul %110, %99, %cst_45 {dimension_numbers = #tpu.dot_dimension_numbers<[1], [0], [0], [1], [0, 0, 1, 1], [], []>} : vector<8x8xf32>, vector<8x8xf32>, vector<8x8xf32> -> vector<8x8xf32>
    %c24 = arith.constant 24 : index
    %c0_46 = arith.constant 0 : index
    %112 = vector.load %arg7[%c24, %c0_46] : memref<32x32xf32, #tpu.memory_space<vmem>>, vector<8x32xf32>
    %cst_47 = arith.constant dense<0.000000e+00> : vector<8x32xf32>
    %113 = tpu.matmul %111, %112, %cst_47 {dimension_numbers = #tpu.dot_dimension_numbers<[1], [0], [0], [1], [0, 0, 1, 1], [], []>} : vector<8x8xf32>, vector<8x32xf32>, vector<8x32xf32> -> vector<8x32xf32>
    %114 = arith.addf %94, %113 : vector<8x32xf32>
    %115 = arith.addf %4, %114 : vector<8x32xf32>
    %c0_48 = arith.constant 0 : index
    %c0_49 = arith.constant 0 : index
    %116 = vector.load %arg8[%c0_48, %c0_49] : memref<1x32xf32, #tpu.memory_space<vmem>>, vector<1x32xf32>
    %117 = vector.broadcast %116 : vector<1x32xf32> to vector<8x32xf32>
    %118 = arith.addf %115, %117 : vector<8x32xf32>
    %cst_50 = arith.constant dense<0.000000e+00> : vector<8xf32>
    %119 = vector.multi_reduction <add>, %118, %cst_50 [1] : vector<8x32xf32> to vector<8xf32>
    %120 = vector.shape_cast %119 : vector<8xf32> to vector<8x1xf32>
    %cst_51 = arith.constant 3.200000e+01 : f32
    %121 = vector.broadcast %cst_51 : f32 to vector<8x1xf32>
    %122 = arith.divf %120, %121 : vector<8x1xf32>
    %123 = vector.broadcast %122 : vector<8x1xf32> to vector<8x32xf32>
    %124 = arith.subf %118, %123 : vector<8x32xf32>
    %125 = arith.mulf %124, %124 : vector<8x32xf32>
    %cst_52 = arith.constant dense<0.000000e+00> : vector<8xf32>
    %126 = vector.multi_reduction <add>, %125, %cst_52 [1] : vector<8x32xf32> to vector<8xf32>
    %127 = vector.shape_cast %126 : vector<8xf32> to vector<8x1xf32>
    %cst_53 = arith.constant 3.200000e+01 : f32
    %128 = vector.broadcast %cst_53 : f32 to vector<8x1xf32>
    %129 = arith.divf %127, %128 : vector<8x1xf32>
    %130 = vector.broadcast %122 : vector<8x1xf32> to vector<8x32xf32>
    %131 = arith.subf %118, %130 : vector<8x32xf32>
    %cst_54 = arith.constant 9.99999974E-6 : f32
    %132 = vector.broadcast %cst_54 : f32 to vector<8x1xf32>
    %133 = arith.addf %129, %132 : vector<8x1xf32>
    %134 = math.rsqrt %133 : vector<8x1xf32>
    %135 = vector.broadcast %134 : vector<8x1xf32> to vector<8x32xf32>
    %136 = arith.mulf %131, %135 : vector<8x32xf32>
    %c0_55 = arith.constant 0 : index
    %c0_56 = arith.constant 0 : index
    %137 = vector.load %arg9[%c0_55, %c0_56] : memref<1x32xf32, #tpu.memory_space<vmem>>, vector<1x32xf32>
    %138 = vector.broadcast %137 : vector<1x32xf32> to vector<8x32xf32>
    %139 = arith.mulf %136, %138 : vector<8x32xf32>
    %c0_57 = arith.constant 0 : index
    %c0_58 = arith.constant 0 : index
    %140 = vector.load %arg10[%c0_57, %c0_58] : memref<1x32xf32, #tpu.memory_space<vmem>>, vector<1x32xf32>
    %141 = vector.broadcast %140 : vector<1x32xf32> to vector<8x32xf32>
    %142 = arith.addf %139, %141 : vector<8x32xf32>
    %c0_59 = arith.constant 0 : index
    %c0_60 = arith.constant 0 : index
    %143 = vector.load %arg11[%c0_59, %c0_60] : memref<32x128xf32, #tpu.memory_space<vmem>>, vector<32x128xf32>
    %cst_61 = arith.constant dense<0.000000e+00> : vector<8x128xf32>
    %144 = tpu.matmul %142, %143, %cst_61 {dimension_numbers = #tpu.dot_dimension_numbers<[1], [0], [0], [1], [0, 0, 1, 1], [], []>} : vector<8x32xf32>, vector<32x128xf32>, vector<8x128xf32> -> vector<8x128xf32>
    %c0_62 = arith.constant 0 : index
    %c0_63 = arith.constant 0 : index
    %145 = vector.load %arg12[%c0_62, %c0_63] : memref<1x128xf32, #tpu.memory_space<vmem>>, vector<1x128xf32>
    %146 = vector.broadcast %145 : vector<1x128xf32> to vector<8x128xf32>
    %147 = arith.addf %144, %146 : vector<8x128xf32>
    %cst_64 = arith.constant 5.000000e-01 : f32
    %148 = vector.broadcast %cst_64 : f32 to vector<8x128xf32>
    %149 = arith.mulf %148, %147 : vector<8x128xf32>
    %cst_65 = arith.constant 0.707106769 : f32
    %150 = vector.broadcast %cst_65 : f32 to vector<8x128xf32>
    %151 = arith.mulf %147, %150 : vector<8x128xf32>
    %cst_66 = arith.constant 0.000000e+00 : f32
    %152 = vector.broadcast %cst_66 : f32 to vector<8x128xf32>
    %153 = arith.cmpf oge, %151, %152 : vector<8x128xf32>
    %cst_67 = arith.constant 1.000000e+00 : f32
    %cst_68 = arith.constant -1.000000e+00 : f32
    %154 = vector.broadcast %cst_67 : f32 to vector<8x128xf32>
    %155 = vector.broadcast %cst_68 : f32 to vector<8x128xf32>
    %156 = arith.select %153, %154, %155 : vector<8x128xi1>, vector<8x128xf32>
    %157 = math.absf %151 : vector<8x128xf32>
    %cst_69 = arith.constant 0.327591091 : f32
    %158 = vector.broadcast %cst_69 : f32 to vector<8x128xf32>
    %159 = arith.mulf %158, %157 : vector<8x128xf32>
    %cst_70 = arith.constant 1.000000e+00 : f32
    %160 = vector.broadcast %cst_70 : f32 to vector<8x128xf32>
    %161 = arith.addf %160, %159 : vector<8x128xf32>
    %cst_71 = arith.constant 1.000000e+00 : f32
    %162 = vector.broadcast %cst_71 : f32 to vector<8x128xf32>
    %163 = arith.divf %162, %161 : vector<8x128xf32>
    %cst_72 = arith.constant 1.06140542 : f32
    %164 = vector.broadcast %cst_72 : f32 to vector<8x128xf32>
    %165 = arith.mulf %164, %163 : vector<8x128xf32>
    %cst_73 = arith.constant -1.45315206 : f32
    %166 = vector.broadcast %cst_73 : f32 to vector<8x128xf32>
    %167 = arith.addf %165, %166 : vector<8x128xf32>
    %168 = arith.mulf %167, %163 : vector<8x128xf32>
    %cst_74 = arith.constant 1.42141378 : f32
    %169 = vector.broadcast %cst_74 : f32 to vector<8x128xf32>
    %170 = arith.addf %168, %169 : vector<8x128xf32>
    %171 = arith.mulf %170, %163 : vector<8x128xf32>
    %cst_75 = arith.constant -0.284496725 : f32
    %172 = vector.broadcast %cst_75 : f32 to vector<8x128xf32>
    %173 = arith.addf %171, %172 : vector<8x128xf32>
    %174 = arith.mulf %173, %163 : vector<8x128xf32>
    %cst_76 = arith.constant 0.254829586 : f32
    %175 = vector.broadcast %cst_76 : f32 to vector<8x128xf32>
    %176 = arith.addf %174, %175 : vector<8x128xf32>
    %177 = arith.mulf %176, %163 : vector<8x128xf32>
    %cst_77 = arith.constant 0.000000e+00 : f32
    %178 = vector.broadcast %cst_77 : f32 to vector<8x128xf32>
    %179 = arith.subf %178, %157 : vector<8x128xf32>
    %180 = arith.mulf %179, %157 : vector<8x128xf32>
    %181 = math.exp %180 : vector<8x128xf32>
    %182 = arith.mulf %177, %181 : vector<8x128xf32>
    %cst_78 = arith.constant 1.000000e+00 : f32
    %183 = vector.broadcast %cst_78 : f32 to vector<8x128xf32>
    %184 = arith.subf %183, %182 : vector<8x128xf32>
    %185 = arith.mulf %156, %184 : vector<8x128xf32>
    %cst_79 = arith.constant 1.000000e+00 : f32
    %186 = vector.broadcast %cst_79 : f32 to vector<8x128xf32>
    %187 = arith.addf %186, %185 : vector<8x128xf32>
    %188 = arith.mulf %149, %187 : vector<8x128xf32>
    %c0_80 = arith.constant 0 : index
    %c0_81 = arith.constant 0 : index
    %189 = vector.load %arg13[%c0_80, %c0_81] : memref<128x32xf32, #tpu.memory_space<vmem>>, vector<128x32xf32>
    %cst_82 = arith.constant dense<0.000000e+00> : vector<8x32xf32>
    %190 = tpu.matmul %188, %189, %cst_82 {dimension_numbers = #tpu.dot_dimension_numbers<[1], [0], [0], [1], [0, 0, 1, 1], [], []>} : vector<8x128xf32>, vector<128x32xf32>, vector<8x32xf32> -> vector<8x32xf32>
    %191 = arith.addf %118, %190 : vector<8x32xf32>
    %c0_83 = arith.constant 0 : index
    %c0_84 = arith.constant 0 : index
    %192 = vector.load %arg14[%c0_83, %c0_84] : memref<1x32xf32, #tpu.memory_space<vmem>>, vector<1x32xf32>
    %193 = vector.broadcast %192 : vector<1x32xf32> to vector<8x32xf32>
    %194 = arith.addf %191, %193 : vector<8x32xf32>
    %c0_85 = arith.constant 0 : index
    %c0_86 = arith.constant 0 : index
    %c0_87 = arith.constant 0 : index
    %195 = vector.load %arg15[%c0_85, %c0_86, %c0_87] : memref<1x8x32xf32, #tpu.memory_space<vmem>>, vector<1x8x32xf32>
    %196 = vector.shape_cast %195 : vector<1x8x32xf32> to vector<8x32xf32>
    %197 = vector.shape_cast %194 : vector<8x32xf32> to vector<1x8x32xf32>
    tpu.vector_store %arg15[%c0_85, %c0_86, %c0_87], %197 {strides = array<i32>} : memref<1x8x32xf32, #tpu.memory_space<vmem>>, vector<1x8x32xf32>,
    return
  }
  func.func @transform_0(%arg0: i32) -> (i32, i32, i32) {
    %c0_i32 = arith.constant 0 : i32
    %c0_i32_0 = arith.constant 0 : i32
    %c0_i32_1 = arith.constant 0 : i32
    return %arg0, %c0_i32, %c0_i32_0 : i32, i32, i32
  }
  func.func @transform_1(%arg0: i32) -> (i32, i32, i32) {
    %c0_i32 = arith.constant 0 : i32
    %c0_i32_0 = arith.constant 0 : i32
    %c0_i32_1 = arith.constant 0 : i32
    return %arg0, %c0_i32, %c0_i32_0 : i32, i32, i32
  }
  func.func @transform_2(%arg0: i32) -> (i32, i32) {
    %c0_i32 = arith.constant 0 : i32
    %c0_i32_0 = arith.constant 0 : i32
    %c0_i32_1 = arith.constant 0 : i32
    return %c0_i32, %c0_i32_0 : i32, i32
  }
  func.func @transform_3(%arg0: i32) -> (i32, i32) {
    %c0_i32 = arith.constant 0 : i32
    %c0_i32_0 = arith.constant 0 : i32
    %c0_i32_1 = arith.constant 0 : i32
    return %c0_i32, %c0_i32_0 : i32, i32
  }
  func.func @transform_4(%arg0: i32) -> (i32, i32) {
    %c0_i32 = arith.constant 0 : i32
    %c0_i32_0 = arith.constant 0 : i32
    %c0_i32_1 = arith.constant 0 : i32
    return %c0_i32, %c0_i32_0 : i32, i32
  }
  func.func @transform_5(%arg0: i32) -> (i32, i32) {
    %c0_i32 = arith.constant 0 : i32
    %c0_i32_0 = arith.constant 0 : i32
    %c0_i32_1 = arith.constant 0 : i32
    return %c0_i32, %c0_i32_0 : i32, i32
  }
  func.func @transform_6(%arg0: i32) -> (i32, i32) {
    %c0_i32 = arith.constant 0 : i32
    %c0_i32_0 = arith.constant 0 : i32
    %c0_i32_1 = arith.constant 0 : i32
    return %c0_i32, %c0_i32_0 : i32, i32
  }
  func.func @transform_7(%arg0: i32) -> (i32, i32) {
    %c0_i32 = arith.constant 0 : i32
    %c0_i32_0 = arith.constant 0 : i32
    %c0_i32_1 = arith.constant 0 : i32
    return %c0_i32, %c0_i32_0 : i32, i32
  }
  func.func @transform_8(%arg0: i32) -> (i32, i32) {
    %c0_i32 = arith.constant 0 : i32
    %c0_i32_0 = arith.constant 0 : i32
    %c0_i32_1 = arith.constant 0 : i32
    return %c0_i32, %c0_i32_0 : i32, i32
  }
  func.func @transform_9(%arg0: i32) -> (i32, i32) {
    %c0_i32 = arith.constant 0 : i32
    %c0_i32_0 = arith.constant 0 : i32
    %c0_i32_1 = arith.constant 0 : i32
    return %c0_i32, %c0_i32_0 : i32, i32
  }
  func.func @transform_10(%arg0: i32) -> (i32, i32) {
    %c0_i32 = arith.constant 0 : i32
    %c0_i32_0 = arith.constant 0 : i32
    %c0_i32_1 = arith.constant 0 : i32
    return %c0_i32, %c0_i32_0 : i32, i32
  }
  func.func @transform_11(%arg0: i32) -> (i32, i32) {
    %c0_i32 = arith.constant 0 : i32
    %c0_i32_0 = arith.constant 0 : i32
    %c0_i32_1 = arith.constant 0 : i32
    return %c0_i32, %c0_i32_0 : i32, i32
  }
  func.func @transform_12(%arg0: i32) -> (i32, i32) {
    %c0_i32 = arith.constant 0 : i32
    %c0_i32_0 = arith.constant 0 : i32
    %c0_i32_1 = arith.constant 0 : i32
    return %c0_i32, %c0_i32_0 : i32, i32
  }
  func.func @transform_13(%arg0: i32) -> (i32, i32) {
    %c0_i32 = arith.constant 0 : i32
    %c0_i32_0 = arith.constant 0 : i32
    %c0_i32_1 = arith.constant 0 : i32
    return %c0_i32, %c0_i32_0 : i32, i32
  }
  func.func @transform_14(%arg0: i32) -> (i32, i32, i32) {
    %c0_i32 = arith.constant 0 : i32
    %c0_i32_0 = arith.constant 0 : i32
    %c0_i32_1 = arith.constant 0 : i32
    return %arg0, %c0_i32, %c0_i32_0 : i32, i32, i32
  }
}

module attributes {stable_mosaic.version = 11 : i64} {
  func.func @_fused_block_kernel(%arg0: i32, %arg1: memref<1x16x32xf32, #tpu.memory_space<vmem>>, %arg2: memref<1x16x32xf32, #tpu.memory_space<vmem>>, %arg3: memref<1x32xf32, #tpu.memory_space<vmem>>, %arg4: memref<1x32xf32, #tpu.memory_space<vmem>>, %arg5: memref<32x96xf32, #tpu.memory_space<vmem>>, %arg6: memref<1x96xf32, #tpu.memory_space<vmem>>, %arg7: memref<32x32xf32, #tpu.memory_space<vmem>>, %arg8: memref<1x32xf32, #tpu.memory_space<vmem>>, %arg9: memref<1x32xf32, #tpu.memory_space<vmem>>, %arg10: memref<1x32xf32, #tpu.memory_space<vmem>>, %arg11: memref<32x128xf32, #tpu.memory_space<vmem>>, %arg12: memref<1x128xf32, #tpu.memory_space<vmem>>, %arg13: memref<128x32xf32, #tpu.memory_space<vmem>>, %arg14: memref<1x32xf32, #tpu.memory_space<vmem>>, %arg15: memref<1x16x32xf32, #tpu.memory_space<vmem>>) attributes {dimension_semantics = [#tpu.dimension_semantics<parallel>], iteration_bounds = array<i64: 2>, scalar_prefetch = 0 : i64, scratch_operands = 0 : i64, tpu.core_type = #tpu.core_type<tc>, window_params = [{transform_indices = @transform_0, window_bounds = array<i64: 1, 16, 32>}, {transform_indices = @transform_1, window_bounds = array<i64: 1, 16, 32>}, {pipeline_mode = #tpu.pipeline_mode<synchronous>, transform_indices = @transform_2, window_bounds = array<i64: 1, 32>}, {pipeline_mode = #tpu.pipeline_mode<synchronous>, transform_indices = @transform_3, window_bounds = array<i64: 1, 32>}, {pipeline_mode = #tpu.pipeline_mode<synchronous>, transform_indices = @transform_4, window_bounds = array<i64: 32, 96>}, {pipeline_mode = #tpu.pipeline_mode<synchronous>, transform_indices = @transform_5, window_bounds = array<i64: 1, 96>}, {pipeline_mode = #tpu.pipeline_mode<synchronous>, transform_indices = @transform_6, window_bounds = array<i64: 32, 32>}, {pipeline_mode = #tpu.pipeline_mode<synchronous>, transform_indices = @transform_7, window_bounds = array<i64: 1, 32>}, {pipeline_mode = #tpu.pipeline_mode<synchronous>, transform_indices = @transform_8, window_bounds = array<i64: 1, 32>}, {pipeline_mode = #tpu.pipeline_mode<synchronous>, transform_indices = @transform_9, window_bounds = array<i64: 1, 32>}, {pipeline_mode = #tpu.pipeline_mode<synchronous>, transform_indices = @transform_10, window_bounds = array<i64: 32, 128>}, {pipeline_mode = #tpu.pipeline_mode<synchronous>, transform_indices = @transform_11, window_bounds = array<i64: 1, 128>}, {pipeline_mode = #tpu.pipeline_mode<synchronous>, transform_indices = @transform_12, window_bounds = array<i64: 128, 32>}, {pipeline_mode = #tpu.pipeline_mode<synchronous>, transform_indices = @transform_13, window_bounds = array<i64: 1, 32>}, {transform_indices = @transform_14, window_bounds = array<i64: 1, 16, 32>}]} {
    %c0 = arith.constant 0 : index
    %c0_0 = arith.constant 0 : index
    %c0_1 = arith.constant 0 : index
    %0 = vector.load %arg1[%c0, %c0_0, %c0_1] : memref<1x16x32xf32, #tpu.memory_space<vmem>>, vector<1x16x32xf32>
    %1 = vector.shape_cast %0 : vector<1x16x32xf32> to vector<16x32xf32>
    %c0_2 = arith.constant 0 : index
    %c0_3 = arith.constant 0 : index
    %c0_4 = arith.constant 0 : index
    %2 = vector.load %arg2[%c0_2, %c0_3, %c0_4] : memref<1x16x32xf32, #tpu.memory_space<vmem>>, vector<1x16x32xf32>
    %3 = vector.shape_cast %2 : vector<1x16x32xf32> to vector<16x32xf32>
    %4 = arith.addf %1, %3 : vector<16x32xf32>
    %cst = arith.constant dense<0.000000e+00> : vector<16xf32>
    %5 = vector.multi_reduction <add>, %4, %cst [1] : vector<16x32xf32> to vector<16xf32>
    %6 = vector.shape_cast %5 : vector<16xf32> to vector<16x1xf32>
    %cst_5 = arith.constant 3.200000e+01 : f32
    %7 = vector.broadcast %cst_5 : f32 to vector<16x1xf32>
    %8 = arith.divf %6, %7 : vector<16x1xf32>
    %9 = vector.broadcast %8 : vector<16x1xf32> to vector<16x32xf32>
    %10 = arith.subf %4, %9 : vector<16x32xf32>
    %11 = arith.mulf %10, %10 : vector<16x32xf32>
    %cst_6 = arith.constant dense<0.000000e+00> : vector<16xf32>
    %12 = vector.multi_reduction <add>, %11, %cst_6 [1] : vector<16x32xf32> to vector<16xf32>
    %13 = vector.shape_cast %12 : vector<16xf32> to vector<16x1xf32>
    %cst_7 = arith.constant 3.200000e+01 : f32
    %14 = vector.broadcast %cst_7 : f32 to vector<16x1xf32>
    %15 = arith.divf %13, %14 : vector<16x1xf32>
    %16 = vector.broadcast %8 : vector<16x1xf32> to vector<16x32xf32>
    %17 = arith.subf %4, %16 : vector<16x32xf32>
    %cst_8 = arith.constant 9.99999974E-6 : f32
    %18 = vector.broadcast %cst_8 : f32 to vector<16x1xf32>
    %19 = arith.addf %15, %18 : vector<16x1xf32>
    %20 = math.rsqrt %19 : vector<16x1xf32>
    %21 = vector.broadcast %20 : vector<16x1xf32> to vector<16x32xf32>
    %22 = arith.mulf %17, %21 : vector<16x32xf32>
    %c0_9 = arith.constant 0 : index
    %c0_10 = arith.constant 0 : index
    %23 = vector.load %arg3[%c0_9, %c0_10] : memref<1x32xf32, #tpu.memory_space<vmem>>, vector<1x32xf32>
    %24 = vector.broadcast %23 : vector<1x32xf32> to vector<16x32xf32>
    %25 = arith.mulf %22, %24 : vector<16x32xf32>
    %c0_11 = arith.constant 0 : index
    %c0_12 = arith.constant 0 : index
    %26 = vector.load %arg4[%c0_11, %c0_12] : memref<1x32xf32, #tpu.memory_space<vmem>>, vector<1x32xf32>
    %27 = vector.broadcast %26 : vector<1x32xf32> to vector<16x32xf32>
    %28 = arith.addf %25, %27 : vector<16x32xf32>
    %c0_13 = arith.constant 0 : index
    %c0_14 = arith.constant 0 : index
    %29 = vector.load %arg5[%c0_13, %c0_14] : memref<32x96xf32, #tpu.memory_space<vmem>>, vector<32x96xf32>
    %cst_15 = arith.constant dense<0.000000e+00> : vector<16x96xf32>
    %30 = tpu.matmul %28, %29, %cst_15 {dimension_numbers = #tpu.dot_dimension_numbers<[1], [0], [0], [1], [0, 0, 1, 1], [], []>} : vector<16x32xf32>, vector<32x96xf32>, vector<16x96xf32> -> vector<16x96xf32>
    %c0_16 = arith.constant 0 : index
    %c0_17 = arith.constant 0 : index
    %31 = vector.load %arg6[%c0_16, %c0_17] : memref<1x96xf32, #tpu.memory_space<vmem>>, vector<1x96xf32>
    %32 = vector.broadcast %31 : vector<1x96xf32> to vector<16x96xf32>
    %33 = arith.addf %30, %32 : vector<16x96xf32>
    %cst_18 = arith.constant 0.000000e+00 : f32
    %34 = vector.broadcast %cst_18 : f32 to vector<16x32xf32>
    %35 = vector.extract_strided_slice %33 {offsets = [0, 0], sizes = [16, 8], strides = [1, 1]} : vector<16x96xf32> to vector<16x8xf32>
    %cst_19 = arith.constant 0.353553385 : f32
    %36 = vector.broadcast %cst_19 : f32 to vector<16x8xf32>
    %37 = arith.mulf %35, %36 : vector<16x8xf32>
    %38 = vector.extract_strided_slice %33 {offsets = [0, 32], sizes = [16, 8], strides = [1, 1]} : vector<16x96xf32> to vector<16x8xf32>
    %39 = vector.extract_strided_slice %33 {offsets = [0, 64], sizes = [16, 8], strides = [1, 1]} : vector<16x96xf32> to vector<16x8xf32>
    %cst_20 = arith.constant dense<0.000000e+00> : vector<16x16xf32>
    %40 = tpu.matmul %37, %38, %cst_20 {dimension_numbers = #tpu.dot_dimension_numbers<[1], [1], [0], [0], [0, 0, 1, 0], [], []>} : vector<16x8xf32>, vector<16x8xf32>, vector<16x16xf32> -> vector<16x16xf32>
    %cst_21 = arith.constant dense<0xFF800000> : vector<16xf32>
    %41 = vector.multi_reduction <maximumf>, %40, %cst_21 [1] : vector<16x16xf32> to vector<16xf32>
    %42 = vector.shape_cast %41 : vector<16xf32> to vector<16x1xf32>
    %43 = vector.broadcast %42 : vector<16x1xf32> to vector<16x16xf32>
    %44 = arith.subf %40, %43 : vector<16x16xf32>
    %45 = math.exp %44 : vector<16x16xf32>
    %cst_22 = arith.constant dense<0.000000e+00> : vector<16xf32>
    %46 = vector.multi_reduction <add>, %45, %cst_22 [1] : vector<16x16xf32> to vector<16xf32>
    %47 = vector.shape_cast %46 : vector<16xf32> to vector<16x1xf32>
    %48 = tpu.reciprocal %47 {approx = true} : vector<16x1xf32> -> vector<16x1xf32>
    %49 = vector.broadcast %48 : vector<16x1xf32> to vector<16x16xf32>
    %50 = arith.mulf %45, %49 : vector<16x16xf32>
    %cst_23 = arith.constant dense<0.000000e+00> : vector<16x8xf32>
    %51 = tpu.matmul %50, %39, %cst_23 {dimension_numbers = #tpu.dot_dimension_numbers<[1], [0], [0], [1], [0, 0, 1, 1], [], []>} : vector<16x16xf32>, vector<16x8xf32>, vector<16x8xf32> -> vector<16x8xf32>
    %c0_24 = arith.constant 0 : index
    %c0_25 = arith.constant 0 : index
    %52 = vector.load %arg7[%c0_24, %c0_25] : memref<32x32xf32, #tpu.memory_space<vmem>>, vector<8x32xf32>
    %cst_26 = arith.constant dense<0.000000e+00> : vector<16x32xf32>
    %53 = tpu.matmul %51, %52, %cst_26 {dimension_numbers = #tpu.dot_dimension_numbers<[1], [0], [0], [1], [0, 0, 1, 1], [], []>} : vector<16x8xf32>, vector<8x32xf32>, vector<16x32xf32> -> vector<16x32xf32>
    %54 = arith.addf %34, %53 : vector<16x32xf32>
    %55 = vector.extract_strided_slice %33 {offsets = [0, 8], sizes = [16, 8], strides = [1, 1]} : vector<16x96xf32> to vector<16x8xf32>
    %cst_27 = arith.constant 0.353553385 : f32
    %56 = vector.broadcast %cst_27 : f32 to vector<16x8xf32>
    %57 = arith.mulf %55, %56 : vector<16x8xf32>
    %58 = vector.extract_strided_slice %33 {offsets = [0, 40], sizes = [16, 8], strides = [1, 1]} : vector<16x96xf32> to vector<16x8xf32>
    %59 = vector.extract_strided_slice %33 {offsets = [0, 72], sizes = [16, 8], strides = [1, 1]} : vector<16x96xf32> to vector<16x8xf32>
    %cst_28 = arith.constant dense<0.000000e+00> : vector<16x16xf32>
    %60 = tpu.matmul %57, %58, %cst_28 {dimension_numbers = #tpu.dot_dimension_numbers<[1], [1], [0], [0], [0, 0, 1, 0], [], []>} : vector<16x8xf32>, vector<16x8xf32>, vector<16x16xf32> -> vector<16x16xf32>
    %cst_29 = arith.constant dense<0xFF800000> : vector<16xf32>
    %61 = vector.multi_reduction <maximumf>, %60, %cst_29 [1] : vector<16x16xf32> to vector<16xf32>
    %62 = vector.shape_cast %61 : vector<16xf32> to vector<16x1xf32>
    %63 = vector.broadcast %62 : vector<16x1xf32> to vector<16x16xf32>
    %64 = arith.subf %60, %63 : vector<16x16xf32>
    %65 = math.exp %64 : vector<16x16xf32>
    %cst_30 = arith.constant dense<0.000000e+00> : vector<16xf32>
    %66 = vector.multi_reduction <add>, %65, %cst_30 [1] : vector<16x16xf32> to vector<16xf32>
    %67 = vector.shape_cast %66 : vector<16xf32> to vector<16x1xf32>
    %68 = tpu.reciprocal %67 {approx = true} : vector<16x1xf32> -> vector<16x1xf32>
    %69 = vector.broadcast %68 : vector<16x1xf32> to vector<16x16xf32>
    %70 = arith.mulf %65, %69 : vector<16x16xf32>
    %cst_31 = arith.constant dense<0.000000e+00> : vector<16x8xf32>
    %71 = tpu.matmul %70, %59, %cst_31 {dimension_numbers = #tpu.dot_dimension_numbers<[1], [0], [0], [1], [0, 0, 1, 1], [], []>} : vector<16x16xf32>, vector<16x8xf32>, vector<16x8xf32> -> vector<16x8xf32>
    %c8 = arith.constant 8 : index
    %c0_32 = arith.constant 0 : index
    %72 = vector.load %arg7[%c8, %c0_32] : memref<32x32xf32, #tpu.memory_space<vmem>>, vector<8x32xf32>
    %cst_33 = arith.constant dense<0.000000e+00> : vector<16x32xf32>
    %73 = tpu.matmul %71, %72, %cst_33 {dimension_numbers = #tpu.dot_dimension_numbers<[1], [0], [0], [1], [0, 0, 1, 1], [], []>} : vector<16x8xf32>, vector<8x32xf32>, vector<16x32xf32> -> vector<16x32xf32>
    %74 = arith.addf %54, %73 : vector<16x32xf32>
    %75 = vector.extract_strided_slice %33 {offsets = [0, 16], sizes = [16, 8], strides = [1, 1]} : vector<16x96xf32> to vector<16x8xf32>
    %cst_34 = arith.constant 0.353553385 : f32
    %76 = vector.broadcast %cst_34 : f32 to vector<16x8xf32>
    %77 = arith.mulf %75, %76 : vector<16x8xf32>
    %78 = vector.extract_strided_slice %33 {offsets = [0, 48], sizes = [16, 8], strides = [1, 1]} : vector<16x96xf32> to vector<16x8xf32>
    %79 = vector.extract_strided_slice %33 {offsets = [0, 80], sizes = [16, 8], strides = [1, 1]} : vector<16x96xf32> to vector<16x8xf32>
    %cst_35 = arith.constant dense<0.000000e+00> : vector<16x16xf32>
    %80 = tpu.matmul %77, %78, %cst_35 {dimension_numbers = #tpu.dot_dimension_numbers<[1], [1], [0], [0], [0, 0, 1, 0], [], []>} : vector<16x8xf32>, vector<16x8xf32>, vector<16x16xf32> -> vector<16x16xf32>
    %cst_36 = arith.constant dense<0xFF800000> : vector<16xf32>
    %81 = vector.multi_reduction <maximumf>, %80, %cst_36 [1] : vector<16x16xf32> to vector<16xf32>
    %82 = vector.shape_cast %81 : vector<16xf32> to vector<16x1xf32>
    %83 = vector.broadcast %82 : vector<16x1xf32> to vector<16x16xf32>
    %84 = arith.subf %80, %83 : vector<16x16xf32>
    %85 = math.exp %84 : vector<16x16xf32>
    %cst_37 = arith.constant dense<0.000000e+00> : vector<16xf32>
    %86 = vector.multi_reduction <add>, %85, %cst_37 [1] : vector<16x16xf32> to vector<16xf32>
    %87 = vector.shape_cast %86 : vector<16xf32> to vector<16x1xf32>
    %88 = tpu.reciprocal %87 {approx = true} : vector<16x1xf32> -> vector<16x1xf32>
    %89 = vector.broadcast %88 : vector<16x1xf32> to vector<16x16xf32>
    %90 = arith.mulf %85, %89 : vector<16x16xf32>
    %cst_38 = arith.constant dense<0.000000e+00> : vector<16x8xf32>
    %91 = tpu.matmul %90, %79, %cst_38 {dimension_numbers = #tpu.dot_dimension_numbers<[1], [0], [0], [1], [0, 0, 1, 1], [], []>} : vector<16x16xf32>, vector<16x8xf32>, vector<16x8xf32> -> vector<16x8xf32>
    %c16 = arith.constant 16 : index
    %c0_39 = arith.constant 0 : index
    %92 = vector.load %arg7[%c16, %c0_39] : memref<32x32xf32, #tpu.memory_space<vmem>>, vector<8x32xf32>
    %cst_40 = arith.constant dense<0.000000e+00> : vector<16x32xf32>
    %93 = tpu.matmul %91, %92, %cst_40 {dimension_numbers = #tpu.dot_dimension_numbers<[1], [0], [0], [1], [0, 0, 1, 1], [], []>} : vector<16x8xf32>, vector<8x32xf32>, vector<16x32xf32> -> vector<16x32xf32>
    %94 = arith.addf %74, %93 : vector<16x32xf32>
    %95 = vector.extract_strided_slice %33 {offsets = [0, 24], sizes = [16, 8], strides = [1, 1]} : vector<16x96xf32> to vector<16x8xf32>
    %cst_41 = arith.constant 0.353553385 : f32
    %96 = vector.broadcast %cst_41 : f32 to vector<16x8xf32>
    %97 = arith.mulf %95, %96 : vector<16x8xf32>
    %98 = vector.extract_strided_slice %33 {offsets = [0, 56], sizes = [16, 8], strides = [1, 1]} : vector<16x96xf32> to vector<16x8xf32>
    %99 = vector.extract_strided_slice %33 {offsets = [0, 88], sizes = [16, 8], strides = [1, 1]} : vector<16x96xf32> to vector<16x8xf32>
    %cst_42 = arith.constant dense<0.000000e+00> : vector<16x16xf32>
    %100 = tpu.matmul %97, %98, %cst_42 {dimension_numbers = #tpu.dot_dimension_numbers<[1], [1], [0], [0], [0, 0, 1, 0], [], []>} : vector<16x8xf32>, vector<16x8xf32>, vector<16x16xf32> -> vector<16x16xf32>
    %cst_43 = arith.constant dense<0xFF800000> : vector<16xf32>
    %101 = vector.multi_reduction <maximumf>, %100, %cst_43 [1] : vector<16x16xf32> to vector<16xf32>
    %102 = vector.shape_cast %101 : vector<16xf32> to vector<16x1xf32>
    %103 = vector.broadcast %102 : vector<16x1xf32> to vector<16x16xf32>
    %104 = arith.subf %100, %103 : vector<16x16xf32>
    %105 = math.exp %104 : vector<16x16xf32>
    %cst_44 = arith.constant dense<0.000000e+00> : vector<16xf32>
    %106 = vector.multi_reduction <add>, %105, %cst_44 [1] : vector<16x16xf32> to vector<16xf32>
    %107 = vector.shape_cast %106 : vector<16xf32> to vector<16x1xf32>
    %108 = tpu.reciprocal %107 {approx = true} : vector<16x1xf32> -> vector<16x1xf32>
    %109 = vector.broadcast %108 : vector<16x1xf32> to vector<16x16xf32>
    %110 = arith.mulf %105, %109 : vector<16x16xf32>
    %cst_45 = arith.constant dense<0.000000e+00> : vector<16x8xf32>
    %111 = tpu.matmul %110, %99, %cst_45 {dimension_numbers = #tpu.dot_dimension_numbers<[1], [0], [0], [1], [0, 0, 1, 1], [], []>} : vector<16x16xf32>, vector<16x8xf32>, vector<16x8xf32> -> vector<16x8xf32>
    %c24 = arith.constant 24 : index
    %c0_46 = arith.constant 0 : index
    %112 = vector.load %arg7[%c24, %c0_46] : memref<32x32xf32, #tpu.memory_space<vmem>>, vector<8x32xf32>
    %cst_47 = arith.constant dense<0.000000e+00> : vector<16x32xf32>
    %113 = tpu.matmul %111, %112, %cst_47 {dimension_numbers = #tpu.dot_dimension_numbers<[1], [0], [0], [1], [0, 0, 1, 1], [], []>} : vector<16x8xf32>, vector<8x32xf32>, vector<16x32xf32> -> vector<16x32xf32>
    %114 = arith.addf %94, %113 : vector<16x32xf32>
    %115 = arith.addf %4, %114 : vector<16x32xf32>
    %c0_48 = arith.constant 0 : index
    %c0_49 = arith.constant 0 : index
    %116 = vector.load %arg8[%c0_48, %c0_49] : memref<1x32xf32, #tpu.memory_space<vmem>>, vector<1x32xf32>
    %117 = vector.broadcast %116 : vector<1x32xf32> to vector<16x32xf32>
    %118 = arith.addf %115, %117 : vector<16x32xf32>
    %cst_50 = arith.constant dense<0.000000e+00> : vector<16xf32>
    %119 = vector.multi_reduction <add>, %118, %cst_50 [1] : vector<16x32xf32> to vector<16xf32>
    %120 = vector.shape_cast %119 : vector<16xf32> to vector<16x1xf32>
    %cst_51 = arith.constant 3.200000e+01 : f32
    %121 = vector.broadcast %cst_51 : f32 to vector<16x1xf32>
    %122 = arith.divf %120, %121 : vector<16x1xf32>
    %123 = vector.broadcast %122 : vector<16x1xf32> to vector<16x32xf32>
    %124 = arith.subf %118, %123 : vector<16x32xf32>
    %125 = arith.mulf %124, %124 : vector<16x32xf32>
    %cst_52 = arith.constant dense<0.000000e+00> : vector<16xf32>
    %126 = vector.multi_reduction <add>, %125, %cst_52 [1] : vector<16x32xf32> to vector<16xf32>
    %127 = vector.shape_cast %126 : vector<16xf32> to vector<16x1xf32>
    %cst_53 = arith.constant 3.200000e+01 : f32
    %128 = vector.broadcast %cst_53 : f32 to vector<16x1xf32>
    %129 = arith.divf %127, %128 : vector<16x1xf32>
    %130 = vector.broadcast %122 : vector<16x1xf32> to vector<16x32xf32>
    %131 = arith.subf %118, %130 : vector<16x32xf32>
    %cst_54 = arith.constant 9.99999974E-6 : f32
    %132 = vector.broadcast %cst_54 : f32 to vector<16x1xf32>
    %133 = arith.addf %129, %132 : vector<16x1xf32>
    %134 = math.rsqrt %133 : vector<16x1xf32>
    %135 = vector.broadcast %134 : vector<16x1xf32> to vector<16x32xf32>
    %136 = arith.mulf %131, %135 : vector<16x32xf32>
    %c0_55 = arith.constant 0 : index
    %c0_56 = arith.constant 0 : index
    %137 = vector.load %arg9[%c0_55, %c0_56] : memref<1x32xf32, #tpu.memory_space<vmem>>, vector<1x32xf32>
    %138 = vector.broadcast %137 : vector<1x32xf32> to vector<16x32xf32>
    %139 = arith.mulf %136, %138 : vector<16x32xf32>
    %c0_57 = arith.constant 0 : index
    %c0_58 = arith.constant 0 : index
    %140 = vector.load %arg10[%c0_57, %c0_58] : memref<1x32xf32, #tpu.memory_space<vmem>>, vector<1x32xf32>
    %141 = vector.broadcast %140 : vector<1x32xf32> to vector<16x32xf32>
    %142 = arith.addf %139, %141 : vector<16x32xf32>
    %c0_59 = arith.constant 0 : index
    %c0_60 = arith.constant 0 : index
    %143 = vector.load %arg11[%c0_59, %c0_60] : memref<32x128xf32, #tpu.memory_space<vmem>>, vector<32x128xf32>
    %cst_61 = arith.constant dense<0.000000e+00> : vector<16x128xf32>
    %144 = tpu.matmul %142, %143, %cst_61 {dimension_numbers = #tpu.dot_dimension_numbers<[1], [0], [0], [1], [0, 0, 1, 1], [], []>} : vector<16x32xf32>, vector<32x128xf32>, vector<16x128xf32> -> vector<16x128xf32>
    %c0_62 = arith.constant 0 : index
    %c0_63 = arith.constant 0 : index
    %145 = vector.load %arg12[%c0_62, %c0_63] : memref<1x128xf32, #tpu.memory_space<vmem>>, vector<1x128xf32>
    %146 = vector.broadcast %145 : vector<1x128xf32> to vector<16x128xf32>
    %147 = arith.addf %144, %146 : vector<16x128xf32>
    %cst_64 = arith.constant 5.000000e-01 : f32
    %148 = vector.broadcast %cst_64 : f32 to vector<16x128xf32>
    %149 = arith.mulf %148, %147 : vector<16x128xf32>
    %cst_65 = arith.constant 0.707106769 : f32
    %150 = vector.broadcast %cst_65 : f32 to vector<16x128xf32>
    %151 = arith.mulf %147, %150 : vector<16x128xf32>
    %cst_66 = arith.constant 0.000000e+00 : f32
    %152 = vector.broadcast %cst_66 : f32 to vector<16x128xf32>
    %153 = arith.cmpf oge, %151, %152 : vector<16x128xf32>
    %cst_67 = arith.constant 1.000000e+00 : f32
    %cst_68 = arith.constant -1.000000e+00 : f32
    %154 = vector.broadcast %cst_67 : f32 to vector<16x128xf32>
    %155 = vector.broadcast %cst_68 : f32 to vector<16x128xf32>
    %156 = arith.select %153, %154, %155 : vector<16x128xi1>, vector<16x128xf32>
    %157 = math.absf %151 : vector<16x128xf32>
    %cst_69 = arith.constant 0.327591091 : f32
    %158 = vector.broadcast %cst_69 : f32 to vector<16x128xf32>
    %159 = arith.mulf %158, %157 : vector<16x128xf32>
    %cst_70 = arith.constant 1.000000e+00 : f32
    %160 = vector.broadcast %cst_70 : f32 to vector<16x128xf32>
    %161 = arith.addf %160, %159 : vector<16x128xf32>
    %cst_71 = arith.constant 1.000000e+00 : f32
    %162 = vector.broadcast %cst_71 : f32 to vector<16x128xf32>
    %163 = arith.divf %162, %161 : vector<16x128xf32>
    %cst_72 = arith.constant 1.06140542 : f32
    %164 = vector.broadcast %cst_72 : f32 to vector<16x128xf32>
    %165 = arith.mulf %164, %163 : vector<16x128xf32>
    %cst_73 = arith.constant -1.45315206 : f32
    %166 = vector.broadcast %cst_73 : f32 to vector<16x128xf32>
    %167 = arith.addf %165, %166 : vector<16x128xf32>
    %168 = arith.mulf %167, %163 : vector<16x128xf32>
    %cst_74 = arith.constant 1.42141378 : f32
    %169 = vector.broadcast %cst_74 : f32 to vector<16x128xf32>
    %170 = arith.addf %168, %169 : vector<16x128xf32>
    %171 = arith.mulf %170, %163 : vector<16x128xf32>
    %cst_75 = arith.constant -0.284496725 : f32
    %172 = vector.broadcast %cst_75 : f32 to vector<16x128xf32>
    %173 = arith.addf %171, %172 : vector<16x128xf32>
    %174 = arith.mulf %173, %163 : vector<16x128xf32>
    %cst_76 = arith.constant 0.254829586 : f32
    %175 = vector.broadcast %cst_76 : f32 to vector<16x128xf32>
    %176 = arith.addf %174, %175 : vector<16x128xf32>
    %177 = arith.mulf %176, %163 : vector<16x128xf32>
    %cst_77 = arith.constant 0.000000e+00 : f32
    %178 = vector.broadcast %cst_77 : f32 to vector<16x128xf32>
    %179 = arith.subf %178, %157 : vector<16x128xf32>
    %180 = arith.mulf %179, %157 : vector<16x128xf32>
    %181 = math.exp %180 : vector<16x128xf32>
    %182 = arith.mulf %177, %181 : vector<16x128xf32>
    %cst_78 = arith.constant 1.000000e+00 : f32
    %183 = vector.broadcast %cst_78 : f32 to vector<16x128xf32>
    %184 = arith.subf %183, %182 : vector<16x128xf32>
    %185 = arith.mulf %156, %184 : vector<16x128xf32>
    %cst_79 = arith.constant 1.000000e+00 : f32
    %186 = vector.broadcast %cst_79 : f32 to vector<16x128xf32>
    %187 = arith.addf %186, %185 : vector<16x128xf32>
    %188 = arith.mulf %149, %187 : vector<16x128xf32>
    %c0_80 = arith.constant 0 : index
    %c0_81 = arith.constant 0 : index
    %189 = vector.load %arg13[%c0_80, %c0_81] : memref<128x32xf32, #tpu.memory_space<vmem>>, vector<128x32xf32>
    %cst_82 = arith.constant dense<0.000000e+00> : vector<16x32xf32>
    %190 = tpu.matmul %188, %189, %cst_82 {dimension_numbers = #tpu.dot_dimension_numbers<[1], [0], [0], [1], [0, 0, 1, 1], [], []>} : vector<16x128xf32>, vector<128x32xf32>, vector<16x32xf32> -> vector<16x32xf32>
    %191 = arith.addf %118, %190 : vector<16x32xf32>
    %c0_83 = arith.constant 0 : index
    %c0_84 = arith.constant 0 : index
    %192 = vector.load %arg14[%c0_83, %c0_84] : memref<1x32xf32, #tpu.memory_space<vmem>>, vector<1x32xf32>
    %193 = vector.broadcast %192 : vector<1x32xf32> to vector<16x32xf32>
    %194 = arith.addf %191, %193 : vector<16x32xf32>
    %c0_85 = arith.constant 0 : index
    %c0_86 = arith.constant 0 : index
    %c0_87 = arith.constant 0 : index
    %195 = vector.load %arg15[%c0_85, %c0_86, %c0_87] : memref<1x16x32xf32, #tpu.memory_space<vmem>>, vector<1x16x32xf32>
    %196 = vector.shape_cast %195 : vector<1x16x32xf32> to vector<16x32xf32>
    %197 = vector.shape_cast %194 : vector<16x32xf32> to vector<1x16x32xf32>
    tpu.vector_store %arg15[%c0_85, %c0_86, %c0_87], %197 {strides = array<i32>} : memref<1x16x32xf32, #tpu.memory_space<vmem>>, vector<1x16x32xf32>,
    return
  }
  func.func @transform_0(%arg0: i32) -> (i32, i32, i32) {
    %c0_i32 = arith.constant 0 : i32
    %c0_i32_0 = arith.constant 0 : i32
    %c0_i32_1 = arith.constant 0 : i32
    return %arg0, %c0_i32, %c0_i32_0 : i32, i32, i32
  }
  func.func @transform_1(%arg0: i32) -> (i32, i32, i32) {
    %c0_i32 = arith.constant 0 : i32
    %c0_i32_0 = arith.constant 0 : i32
    %c0_i32_1 = arith.constant 0 : i32
    return %arg0, %c0_i32, %c0_i32_0 : i32, i32, i32
  }
  func.func @transform_2(%arg0: i32) -> (i32, i32) {
    %c0_i32 = arith.constant 0 : i32
    %c0_i32_0 = arith.constant 0 : i32
    %c0_i32_1 = arith.constant 0 : i32
    return %c0_i32, %c0_i32_0 : i32, i32
  }
  func.func @transform_3(%arg0: i32) -> (i32, i32) {
    %c0_i32 = arith.constant 0 : i32
    %c0_i32_0 = arith.constant 0 : i32
    %c0_i32_1 = arith.constant 0 : i32
    return %c0_i32, %c0_i32_0 : i32, i32
  }
  func.func @transform_4(%arg0: i32) -> (i32, i32) {
    %c0_i32 = arith.constant 0 : i32
    %c0_i32_0 = arith.constant 0 : i32
    %c0_i32_1 = arith.constant 0 : i32
    return %c0_i32, %c0_i32_0 : i32, i32
  }
  func.func @transform_5(%arg0: i32) -> (i32, i32) {
    %c0_i32 = arith.constant 0 : i32
    %c0_i32_0 = arith.constant 0 : i32
    %c0_i32_1 = arith.constant 0 : i32
    return %c0_i32, %c0_i32_0 : i32, i32
  }
  func.func @transform_6(%arg0: i32) -> (i32, i32) {
    %c0_i32 = arith.constant 0 : i32
    %c0_i32_0 = arith.constant 0 : i32
    %c0_i32_1 = arith.constant 0 : i32
    return %c0_i32, %c0_i32_0 : i32, i32
  }
  func.func @transform_7(%arg0: i32) -> (i32, i32) {
    %c0_i32 = arith.constant 0 : i32
    %c0_i32_0 = arith.constant 0 : i32
    %c0_i32_1 = arith.constant 0 : i32
    return %c0_i32, %c0_i32_0 : i32, i32
  }
  func.func @transform_8(%arg0: i32) -> (i32, i32) {
    %c0_i32 = arith.constant 0 : i32
    %c0_i32_0 = arith.constant 0 : i32
    %c0_i32_1 = arith.constant 0 : i32
    return %c0_i32, %c0_i32_0 : i32, i32
  }
  func.func @transform_9(%arg0: i32) -> (i32, i32) {
    %c0_i32 = arith.constant 0 : i32
    %c0_i32_0 = arith.constant 0 : i32
    %c0_i32_1 = arith.constant 0 : i32
    return %c0_i32, %c0_i32_0 : i32, i32
  }
  func.func @transform_10(%arg0: i32) -> (i32, i32) {
    %c0_i32 = arith.constant 0 : i32
    %c0_i32_0 = arith.constant 0 : i32
    %c0_i32_1 = arith.constant 0 : i32
    return %c0_i32, %c0_i32_0 : i32, i32
  }
  func.func @transform_11(%arg0: i32) -> (i32, i32) {
    %c0_i32 = arith.constant 0 : i32
    %c0_i32_0 = arith.constant 0 : i32
    %c0_i32_1 = arith.constant 0 : i32
    return %c0_i32, %c0_i32_0 : i32, i32
  }
  func.func @transform_12(%arg0: i32) -> (i32, i32) {
    %c0_i32 = arith.constant 0 : i32
    %c0_i32_0 = arith.constant 0 : i32
    %c0_i32_1 = arith.constant 0 : i32
    return %c0_i32, %c0_i32_0 : i32, i32
  }
  func.func @transform_13(%arg0: i32) -> (i32, i32) {
    %c0_i32 = arith.constant 0 : i32
    %c0_i32_0 = arith.constant 0 : i32
    %c0_i32_1 = arith.constant 0 : i32
    return %c0_i32, %c0_i32_0 : i32, i32
  }
  func.func @transform_14(%arg0: i32) -> (i32, i32, i32) {
    %c0_i32 = arith.constant 0 : i32
    %c0_i32_0 = arith.constant 0 : i32
    %c0_i32_1 = arith.constant 0 : i32
    return %arg0, %c0_i32, %c0_i32_0 : i32, i32, i32
  }
}

module attributes {stable_mosaic.version = 11 : i64} {
  func.func @_recon_head_kernel(%arg0: i32, %arg1: memref<1x8x32xf32, #tpu.memory_space<vmem>>, %arg2: memref<32x8xf32, #tpu.memory_space<vmem>>, %arg3: memref<32x1xf32, #tpu.memory_space<vmem>>, %arg4: memref<32x16xf32, #tpu.memory_space<vmem>>, %arg5: memref<1x16xf32, #tpu.memory_space<vmem>>, %arg6: memref<16x3xf32, #tpu.memory_space<vmem>>, %arg7: memref<1x3xf32, #tpu.memory_space<vmem>>, %arg8: memref<1x32x3xf32, #tpu.memory_space<vmem>>) attributes {dimension_semantics = [#tpu.dimension_semantics<parallel>], iteration_bounds = array<i64: 2>, scalar_prefetch = 0 : i64, scratch_operands = 0 : i64, tpu.core_type = #tpu.core_type<tc>, window_params = [{transform_indices = @transform_0, window_bounds = array<i64: 1, 8, 32>}, {pipeline_mode = #tpu.pipeline_mode<synchronous>, transform_indices = @transform_1, window_bounds = array<i64: 32, 8>}, {pipeline_mode = #tpu.pipeline_mode<synchronous>, transform_indices = @transform_2, window_bounds = array<i64: 32, 1>}, {pipeline_mode = #tpu.pipeline_mode<synchronous>, transform_indices = @transform_3, window_bounds = array<i64: 32, 16>}, {pipeline_mode = #tpu.pipeline_mode<synchronous>, transform_indices = @transform_4, window_bounds = array<i64: 1, 16>}, {pipeline_mode = #tpu.pipeline_mode<synchronous>, transform_indices = @transform_5, window_bounds = array<i64: 16, 3>}, {pipeline_mode = #tpu.pipeline_mode<synchronous>, transform_indices = @transform_6, window_bounds = array<i64: 1, 3>}, {transform_indices = @transform_7, window_bounds = array<i64: 1, 32, 3>}]} {
    %c0 = arith.constant 0 : index
    %c0_0 = arith.constant 0 : index
    %c0_1 = arith.constant 0 : index
    %0 = vector.load %arg1[%c0, %c0_0, %c0_1] : memref<1x8x32xf32, #tpu.memory_space<vmem>>, vector<1x8x32xf32>
    %1 = vector.shape_cast %0 : vector<1x8x32xf32> to vector<8x32xf32>
    %c0_2 = arith.constant 0 : index
    %c0_3 = arith.constant 0 : index
    %2 = vector.load %arg2[%c0_2, %c0_3] : memref<32x8xf32, #tpu.memory_space<vmem>>, vector<32x8xf32>
    %cst = arith.constant dense<0.000000e+00> : vector<32x32xf32>
    %3 = tpu.matmul %2, %1, %cst {dimension_numbers = #tpu.dot_dimension_numbers<[1], [0], [0], [1], [0, 0, 1, 1], [], []>} : vector<32x8xf32>, vector<8x32xf32>, vector<32x32xf32> -> vector<32x32xf32>
    %c0_4 = arith.constant 0 : index
    %c0_5 = arith.constant 0 : index
    %4 = vector.load %arg3[%c0_4, %c0_5] : memref<32x1xf32, #tpu.memory_space<vmem>>, vector<32x1xf32>
    %5 = vector.broadcast %4 : vector<32x1xf32> to vector<32x32xf32>
    %6 = arith.addf %3, %5 : vector<32x32xf32>
    %c0_6 = arith.constant 0 : index
    %c0_7 = arith.constant 0 : index
    %7 = vector.load %arg4[%c0_6, %c0_7] : memref<32x16xf32, #tpu.memory_space<vmem>>, vector<32x16xf32>
    %cst_8 = arith.constant dense<0.000000e+00> : vector<32x16xf32>
    %8 = tpu.matmul %6, %7, %cst_8 {dimension_numbers = #tpu.dot_dimension_numbers<[1], [0], [0], [1], [0, 0, 1, 1], [], []>} : vector<32x32xf32>, vector<32x16xf32>, vector<32x16xf32> -> vector<32x16xf32>
    %c0_9 = arith.constant 0 : index
    %c0_10 = arith.constant 0 : index
    %9 = vector.load %arg5[%c0_9, %c0_10] : memref<1x16xf32, #tpu.memory_space<vmem>>, vector<1x16xf32>
    %10 = vector.broadcast %9 : vector<1x16xf32> to vector<32x16xf32>
    %11 = arith.addf %8, %10 : vector<32x16xf32>
    %cst_11 = arith.constant 5.000000e-01 : f32
    %12 = vector.broadcast %cst_11 : f32 to vector<32x16xf32>
    %13 = arith.mulf %12, %11 : vector<32x16xf32>
    %cst_12 = arith.constant 0.707106769 : f32
    %14 = vector.broadcast %cst_12 : f32 to vector<32x16xf32>
    %15 = arith.mulf %11, %14 : vector<32x16xf32>
    %cst_13 = arith.constant 0.000000e+00 : f32
    %16 = vector.broadcast %cst_13 : f32 to vector<32x16xf32>
    %17 = arith.cmpf oge, %15, %16 : vector<32x16xf32>
    %cst_14 = arith.constant 1.000000e+00 : f32
    %cst_15 = arith.constant -1.000000e+00 : f32
    %18 = vector.broadcast %cst_14 : f32 to vector<32x16xf32>
    %19 = vector.broadcast %cst_15 : f32 to vector<32x16xf32>
    %20 = arith.select %17, %18, %19 : vector<32x16xi1>, vector<32x16xf32>
    %21 = math.absf %15 : vector<32x16xf32>
    %cst_16 = arith.constant 0.327591091 : f32
    %22 = vector.broadcast %cst_16 : f32 to vector<32x16xf32>
    %23 = arith.mulf %22, %21 : vector<32x16xf32>
    %cst_17 = arith.constant 1.000000e+00 : f32
    %24 = vector.broadcast %cst_17 : f32 to vector<32x16xf32>
    %25 = arith.addf %24, %23 : vector<32x16xf32>
    %cst_18 = arith.constant 1.000000e+00 : f32
    %26 = vector.broadcast %cst_18 : f32 to vector<32x16xf32>
    %27 = arith.divf %26, %25 : vector<32x16xf32>
    %cst_19 = arith.constant 1.06140542 : f32
    %28 = vector.broadcast %cst_19 : f32 to vector<32x16xf32>
    %29 = arith.mulf %28, %27 : vector<32x16xf32>
    %cst_20 = arith.constant -1.45315206 : f32
    %30 = vector.broadcast %cst_20 : f32 to vector<32x16xf32>
    %31 = arith.addf %29, %30 : vector<32x16xf32>
    %32 = arith.mulf %31, %27 : vector<32x16xf32>
    %cst_21 = arith.constant 1.42141378 : f32
    %33 = vector.broadcast %cst_21 : f32 to vector<32x16xf32>
    %34 = arith.addf %32, %33 : vector<32x16xf32>
    %35 = arith.mulf %34, %27 : vector<32x16xf32>
    %cst_22 = arith.constant -0.284496725 : f32
    %36 = vector.broadcast %cst_22 : f32 to vector<32x16xf32>
    %37 = arith.addf %35, %36 : vector<32x16xf32>
    %38 = arith.mulf %37, %27 : vector<32x16xf32>
    %cst_23 = arith.constant 0.254829586 : f32
    %39 = vector.broadcast %cst_23 : f32 to vector<32x16xf32>
    %40 = arith.addf %38, %39 : vector<32x16xf32>
    %41 = arith.mulf %40, %27 : vector<32x16xf32>
    %cst_24 = arith.constant 0.000000e+00 : f32
    %42 = vector.broadcast %cst_24 : f32 to vector<32x16xf32>
    %43 = arith.subf %42, %21 : vector<32x16xf32>
    %44 = arith.mulf %43, %21 : vector<32x16xf32>
    %45 = math.exp %44 : vector<32x16xf32>
    %46 = arith.mulf %41, %45 : vector<32x16xf32>
    %cst_25 = arith.constant 1.000000e+00 : f32
    %47 = vector.broadcast %cst_25 : f32 to vector<32x16xf32>
    %48 = arith.subf %47, %46 : vector<32x16xf32>
    %49 = arith.mulf %20, %48 : vector<32x16xf32>
    %cst_26 = arith.constant 1.000000e+00 : f32
    %50 = vector.broadcast %cst_26 : f32 to vector<32x16xf32>
    %51 = arith.addf %50, %49 : vector<32x16xf32>
    %52 = arith.mulf %13, %51 : vector<32x16xf32>
    %c0_27 = arith.constant 0 : index
    %c0_28 = arith.constant 0 : index
    %53 = vector.load %arg6[%c0_27, %c0_28] : memref<16x3xf32, #tpu.memory_space<vmem>>, vector<16x3xf32>
    %cst_29 = arith.constant dense<0.000000e+00> : vector<32x3xf32>
    %54 = tpu.matmul %52, %53, %cst_29 {dimension_numbers = #tpu.dot_dimension_numbers<[1], [0], [0], [1], [0, 0, 1, 1], [], []>} : vector<32x16xf32>, vector<16x3xf32>, vector<32x3xf32> -> vector<32x3xf32>
    %c0_30 = arith.constant 0 : index
    %c0_31 = arith.constant 0 : index
    %55 = vector.load %arg7[%c0_30, %c0_31] : memref<1x3xf32, #tpu.memory_space<vmem>>, vector<1x3xf32>
    %56 = vector.broadcast %55 : vector<1x3xf32> to vector<32x3xf32>
    %57 = arith.addf %54, %56 : vector<32x3xf32>
    %c0_32 = arith.constant 0 : index
    %c0_33 = arith.constant 0 : index
    %c0_34 = arith.constant 0 : index
    %58 = vector.load %arg8[%c0_32, %c0_33, %c0_34] : memref<1x32x3xf32, #tpu.memory_space<vmem>>, vector<1x32x3xf32>
    %59 = vector.shape_cast %58 : vector<1x32x3xf32> to vector<32x3xf32>
    %60 = vector.shape_cast %57 : vector<32x3xf32> to vector<1x32x3xf32>
    tpu.vector_store %arg8[%c0_32, %c0_33, %c0_34], %60 {strides = array<i32>} : memref<1x32x3xf32, #tpu.memory_space<vmem>>, vector<1x32x3xf32>,
    return
  }
  func.func @transform_0(%arg0: i32) -> (i32, i32, i32) {
    %c0_i32 = arith.constant 0 : i32
    %c0_i32_0 = arith.constant 0 : i32
    %c0_i32_1 = arith.constant 0 : i32
    return %arg0, %c0_i32, %c0_i32_0 : i32, i32, i32
  }
  func.func @transform_1(%arg0: i32) -> (i32, i32) {
    %c0_i32 = arith.constant 0 : i32
    %c0_i32_0 = arith.constant 0 : i32
    %c0_i32_1 = arith.constant 0 : i32
    return %c0_i32, %c0_i32_0 : i32, i32
  }
  func.func @transform_2(%arg0: i32) -> (i32, i32) {
    %c0_i32 = arith.constant 0 : i32
    %c0_i32_0 = arith.constant 0 : i32
    %c0_i32_1 = arith.constant 0 : i32
    return %c0_i32, %c0_i32_0 : i32, i32
  }
  func.func @transform_3(%arg0: i32) -> (i32, i32) {
    %c0_i32 = arith.constant 0 : i32
    %c0_i32_0 = arith.constant 0 : i32
    %c0_i32_1 = arith.constant 0 : i32
    return %c0_i32, %c0_i32_0 : i32, i32
  }
  func.func @transform_4(%arg0: i32) -> (i32, i32) {
    %c0_i32 = arith.constant 0 : i32
    %c0_i32_0 = arith.constant 0 : i32
    %c0_i32_1 = arith.constant 0 : i32
    return %c0_i32, %c0_i32_0 : i32, i32
  }
  func.func @transform_5(%arg0: i32) -> (i32, i32) {
    %c0_i32 = arith.constant 0 : i32
    %c0_i32_0 = arith.constant 0 : i32
    %c0_i32_1 = arith.constant 0 : i32
    return %c0_i32, %c0_i32_0 : i32, i32
  }
  func.func @transform_6(%arg0: i32) -> (i32, i32) {
    %c0_i32 = arith.constant 0 : i32
    %c0_i32_0 = arith.constant 0 : i32
    %c0_i32_1 = arith.constant 0 : i32
    return %c0_i32, %c0_i32_0 : i32, i32
  }
  func.func @transform_7(%arg0: i32) -> (i32, i32, i32) {
    %c0_i32 = arith.constant 0 : i32
    %c0_i32_0 = arith.constant 0 : i32
    %c0_i32_1 = arith.constant 0 : i32
    return %arg0, %c0_i32, %c0_i32_0 : i32, i32, i32
  }
}

</mosaic_0001>

<llo_original>
// kernel: mae_branch_forward.8
$region0: #{mae_branch_forward.8}
  #allocation0 [shape = 'u32[]', space=smem, size = 0x4, offset = 0x4, fixed_abs, tag = 'smem constant byte address 0x4 - core index']
  #allocation1 [shape = 'u32[144,128]{1,0:T(1,128)}', space=vmem, size = 0x12000, scoped, tag = 'internal scratch']
  %s0 = inlined_call_operand.vmem [shape: f32[32,3], index: 0, kind: input, shape index: {}]
  %s1 = inlined_call_operand.vmem [shape: f32[3,32], index: 1, kind: input, shape index: {}]
  %s2 = inlined_call_operand.vmem [shape: f32[1,32], index: 2, kind: input, shape index: {}]
  %s3 = inlined_call_operand.vmem [shape: f32[32,32], index: 3, kind: output, shape index: {}]
  %s4 = sld [smem:[#allocation0]]
  $region22: #{mae_branch_forward.8} parent=0
    _
  %s6 = ssub.s32 1, %s4
  %s7 = scalar_select 0, %s6, %s4
  // Predicated region
  $region2: #{mae_branch_forward.8} parent=0 // pred_check
    _
  $region3: #{mae_branch_forward.8} parent=0 // pred_check_branch
    %9 = sbr.rel (0) target = $region5
  $region4: #{mae_branch_forward.8} parent=0 // pred_region
    _
  $region5: #{mae_branch_forward.8} parent=0 // pred_fallthru
    _
  // Predicated region
  $region6: #{mae_branch_forward.8} parent=0 // pred_check
    _
  $region7: #{mae_branch_forward.8} parent=0 // pred_check_branch
    %11 = sbr.rel (0) target = $region9
  $region8: #{mae_branch_forward.8} parent=0 // pred_region
    _
  $region9: #{mae_branch_forward.8} parent=0 // pred_fallthru
    _
  // Predicated region
  $region10: #{mae_branch_forward.8} parent=0 // pred_check
    _
  $region11: #{mae_branch_forward.8} parent=0 // pred_check_branch
    %13 = sbr.rel (0) target = $region13
  $region12: #{mae_branch_forward.8} parent=0 // pred_region
    _
  $region13: #{mae_branch_forward.8} parent=0 // pred_fallthru
    _
  %v14 = vld [vmem:[%s0] sm:$0xff]
  %v15 = vld [vmem:[%s0 + $0x8] sm:$0xff]
  %v16 = vld [vmem:[%s0 + $0x10] sm:$0xff]
  %v17 = vld [vmem:[%s0 + $0x18] sm:$0xff]
  %v18 = vld [vmem:[%s1] sm:$0x7]
  %v19 = vld [vmem:[%s2] sm:$0x1]
  %v21 = vlaneseq
  %v22 = vshrl.u32 %v21, 7
  %v23 = vsub.s32 0, %v22
  %v24 = vrot.slane %v19, %v23
  %vm26 = vcmask 23552
  %v28 = vsel %vm26, %v14, 0
  %v31 = vsel %vm26, %v15, 0
  %v34 = vsel %vm26, %v16, 0
  %v37 = vsel %vm26, %v17, 0
  %vm39 = vcmask 1042432
  %v41 = vsel %vm39, %v18, 0
  %43 = vmatprep.subr.mxu0 0.0
  %44 = vmatpush1.msra.mxu0 0.0
  %45 = vmatprep.subr.mxu0 0.0
  %46 = vmatpush1.msra.mxu0 0.0
  %47 = vmatprep.subr.mxu0 0.0
  %48 = vmatpush1.msra.mxu0 0.0
  %49 = vmatprep.subr.mxu0 0.0
  %50 = vmatpush1.msra.mxu0 0.0
  %51 = vmatprep.subr.mxu0 0.0
  %52 = vmatpush1.msra.mxu0 0.0
  %53 = vmatprep.subr.mxu0 0.0
  %54 = vmatpush1.msra.mxu0 0.0
  %55 = vmatprep.subr.mxu0 0.0
  %56 = vmatpush1.msra.mxu0 0.0
  %57 = vmatprep.subr.mxu0 0.0
  %58 = vmatpush1.msra.mxu0 0.0
  %59 = vmatprep.subr.mxu0 0.0
  %60 = vmatpush1.msra.mxu0 0.0
  %61 = vmatprep.subr.mxu0 0.0
  %62 = vmatpush1.msra.mxu0 0.0
  %63 = vmatprep.subr.mxu0 0.0
  %64 = vmatpush1.msra.mxu0 0.0
  %65 = vmatprep.subr.mxu0 0.0
  %66 = vmatpush1.msra.mxu0 0.0
  %67 = vmatprep.subr.mxu0 0.0
  %68 = vmatpush1.msra.mxu0 0.0
  %69 = vmatprep.subr.mxu0 0.0
  %70 = vmatpush1.msra.mxu0 0.0
  %71 = vmatprep.subr.mxu0 0.0
  %72 = vmatpush1.msra.mxu0 0.0
  %73 = vmatprep.subr.mxu0 0.0
  %74 = vmatpush1.msra.mxu0 %v41
  %75 = vmatprep.subr.mxu0 0.0
  %76 = vmatpush2.msra.mxu0 0.0
  %77 = vmatprep.subr.mxu0 0.0
  %78 = vmatpush2.msra.mxu0 0.0
  %79 = vmatprep.subr.mxu0 0.0
  %80 = vmatpush2.msra.mxu0 0.0
  %81 = vmatprep.subr.mxu0 0.0
  %82 = vmatpush2.msra.mxu0 0.0
  %83 = vmatprep.subr.mxu0 0.0
  %84 = vmatpush2.msra.mxu0 0.0
  %85 = vmatprep.subr.mxu0 0.0
  %86 = vmatpush2.msra.mxu0 0.0
  %87 = vmatprep.subr.mxu0 0.0
  %88 = vmatpush2.msra.mxu0 0.0
  %89 = vmatprep.subr.mxu0 0.0
  %90 = vmatpush2.msra.mxu0 0.0
  %91 = vmatprep.subr.mxu0 0.0
  %92 = vmatpush2.msra.mxu0 0.0
  %93 = vmatprep.subr.mxu0 0.0
  %94 = vmatpush2.msra.mxu0 0.0
  %95 = vmatprep.subr.mxu0 0.0
  %96 = vmatpush2.msra.mxu0 0.0
  %97 = vmatprep.subr.mxu0 0.0
  %98 = vmatpush2.msra.mxu0 0.0
  %99 = vmatprep.subr.mxu0 0.0
  %100 = vmatpush2.msra.mxu0 0.0
  %101 = vmatprep.subr.mxu0 0.0
  %102 = vmatpush2.msra.mxu0 0.0
  %103 = vmatprep.subr.mxu0 0.0
  %104 = vmatpush2.msra.mxu0 0.0
  %105 = vmatprep.subr.mxu0 0.0
  %106 = vmatpush2.msra.mxu0 0.0
  %107 = vmatprep.mubr.f32.mxu0 0.0
  %108 = vmatmul.mubr.f32.gmra.mxu0 %v28
  %v109 = vpop.f32.mrf.mxu0
  %v110 = vadd.f32 %v24, %v109
  %v111 = vpop.f32.mrf.mxu0
  %112 = vmatprep.mubr.f32.mxu0 0.0
  %113 = vmatmul.mubr.f32.gmra.mxu0 %v31
  %v114 = vpop.f32.mrf.mxu0
  %v115 = vadd.f32 %v24, %v114
  %v116 = vpop.f32.mrf.mxu0
  %117 = vmatprep.mubr.f32.mxu0 0.0
  %118 = vmatmul.mubr.f32.gmra.mxu0 %v34
  %v119 = vpop.f32.mrf.mxu0
  %v120 = vadd.f32 %v24, %v119
  %v121 = vpop.f32.mrf.mxu0
  %122 = vmatprep.mubr.f32.mxu0 0.0
  %123 = vmatmul.mubr.f32.gmra.mxu0 %v37
  %v124 = vpop.f32.mrf.mxu0
  %v125 = vadd.f32 %v24, %v124
  %v126 = vpop.f32.mrf.mxu0
  %127 = vdwg.mxu0
  %vm128 = vcmask 261120
  %129 = vst.msk [vmem:[%s3] sm:$0xff] %vm128, %v110
  %130 = vst.msk [vmem:[%s3 + $0x8] sm:$0xff] %vm128, %v115
  %131 = vst.msk [vmem:[%s3 + $0x10] sm:$0xff] %vm128, %v120
  %132 = vst.msk [vmem:[%s3 + $0x18] sm:$0xff] %vm128, %v125
  // Predicated region
  $region14: #{mae_branch_forward.8} parent=0 // pred_check
    _
  $region15: #{mae_branch_forward.8} parent=0 // pred_check_branch
    %134 = sbr.rel (0) target = $region17
  $region16: #{mae_branch_forward.8} parent=0 // pred_region
    _
  $region17: #{mae_branch_forward.8} parent=0 // pred_fallthru
    _
  // Predicated region
  $region18: #{mae_branch_forward.8} parent=0 // pred_check
    _
  $region19: #{mae_branch_forward.8} parent=0 // pred_check_branch
    %136 = sbr.rel (0) target = $region21
  $region20: #{mae_branch_forward.8} parent=0 // pred_region
    _
  $region21: #{mae_branch_forward.8} parent=0 // pred_fallthru
    _

// kernel: mae_branch_forward.6
$region0: #{mae_branch_forward.6}
  #allocation0 [shape = 'u32[]', space=smem, size = 0x4, offset = 0x4, fixed_abs, tag = 'smem constant byte address 0x4 - core index']
  #allocation1 [shape = 'u32[144,128]{1,0:T(1,128)}', space=vmem, size = 0x12000, scoped, tag = 'internal scratch']
  %s0 = inlined_call_operand.vmem [shape: f32[2,8,32], index: 0, kind: input, shape index: {}]
  %s1 = inlined_call_operand.vmem [shape: f32[2,8,32], index: 1, kind: input, shape index: {}]
  %s2 = inlined_call_operand.vmem [shape: f32[1,32], index: 2, kind: input, shape index: {}]
  %s3 = inlined_call_operand.vmem [shape: f32[1,32], index: 3, kind: input, shape index: {}]
  %s4 = inlined_call_operand.vmem [shape: f32[32,96], index: 4, kind: input, shape index: {}]
  %s5 = inlined_call_operand.vmem [shape: f32[1,96], index: 5, kind: input, shape index: {}]
  %s6 = inlined_call_operand.vmem [shape: f32[32,32], index: 6, kind: input, shape index: {}]
  %s7 = inlined_call_operand.vmem [shape: f32[1,32], index: 7, kind: input, shape index: {}]
  %s8 = inlined_call_operand.vmem [shape: f32[1,32], index: 8, kind: input, shape index: {}]
  %s9 = inlined_call_operand.vmem [shape: f32[1,32], index: 9, kind: input, shape index: {}]
  %s10 = inlined_call_operand.vmem [shape: f32[32,128], index: 10, kind: input, shape index: {}]
  %s11 = inlined_call_operand.vmem [shape: f32[1,128], index: 11, kind: input, shape index: {}]
  %s12 = inlined_call_operand.vmem [shape: f32[128,32], index: 12, kind: input, shape index: {}]
  %s13 = inlined_call_operand.vmem [shape: f32[1,32], index: 13, kind: input, shape index: {}]
  %s14 = inlined_call_operand.vmem [shape: f32[2,8,32], index: 14, kind: output, shape index: {}]
  %s15 = sld [smem:[#allocation0]]
  $region89: #{mae_branch_forward.6} parent=0
    _
  %s17 = ssub.s32 1, %s15
  %s18 = scalar_select 0, %s17, %s15
  loop: start=0, step=1, limit=4
  $region2: #{mae_branch_forward.6} parent=0 // loop_pre_header
    _
  $region3: #{mae_branch_forward.6} parent=0 // loop_header
    %s20 = sphi 0, %s24
    %p21 = scmp.ge.s32.totalorder %s20, 4
    %s30 = sphi 0, %s32
    %s33 = sphi 0, %s30
    %s34 = sphi 0, %s33
    %s50 = sphi 0, %s34
    %s56 = sphi 0, %s58
    %s59 = sphi 0, %s56
    %s60 = sphi 0, %s59
    %s76 = sphi 0, %s60
    %s80 = sphi 0, %s80
    %s82 = sphi 0, %s80
    %s83 = sphi 0, %s82
    %s97 = sphi 0, %s83
    %s101 = sphi 0, %s101
    %s103 = sphi 0, %s101
    %s104 = sphi 0, %s103
    %s118 = sphi 0, %s104
    %s122 = sphi 0, %s122
    %s124 = sphi 0, %s122
    %s125 = sphi 0, %s124
    %s139 = sphi 0, %s125
    %s143 = sphi 0, %s143
    %s145 = sphi 0, %s143
    %s146 = sphi 0, %s145
    %s160 = sphi 0, %s146
    %s164 = sphi 0, %s164
    %s166 = sphi 0, %s164
    %s167 = sphi 0, %s166
    %s181 = sphi 0, %s167
    %s185 = sphi 0, %s185
    %s187 = sphi 0, %s185
    %s188 = sphi 0, %s187
    %s202 = sphi 0, %s188
    %s206 = sphi 0, %s206
    %s208 = sphi 0, %s206
    %s209 = sphi 0, %s208
    %s223 = sphi 0, %s209
    %s227 = sphi 0, %s227
    %s229 = sphi 0, %s227
    %s230 = sphi 0, %s229
    %s244 = sphi 0, %s230
    %s248 = sphi 0, %s248
    %s250 = sphi 0, %s248
    %s251 = sphi 0, %s250
    %s265 = sphi 0, %s251
    %s269 = sphi 0, %s269
    %s271 = sphi 0, %s269
    %s272 = sphi 0, %s271
    %s286 = sphi 0, %s272
    %s290 = sphi 0, %s290
    %s292 = sphi 0, %s290
    %s293 = sphi 0, %s292
    %s307 = sphi 0, %s293
    %s311 = sphi 0, %s311
    %s313 = sphi 0, %s311
    %s314 = sphi 0, %s313
    %s328 = sphi 0, %s314
    %s334 = sphi 0, %s336
    %s337 = sphi 0, %s334
    %s338 = sphi 0, %s337
    %s354 = sphi 0, %s338
  $region4: #{mae_branch_forward.6} parent=0 // loop_header_branch
    %23 = sbr.rel (%p21) target = $region8
  $region5: #{mae_branch_forward.6} parent=0 // loop_body
    %s25 = ssub.s32 %s20, 1
    %s26 = ssub.s32 %s20, 2
    %s27 = sadd.s32 %s20, 1
    %s28 = ssub.s32 %s20, %s27
    %p29 = scmp.eq.s32.totalorder %s28, 0
    %s31 = sadd.s32 %s30, 1
    %s32 = scalar_select %p29, %s30, %s31
    %p35 = pneg %p29
    %p36 = scmp.eq.s32.totalorder %s20, 1
    %p37 = por %p35, %p36
    %p38 = scmp.ne.s32.totalorder %s30, %s33
    %p39 = scmp.eq.s32.totalorder %s20, 0
    %p40 = por %p38, %p39
    %p41 = scmp.ne.s32.totalorder %s30, %s33
    %p42 = scmp.eq.s32.totalorder %s25, 1
    %p43 = por %p41, %p42
    %p44 = scmp.ne.s32.totalorder %s33, %s34
    %p45 = scmp.eq.s32.totalorder %s25, 0
    %p46 = por %p44, %p45
    %p47 = scmp.ne.s32.totalorder %s33, %s34
    %p48 = scmp.eq.s32.totalorder %s26, 1
    %p49 = por %p47, %p48
    %p51 = scmp.ne.s32.totalorder %s34, %s50
    %p52 = scmp.eq.s32.totalorder %s26, 0
    %p53 = por %p51, %p52
    %s54 = ssub.s32 %s20, %s27
    %p55 = scmp.eq.s32.totalorder %s54, 0
    %s57 = sadd.s32 %s56, 1
    %s58 = scalar_select %p55, %s56, %s57
    %p61 = pneg %p55
    %p62 = scmp.eq.s32.totalorder %s20, 1
    %p63 = por %p61, %p62
    %p64 = scmp.ne.s32.totalorder %s56, %s59
    %p65 = scmp.eq.s32.totalorder %s20, 0
    %p66 = por %p64, %p65
    %p67 = scmp.ne.s32.totalorder %s56, %s59
    %p68 = scmp.eq.s32.totalorder %s25, 1
    %p69 = por %p67, %p68
    %p70 = scmp.ne.s32.totalorder %s59, %s60
    %p71 = scmp.eq.s32.totalorder %s25, 0
    %p72 = por %p70, %p71
    %p73 = scmp.ne.s32.totalorder %s59, %s60
    %p74 = scmp.eq.s32.totalorder %s26, 1
    %p75 = por %p73, %p74
    %p77 = scmp.ne.s32.totalorder %s60, %s76
    %p78 = scmp.eq.s32.totalorder %s26, 0
    %p79 = por %p77, %p78
    %s81 = sadd.s32 %s80, 1
    %p84 = scmp.eq.s32.totalorder %s20, 1
    %p85 = scmp.ne.s32.totalorder %s80, %s82
    %p86 = scmp.eq.s32.totalorder %s20, 0
    %p87 = por %p85, %p86
    %p88 = scmp.ne.s32.totalorder %s80, %s82
    %p89 = scmp.eq.s32.totalorder %s25, 1
    %p90 = por %p88, %p89
    %p91 = scmp.ne.s32.totalorder %s82, %s83
    %p92 = scmp.eq.s32.totalorder %s25, 0
    %p93 = por %p91, %p92
    %p94 = scmp.ne.s32.totalorder %s82, %s83
    %p95 = scmp.eq.s32.totalorder %s26, 1
    %p96 = por %p94, %p95
    %p98 = scmp.ne.s32.totalorder %s83, %s97
    %p99 = scmp.eq.s32.totalorder %s26, 0
    %p100 = por %p98, %p99
    %s102 = sadd.s32 %s101, 1
    %p105 = scmp.eq.s32.totalorder %s20, 1
    %p106 = scmp.ne.s32.totalorder %s101, %s103
    %p107 = scmp.eq.s32.totalorder %s20, 0
    %p108 = por %p106, %p107
    %p109 = scmp.ne.s32.totalorder %s101, %s103
    %p110 = scmp.eq.s32.totalorder %s25, 1
    %p111 = por %p109, %p110
    %p112 = scmp.ne.s32.totalorder %s103, %s104
    %p113 = scmp.eq.s32.totalorder %s25, 0
    %p114 = por %p112, %p113
    %p115 = scmp.ne.s32.totalorder %s103, %s104
    %p116 = scmp.eq.s32.totalorder %s26, 1
    %p117 = por %p115, %p116
    %p119 = scmp.ne.s32.totalorder %s104, %s118
    %p120 = scmp.eq.s32.totalorder %s26, 0
    %p121 = por %p119, %p120
    %s123 = sadd.s32 %s122, 1
    %p126 = scmp.eq.s32.totalorder %s20, 1
    %p127 = scmp.ne.s32.totalorder %s122, %s124
    %p128 = scmp.eq.s32.totalorder %s20, 0
    %p129 = por %p127, %p128
    %p130 = scmp.ne.s32.totalorder %s122, %s124
    %p131 = scmp.eq.s32.totalorder %s25, 1
    %p132 = por %p130, %p131
    %p133 = scmp.ne.s32.totalorder %s124, %s125
    %p134 = scmp.eq.s32.totalorder %s25, 0
    %p135 = por %p133, %p134
    %p136 = scmp.ne.s32.totalorder %s124, %s125
    %p137 = scmp.eq.s32.totalorder %s26, 1
    %p138 = por %p136, %p137
    %p140 = scmp.ne.s32.totalorder %s125, %s139
    %p141 = scmp.eq.s32.totalorder %s26, 0
    %p142 = por %p140, %p141
    %s144 = sadd.s32 %s143, 1
    %p147 = scmp.eq.s32.totalorder %s20, 1
    %p148 = scmp.ne.s32.totalorder %s143, %s145
    %p149 = scmp.eq.s32.totalorder %s20, 0
    %p150 = por %p148, %p149
    %p151 = scmp.ne.s32.totalorder %s143, %s145
    %p152 = scmp.eq.s32.totalorder %s25, 1
    %p153 = por %p151, %p152
    %p154 = scmp.ne.s32.totalorder %s145, %s146
    %p155 = scmp.eq.s32.totalorder %s25, 0
    %p156 = por %p154, %p155
    %p157 = scmp.ne.s32.totalorder %s145, %s146
    %p158 = scmp.eq.s32.totalorder %s26, 1
    %p159 = por %p157, %p158
    %p161 = scmp.ne.s32.totalorder %s146, %s160
    %p162 = scmp.eq.s32.totalorder %s26, 0
    %p163 = por %p161, %p162
    %s165 = sadd.s32 %s164, 1
    %p168 = scmp.eq.s32.totalorder %s20, 1
    %p169 = scmp.ne.s32.totalorder %s164, %s166
    %p170 = scmp.eq.s32.totalorder %s20, 0
    %p171 = por %p169, %p170
    %p172 = scmp.ne.s32.totalorder %s164, %s166
    %p173 = scmp.eq.s32.totalorder %s25, 1
    %p174 = por %p172, %p173
    %p175 = scmp.ne.s32.totalorder %s166, %s167
    %p176 = scmp.eq.s32.totalorder %s25, 0
    %p177 = por %p175, %p176
    %p178 = scmp.ne.s32.totalorder %s166, %s167
    %p179 = scmp.eq.s32.totalorder %s26, 1
    %p180 = por %p178, %p179
    %p182 = scmp.ne.s32.totalorder %s167, %s181
    %p183 = scmp.eq.s32.totalorder %s26, 0
    %p184 = por %p182, %p183
    %s186 = sadd.s32 %s185, 1
    %p189 = scmp.eq.s32.totalorder %s20, 1
    %p190 = scmp.ne.s32.totalorder %s185, %s187
    %p191 = scmp.eq.s32.totalorder %s20, 0
    %p192 = por %p190, %p191
    %p193 = scmp.ne.s32.totalorder %s185, %s187
    %p194 = scmp.eq.s32.totalorder %s25, 1
    %p195 = por %p193, %p194
    %p196 = scmp.ne.s32.totalorder %s187, %s188
    %p197 = scmp.eq.s32.totalorder %s25, 0
    %p198 = por %p196, %p197
    %p199 = scmp.ne.s32.totalorder %s187, %s188
    %p200 = scmp.eq.s32.totalorder %s26, 1
    %p201 = por %p199, %p200
    %p203 = scmp.ne.s32.totalorder %s188, %s202
    %p204 = scmp.eq.s32.totalorder %s26, 0
    %p205 = por %p203, %p204
    %s207 = sadd.s32 %s206, 1
    %p210 = scmp.eq.s32.totalorder %s20, 1
    %p211 = scmp.ne.s32.totalorder %s206, %s208
    %p212 = scmp.eq.s32.totalorder %s20, 0
    %p213 = por %p211, %p212
    %p214 = scmp.ne.s32.totalorder %s206, %s208
    %p215 = scmp.eq.s32.totalorder %s25, 1
    %p216 = por %p214, %p215
    %p217 = scmp.ne.s32.totalorder %s208, %s209
    %p218 = scmp.eq.s32.totalorder %s25, 0
    %p219 = por %p217, %p218
    %p220 = scmp.ne.s32.totalorder %s208, %s209
    %p221 = scmp.eq.s32.totalorder %s26, 1
    %p222 = por %p220, %p221
    %p224 = scmp.ne.s32.totalorder %s209, %s223
    %p225 = scmp.eq.s32.totalorder %s26, 0
    %p226 = por %p224, %p225
    %s228 = sadd.s32 %s227, 1
    %p231 = scmp.eq.s32.totalorder %s20, 1
    %p232 = scmp.ne.s32.totalorder %s227, %s229
    %p233 = scmp.eq.s32.totalorder %s20, 0
    %p234 = por %p232, %p233
    %p235 = scmp.ne.s32.totalorder %s227, %s229
    %p236 = scmp.eq.s32.totalorder %s25, 1
    %p237 = por %p235, %p236
    %p238 = scmp.ne.s32.totalorder %s229, %s230
    %p239 = scmp.eq.s32.totalorder %s25, 0
    %p240 = por %p238, %p239
    %p241 = scmp.ne.s32.totalorder %s229, %s230
    %p242 = scmp.eq.s32.totalorder %s26, 1
    %p243 = por %p241, %p242
    %p245 = scmp.ne.s32.totalorder %s230, %s244
    %p246 = scmp.eq.s32.totalorder %s26, 0
    %p247 = por %p245, %p246
    %s249 = sadd.s32 %s248, 1
    %p252 = scmp.eq.s32.totalorder %s20, 1
    %p253 = scmp.ne.s32.totalorder %s248, %s250
    %p254 = scmp.eq.s32.totalorder %s20, 0
    %p255 = por %p253, %p254
    %p256 = scmp.ne.s32.totalorder %s248, %s250
    %p257 = scmp.eq.s32.totalorder %s25, 1
    %p258 = por %p256, %p257
    %p259 = scmp.ne.s32.totalorder %s250, %s251
    %p260 = scmp.eq.s32.totalorder %s25, 0
    %p261 = por %p259, %p260
    %p262 = scmp.ne.s32.totalorder %s250, %s251
    %p263 = scmp.eq.s32.totalorder %s26, 1
    %p264 = por %p262, %p263
    %p266 = scmp.ne.s32.totalorder %s251, %s265
    %p267 = scmp.eq.s32.totalorder %s26, 0
    %p268 = por %p266, %p267
    %s270 = sadd.s32 %s269, 1
    %p273 = scmp.eq.s32.totalorder %s20, 1
    %p274 = scmp.ne.s32.totalorder %s269, %s271
    %p275 = scmp.eq.s32.totalorder %s20, 0
    %p276 = por %p274, %p275
    %p277 = scmp.ne.s32.totalorder %s269, %s271
    %p278 = scmp.eq.s32.totalorder %s25, 1
    %p279 = por %p277, %p278
    %p280 = scmp.ne.s32.totalorder %s271, %s272
    %p281 = scmp.eq.s32.totalorder %s25, 0
    %p282 = por %p280, %p281
    %p283 = scmp.ne.s32.totalorder %s271, %s272
    %p284 = scmp.eq.s32.totalorder %s26, 1
    %p285 = por %p283, %p284
    %p287 = scmp.ne.s32.totalorder %s272, %s286
    %p288 = scmp.eq.s32.totalorder %s26, 0
    %p289 = por %p287, %p288
    %s291 = sadd.s32 %s290, 1
    %p294 = scmp.eq.s32.totalorder %s20, 1
    %p295 = scmp.ne.s32.totalorder %s290, %s292
    %p296 = scmp.eq.s32.totalorder %s20, 0
    %p297 = por %p295, %p296
    %p298 = scmp.ne.s32.totalorder %s290, %s292
    %p299 = scmp.eq.s32.totalorder %s25, 1
    %p300 = por %p298, %p299
    %p301 = scmp.ne.s32.totalorder %s292, %s293
    %p302 = scmp.eq.s32.totalorder %s25, 0
    %p303 = por %p301, %p302
    %p304 = scmp.ne.s32.totalorder %s292, %s293
    %p305 = scmp.eq.s32.totalorder %s26, 1
    %p306 = por %p304, %p305
    %p308 = scmp.ne.s32.totalorder %s293, %s307
    %p309 = scmp.eq.s32.totalorder %s26, 0
    %p310 = por %p308, %p309
    %s312 = sadd.s32 %s311, 1
    %p315 = scmp.eq.s32.totalorder %s20, 1
    %p316 = scmp.ne.s32.totalorder %s311, %s313
    %p317 = scmp.eq.s32.totalorder %s20, 0
    %p318 = por %p316, %p317
    %p319 = scmp.ne.s32.totalorder %s311, %s313
    %p320 = scmp.eq.s32.totalorder %s25, 1
    %p321 = por %p319, %p320
    %p322 = scmp.ne.s32.totalorder %s313, %s314
    %p323 = scmp.eq.s32.totalorder %s25, 0
    %p324 = por %p322, %p323
    %p325 = scmp.ne.s32.totalorder %s313, %s314
    %p326 = scmp.eq.s32.totalorder %s26, 1
    %p327 = por %p325, %p326
    %p329 = scmp.ne.s32.totalorder %s314, %s328
    %p330 = scmp.eq.s32.totalorder %s26, 0
    %p331 = por %p329, %p330
    %s332 = ssub.s32 %s20, %s27
    %p333 = scmp.eq.s32.totalorder %s332, 0
    %s335 = sadd.s32 %s334, 1
    %s336 = scalar_select %p333, %s334, %s335
    %p339 = pneg %p333
    %p340 = scmp.eq.s32.totalorder %s20, 1
    %p341 = por %p339, %p340
    %p342 = scmp.ne.s32.totalorder %s334, %s337
    %p343 = scmp.eq.s32.totalorder %s20, 0
    %p344 = por %p342, %p343
    %p345 = scmp.ne.s32.totalorder %s334, %s337
    %p346 = scmp.eq.s32.totalorder %s25, 1
    %p347 = por %p345, %p346
    %p348 = scmp.ne.s32.totalorder %s337, %s338
    %p349 = scmp.eq.s32.totalorder %s25, 0
    %p350 = por %p348, %p349
    %p351 = scmp.ne.s32.totalorder %s337, %s338
    %p352 = scmp.eq.s32.totalorder %s26, 1
    %p353 = por %p351, %p352
    %p355 = scmp.ne.s32.totalorder %s338, %s354
    %p356 = scmp.eq.s32.totalorder %s26, 0
    %p357 = por %p355, %p356
    %p358 = scmp.le.s32.totalorder 1, %s20
    %p359 = scmp.lt.s32.totalorder %s20, 3
    %p360 = pnand %p358, %p359
    %p361 = pneg %p360
    // Predicated region
    $region9: #{mae_branch_forward.6} parent=5 // pred_check
      _
    $region10: #{mae_branch_forward.6} parent=5 // pred_check_branch
      %363 = sbr.rel (%p360) target = $region12
    $region11: #{mae_branch_forward.6} parent=5 // pred_region
      %s364 = ssub.s32 %s20, 1
      // Predicated region
      $region13: #{mae_branch_forward.6} parent=11 // pred_check
        %p365 = pneg %p93
      $region14: #{mae_branch_forward.6} parent=11 // pred_check_branch
        %367 = sbr.rel (%p365) target = $region16
      $region15: #{mae_branch_forward.6} parent=11 // pred_region
        _
      $region16: #{mae_branch_forward.6} parent=11 // pred_fallthru
        _
      // Predicated region
      $region17: #{mae_branch_forward.6} parent=11 // pred_check
        %p368 = pneg %p114
      $region18: #{mae_branch_forward.6} parent=11 // pred_check_branch
        %370 = sbr.rel (%p368) target = $region20
      $region19: #{mae_branch_forward.6} parent=11 // pred_region
        _
      $region20: #{mae_branch_forward.6} parent=11 // pred_fallthru
        _
      // Predicated region
      $region21: #{mae_branch_forward.6} parent=11 // pred_check
        %p371 = pneg %p135
      $region22: #{mae_branch_forward.6} parent=11 // pred_check_branch
        %373 = sbr.rel (%p371) target = $region24
      $region23: #{mae_branch_forward.6} parent=11 // pred_region
        _
      $region24: #{mae_branch_forward.6} parent=11 // pred_fallthru
        _
      // Predicated region
      $region25: #{mae_branch_forward.6} parent=11 // pred_check
        %p374 = pneg %p156
      $region26: #{mae_branch_forward.6} parent=11 // pred_check_branch
        %376 = sbr.rel (%p374) target = $region28
      $region27: #{mae_branch_forward.6} parent=11 // pred_region
        _
      $region28: #{mae_branch_forward.6} parent=11 // pred_fallthru
        _
      // Predicated region
      $region29: #{mae_branch_forward.6} parent=11 // pred_check
        %p377 = pneg %p177
      $region30: #{mae_branch_forward.6} parent=11 // pred_check_branch
        %379 = sbr.rel (%p377) target = $region32
      $region31: #{mae_branch_forward.6} parent=11 // pred_region
        _
      $region32: #{mae_branch_forward.6} parent=11 // pred_fallthru
        _
      // Predicated region
      $region33: #{mae_branch_forward.6} parent=11 // pred_check
        %p380 = pneg %p198
      $region34: #{mae_branch_forward.6} parent=11 // pred_check_branch
        %382 = sbr.rel (%p380) target = $region36
      $region35: #{mae_branch_forward.6} parent=11 // pred_region
        _
      $region36: #{mae_branch_forward.6} parent=11 // pred_fallthru
        _
      // Predicated region
      $region37: #{mae_branch_forward.6} parent=11 // pred_check
        %p383 = pneg %p219
      $region38: #{mae_branch_forward.6} parent=11 // pred_check_branch
        %385 = sbr.rel (%p383) target = $region40
      $region39: #{mae_branch_forward.6} parent=11 // pred_region
        _
      $region40: #{mae_branch_forward.6} parent=11 // pred_fallthru
        _
      // Predicated region
      $region41: #{mae_branch_forward.6} parent=11 // pred_check
        %p386 = pneg %p240
      $region42: #{mae_branch_forward.6} parent=11 // pred_check_branch
        %388 = sbr.rel (%p386) target = $region44
      $region43: #{mae_branch_forward.6} parent=11 // pred_region
        _
      $region44: #{mae_branch_forward.6} parent=11 // pred_fallthru
        _
      // Predicated region
      $region45: #{mae_branch_forward.6} parent=11 // pred_check
        %p389 = pneg %p261
      $region46: #{mae_branch_forward.6} parent=11 // pred_check_branch
        %391 = sbr.rel (%p389) target = $region48
      $region47: #{mae_branch_forward.6} parent=11 // pred_region
        _
      $region48: #{mae_branch_forward.6} parent=11 // pred_fallthru
        _
      // Predicated region
      $region49: #{mae_branch_forward.6} parent=11 // pred_check
        %p392 = pneg %p282
      $region50: #{mae_branch_forward.6} parent=11 // pred_check_branch
        %394 = sbr.rel (%p392) target = $region52
      $region51: #{mae_branch_forward.6} parent=11 // pred_region
        _
      $region52: #{mae_branch_forward.6} parent=11 // pred_fallthru
        _
      // Predicated region
      $region53: #{mae_branch_forward.6} parent=11 // pred_check
        %p395 = pneg %p303
      $region54: #{mae_branch_forward.6} parent=11 // pred_check_branch
        %397 = sbr.rel (%p395) target = $region56
      $region55: #{mae_branch_forward.6} parent=11 // pred_region
        _
      $region56: #{mae_branch_forward.6} parent=11 // pred_fallthru
        _
      // Predicated region
      $region57: #{mae_branch_forward.6} parent=11 // pred_check
        %p398 = pneg %p324
      $region58: #{mae_branch_forward.6} parent=11 // pred_check_branch
        %400 = sbr.rel (%p398) target = $region60
      $region59: #{mae_branch_forward.6} parent=11 // pred_region
        _
      $region60: #{mae_branch_forward.6} parent=11 // pred_fallthru
        _
    $region12: #{mae_branch_forward.6} parent=5 // pred_fallthru
      _
    %p401 = scmp.lt.s32.totalorder %s20, 2
    // Predicated region
    $region61: #{mae_branch_forward.6} parent=5 // pred_check
      %p402 = pneg %p401
    $region62: #{mae_branch_forward.6} parent=5 // pred_check_branch
      %404 = sbr.rel (%p402) target = $region64
    $region63: #{mae_branch_forward.6} parent=5 // pred_region
      // Predicated region
      $region65: #{mae_branch_forward.6} parent=63 // pred_check
        %p405 = pneg %p40
      $region66: #{mae_branch_forward.6} parent=63 // pred_check_branch
        %407 = sbr.rel (%p405) target = $region68
      $region67: #{mae_branch_forward.6} parent=63 // pred_region
        %p408 = scmp.lt.s32.totalorder %s20, 1
        %s409 = scalar_select %p408, %s20, 1
        %s410 = smul.addr %s409, 8
        %s411 = scalar_lea.vmem %s0, %s410
      $region68: #{mae_branch_forward.6} parent=63 // pred_fallthru
        _
      // Predicated region
      $region69: #{mae_branch_forward.6} parent=63 // pred_check
        %p412 = pneg %p66
      $region70: #{mae_branch_forward.6} parent=63 // pred_check_branch
        %414 = sbr.rel (%p412) target = $region72
      $region71: #{mae_branch_forward.6} parent=63 // pred_region
        %p415 = scmp.lt.s32.totalorder %s20, 1
        %s416 = scalar_select %p415, %s20, 1
        %s417 = smul.addr %s416, 8
        %s418 = scalar_lea.vmem %s1, %s417
      $region72: #{mae_branch_forward.6} parent=63 // pred_fallthru
        _
    $region64: #{mae_branch_forward.6} parent=5 // pred_fallthru
      _
    %p419 = scmp.le.s32.totalorder 1, %s20
    %p420 = scmp.lt.s32.totalorder %s20, 3
    %p421 = pnand %p419, %p420
    %p422 = pneg %p421
    // Predicated region
    $region73: #{mae_branch_forward.6} parent=5 // pred_check
      _
    $region74: #{mae_branch_forward.6} parent=5 // pred_check_branch
      %424 = sbr.rel (%p421) target = $region76
    $region75: #{mae_branch_forward.6} parent=5 // pred_region
      %s425 = ssub.s32 %s20, 1
      %p426 = scmp.lt.s32.totalorder %s25, 1
      %s427 = scalar_select %p426, %s25, 1
      %s428 = smul.addr %s427, 8
      %s429 = scalar_lea.vmem %s0, %s428
      %p430 = pneg %p46
      %p431 = pneg %p43
      %p432 = scmp.lt.s32.totalorder %s25, 1
      %s433 = scalar_select %p432, %s25, 1
      %s434 = smul.addr %s433, 8
      %s435 = scalar_lea.vmem %s1, %s434
      %p436 = pneg %p72
      %p437 = pneg %p69
      %p438 = pneg %p93
      %p439 = pneg %p90
      %p440 = pneg %p114
      %p441 = pneg %p111
      %p442 = pneg %p135
      %p443 = pneg %p132
      %p444 = pneg %p156
      %p445 = pneg %p153
      %p446 = pneg %p177
      %p447 = pneg %p174
      %p448 = pneg %p198
      %p449 = pneg %p195
      %p450 = pneg %p219
      %p451 = pneg %p216
      %p452 = pneg %p240
      %p453 = pneg %p237
      %p454 = pneg %p261
      %p455 = pneg %p258
      %p456 = pneg %p282
      %p457 = pneg %p279
      %p458 = pneg %p303
      %p459 = pneg %p300
      %p460 = pneg %p324
      %p461 = pneg %p321
      %p462 = pneg %p350
      %p463 = pneg %p347
      %p464 = scmp.lt.s32.totalorder %s25, 1
      %s465 = scalar_select %p464, %s25, 1
      %s466 = smul.addr %s465, 8
      %s467 = scalar_lea.vmem %s14, %s466
      %p468 = scmp.lt.s32.totalorder %s25, 1
      %s469 = scalar_select %p468, %s25, 1
      %s470 = smul.addr %s469, 8
      %s471 = scalar_lea.vmem %s0, %s470
      %p472 = scmp.lt.s32.totalorder %s25, 1
      %s473 = scalar_select %p472, %s25, 1
      %s474 = smul.addr %s473, 8
      %s475 = scalar_lea.vmem %s1, %s474
      %p476 = scmp.lt.s32.totalorder %s25, 1
      %s477 = scalar_select %p476, %s25, 1
      %s478 = smul.addr %s477, 8
      %s479 = scalar_lea.vmem %s14, %s478
      %v480 = vld [vmem:[%s471] sm:$0xff]
      %v481 = vld [vmem:[%s475] sm:$0xff]
      %v482 = vadd.f32 %v480, %v481
      %vm483 = vcmask 261120
      %v484 = vsel %vm483, %v482, 0.0
      %485 = vadd.xlane.f32.xlu0 %v484
      %v486 = vpop.xlane.xlu0 %485
      %v487 = vrcp.pop 32.0
      %v488 = vmul.f32 %v486, %v487
      %v489 = vsub.f32 %v482, %v488
      %v490 = vmul.f32 %v489, %v489
      %v491 = vsel %vm483, %v490, 0.0
      %492 = vadd.xlane.f32.xlu0 %v491
      %v493 = vpop.xlane.xlu0 %492
      %v494 = vmul.f32 %v493, %v487
      %v495 = vadd.f32 %v494, 1e-05
      %v496 = vrsqrt.pop %v495
      %v497 = vmul.f32 %v489, %v496
      %v498 = vld [vmem:[%s2] sm:$0x1]
      %v500 = vlaneseq
      %v501 = vshrl.u32 %v500, 7
      %v502 = vsub.s32 0, %v501
      %v503 = vrot.slane %v498, %v502
      %v505 = vmul.f32 %v497, %v503
      %v506 = vld [vmem:[%s3] sm:$0x1]
      %v508 = vlaneseq
      %v509 = vshrl.u32 %v508, 7
      %v510 = vsub.s32 0, %v509
      %v511 = vrot.slane %v506, %v510
      %v513 = vadd.f32 %v505, %v511
      %v514 = vld [vmem:[%s4] sm:$0xff]
      %v515 = vld [vmem:[%s4 + $0x8] sm:$0xff]
      %v516 = vld [vmem:[%s4 + $0x10] sm:$0xff]
      %v517 = vld [vmem:[%s4 + $0x18] sm:$0xff]
      %v518 = vld [vmem:[%s5] sm:$0x1]
      %v520 = vlaneseq
      %v521 = vshrl.u32 %v520, 7
      %v522 = vsub.s32 0, %v521
      %v523 = vrot.slane %v518, %v522
      %v526 = vsel %vm483, %v513, 0
      %528 = vmatprep.subr.mxu0 0.0
      %529 = vmatpush1.msra.mxu0 0.0
      %530 = vmatprep.subr.mxu0 0.0
      %531 = vmatpush1.msra.mxu0 0.0
      %532 = vmatprep.subr.mxu0 0.0
      %533 = vmatpush1.msra.mxu0 0.0
      %534 = vmatprep.subr.mxu0 0.0
      %535 = vmatpush1.msra.mxu0 0.0
      %536 = vmatprep.subr.mxu0 0.0
      %537 = vmatpush1.msra.mxu0 0.0
      %538 = vmatprep.subr.mxu0 0.0
      %539 = vmatpush1.msra.mxu0 0.0
      %540 = vmatprep.subr.mxu0 0.0
      %541 = vmatpush1.msra.mxu0 0.0
      %542 = vmatprep.subr.mxu0 0.0
      %543 = vmatpush1.msra.mxu0 0.0
      %544 = vmatprep.subr.mxu0 0.0
      %545 = vmatpush1.msra.mxu0 0.0
      %546 = vmatprep.subr.mxu0 0.0
      %547 = vmatpush1.msra.mxu0 0.0
      %548 = vmatprep.subr.mxu0 0.0
      %549 = vmatpush1.msra.mxu0 0.0
      %550 = vmatprep.subr.mxu0 0.0
      %551 = vmatpush1.msra.mxu0 0.0
      %552 = vmatprep.subr.mxu0 0.0
      %553 = vmatpush1.msra.mxu0 %v517
      %554 = vmatprep.subr.mxu0 0.0
      %555 = vmatpush1.msra.mxu0 %v516
      %556 = vmatprep.subr.mxu0 0.0
      %557 = vmatpush1.msra.mxu0 %v515
      %558 = vmatprep.subr.mxu0 0.0
      %559 = vmatpush1.msra.mxu0 %v514
      %560 = vmatprep.subr.mxu0 0.0
      %561 = vmatpush2.msra.mxu0 0.0
      %562 = vmatprep.subr.mxu0 0.0
      %563 = vmatpush2.msra.mxu0 0.0
      %564 = vmatprep.subr.mxu0 0.0
      %565 = vmatpush2.msra.mxu0 0.0
      %566 = vmatprep.subr.mxu0 0.0
      %567 = vmatpush2.msra.mxu0 0.0
      %568 = vmatprep.subr.mxu0 0.0
      %569 = vmatpush2.msra.mxu0 0.0
      %570 = vmatprep.subr.mxu0 0.0
      %571 = vmatpush2.msra.mxu0 0.0
      %572 = vmatprep.subr.mxu0 0.0
      %573 = vmatpush2.msra.mxu0 0.0
      %574 = vmatprep.subr.mxu0 0.0
      %575 = vmatpush2.msra.mxu0 0.0
      %576 = vmatprep.subr.mxu0 0.0
      %577 = vmatpush2.msra.mxu0 0.0
      %578 = vmatprep.subr.mxu0 0.0
      %579 = vmatpush2.msra.mxu0 0.0
      %580 = vmatprep.subr.mxu0 0.0
      %581 = vmatpush2.msra.mxu0 0.0
      %582 = vmatprep.subr.mxu0 0.0
      %583 = vmatpush2.msra.mxu0 0.0
      %584 = vmatprep.subr.mxu0 0.0
      %585 = vmatpush2.msra.mxu0 0.0
      %586 = vmatprep.subr.mxu0 0.0
      %587 = vmatpush2.msra.mxu0 0.0
      %588 = vmatprep.subr.mxu0 0.0
      %589 = vmatpush2.msra.mxu0 0.0
      %590 = vmatprep.subr.mxu0 0.0
      %591 = vmatpush2.msra.mxu0 0.0
      %592 = vmatprep.mubr.f32.mxu0 0.0
      %593 = vmatmul.mubr.f32.gmra.mxu0 %v526
      %v594 = vpop.f32.mrf.mxu0
      %v595 = vadd.f32 %v523, %v594
      %v596 = vpop.f32.mrf.mxu0
      %597 = vdwg.mxu0
      %v598 = vmul.f32 %v595, 0.35355338
      %600 = vrot.lane.b32.xlu0 %v595, 96
      %v601 = vpop.permute.xlu0 %600
      %vm602 = vcmask 64512
      %v604 = vsel %vm602, %v598, 0
      %v606 = vsel %vm602, %v601, 0
      %608 = vmatprep.subr.mxu0 0.0
      %609 = vmatpush1.xpose.msra.mxu0 0.0
      %610 = vmatprep.subr.mxu0 0.0
      %611 = vmatpush1.xpose.msra.mxu0 0.0
      %612 = vmatprep.subr.mxu0 0.0
      %613 = vmatpush1.xpose.msra.mxu0 0.0
      %614 = vmatprep.subr.mxu0 0.0
      %615 = vmatpush1.xpose.msra.mxu0 0.0
      %616 = vmatprep.subr.mxu0 0.0
      %617 = vmatpush1.xpose.msra.mxu0 0.0
      %618 = vmatprep.subr.mxu0 0.0
      %619 = vmatpush1.xpose.msra.mxu0 0.0
      %620 = vmatprep.subr.mxu0 0.0
      %621 = vmatpush1.xpose.msra.mxu0 0.0
      %622 = vmatprep.subr.mxu0 0.0
      %623 = vmatpush1.xpose.msra.mxu0 0.0
      %624 = vmatprep.subr.mxu0 0.0
      %625 = vmatpush1.xpose.msra.mxu0 0.0
      %626 = vmatprep.subr.mxu0 0.0
      %627 = vmatpush1.xpose.msra.mxu0 0.0
      %628 = vmatprep.subr.mxu0 0.0
      %629 = vmatpush1.xpose.msra.mxu0 0.0
      %630 = vmatprep.subr.mxu0 0.0
      %631 = vmatpush1.xpose.msra.mxu0 0.0
      %632 = vmatprep.subr.mxu0 0.0
      %633 = vmatpush1.xpose.msra.mxu0 0.0
      %634 = vmatprep.subr.mxu0 0.0
      %635 = vmatpush1.xpose.msra.mxu0 0.0
      %636 = vmatprep.subr.mxu0 0.0
      %637 = vmatpush1.xpose.msra.mxu0 0.0
      %638 = vmatprep.subr.mxu0 0.0
      %639 = vmatpush1.xpose.msra.mxu0 %v606
      %640 = vmatprep.subr.mxu0 0.0
      %641 = vmatpush2.xpose.msra.mxu0 0.0
      %642 = vmatprep.subr.mxu0 0.0
      %643 = vmatpush2.xpose.msra.mxu0 0.0
      %644 = vmatprep.subr.mxu0 0.0
      %645 = vmatpush2.xpose.msra.mxu0 0.0
      %646 = vmatprep.subr.mxu0 0.0
      %647 = vmatpush2.xpose.msra.mxu0 0.0
      %648 = vmatprep.subr.mxu0 0.0
      %649 = vmatpush2.xpose.msra.mxu0 0.0
      %650 = vmatprep.subr.mxu0 0.0
      %651 = vmatpush2.xpose.msra.mxu0 0.0
      %652 = vmatprep.subr.mxu0 0.0
      %653 = vmatpush2.xpose.msra.mxu0 0.0
      %654 = vmatprep.subr.mxu0 0.0
      %655 = vmatpush2.xpose.msra.mxu0 0.0
      %656 = vmatprep.subr.mxu0 0.0
      %657 = vmatpush2.xpose.msra.mxu0 0.0
      %658 = vmatprep.subr.mxu0 0.0
      %659 = vmatpush2.xpose.msra.mxu0 0.0
      %660 = vmatprep.subr.mxu0 0.0
      %661 = vmatpush2.xpose.msra.mxu0 0.0
      %662 = vmatprep.subr.mxu0 0.0
      %663 = vmatpush2.xpose.msra.mxu0 0.0
      %664 = vmatprep.subr.mxu0 0.0
      %665 = vmatpush2.xpose.msra.mxu0 0.0
      %666 = vmatprep.subr.mxu0 0.0
      %667 = vmatpush2.xpose.msra.mxu0 0.0
      %668 = vmatprep.subr.mxu0 0.0
      %669 = vmatpush2.xpose.msra.mxu0 0.0
      %670 = vmatprep.subr.mxu0 0.0
      %671 = vmatpush2.xpose.msra.mxu0 0.0
      %672 = vmatprep.mubr.f32.mxu0 0.0
      %673 = vmatmul.mubr.f32.gmra.mxu0 %v604
      %v674 = vpop.f32.mrf.mxu0
      %v675 = vadd.f32 0.0, %v674
      %v676 = vpop.f32.mrf.mxu0
      %677 = vdwg.mxu0
      %v678 = vsel %vm602, %v675, -inf
      %679 = vmax.xlane.f32.xlu0 %v678
      %v680 = vpop.xlane.xlu0 %679
      %v681 = vsub.f32 %v675, %v680
      %v682 = vmul.f32 %v681, 1.442695
      %v683 = vpow.pop %v682
      %v684 = vsel %vm602, %v683, 0.0
      %685 = vadd.xlane.f32.xlu0 %v684
      %v686 = vpop.xlane.xlu0 %685
      %v687 = vrcp.pop %v686
      %v688 = vmul.f32 %v683, %v687
      %689 = vrot.lane.b32.xlu0 %v595, 64
      %v690 = vpop.permute.xlu0 %689
      %v693 = vsel %vm602, %v688, 0
      %695 = vmatprep.subr.mxu0 0.0
      %696 = vmatpush1.msra.mxu0 0.0
      %697 = vmatprep.subr.mxu0 0.0
      %698 = vmatpush1.msra.mxu0 0.0
      %699 = vmatprep.subr.mxu0 0.0
      %700 = vmatpush1.msra.mxu0 0.0
      %701 = vmatprep.subr.mxu0 0.0
      %702 = vmatpush1.msra.mxu0 0.0
      %703 = vmatprep.subr.mxu0 0.0
      %704 = vmatpush1.msra.mxu0 0.0
      %705 = vmatprep.subr.mxu0 0.0
      %706 = vmatpush1.msra.mxu0 0.0
      %707 = vmatprep.subr.mxu0 0.0
      %708 = vmatpush1.msra.mxu0 0.0
      %709 = vmatprep.subr.mxu0 0.0
      %710 = vmatpush1.msra.mxu0 0.0
      %711 = vmatprep.subr.mxu0 0.0
      %712 = vmatpush1.msra.mxu0 0.0
      %713 = vmatprep.subr.mxu0 0.0
      %714 = vmatpush1.msra.mxu0 0.0
      %715 = vmatprep.subr.mxu0 0.0
      %716 = vmatpush1.msra.mxu0 0.0
      %717 = vmatprep.subr.mxu0 0.0
      %718 = vmatpush1.msra.mxu0 0.0
      %719 = vmatprep.subr.mxu0 0.0
      %720 = vmatpush1.msra.mxu0 0.0
      %721 = vmatprep.subr.mxu0 0.0
      %722 = vmatpush1.msra.mxu0 0.0
      %723 = vmatprep.subr.mxu0 0.0
      %724 = vmatpush1.msra.mxu0 0.0
      %725 = vmatprep.subr.mxu0 0.0
      %726 = vmatpush1.msra.mxu0 %v690
      %727 = vmatprep.subr.mxu0 0.0
      %728 = vmatpush2.msra.mxu0 0.0
      %729 = vmatprep.subr.mxu0 0.0
      %730 = vmatpush2.msra.mxu0 0.0
      %731 = vmatprep.subr.mxu0 0.0
      %732 = vmatpush2.msra.mxu0 0.0
      %733 = vmatprep.subr.mxu0 0.0
      %734 = vmatpush2.msra.mxu0 0.0
      %735 = vmatprep.subr.mxu0 0.0
      %736 = vmatpush2.msra.mxu0 0.0
      %737 = vmatprep.subr.mxu0 0.0
      %738 = vmatpush2.msra.mxu0 0.0
      %739 = vmatprep.subr.mxu0 0.0
      %740 = vmatpush2.msra.mxu0 0.0
      %741 = vmatprep.subr.mxu0 0.0
      %742 = vmatpush2.msra.mxu0 0.0
      %743 = vmatprep.subr.mxu0 0.0
      %744 = vmatpush2.msra.mxu0 0.0
      %745 = vmatprep.subr.mxu0 0.0
      %746 = vmatpush2.msra.mxu0 0.0
      %747 = vmatprep.subr.mxu0 0.0
      %748 = vmatpush2.msra.mxu0 0.0
      %749 = vmatprep.subr.mxu0 0.0
      %750 = vmatpush2.msra.mxu0 0.0
      %751 = vmatprep.subr.mxu0 0.0
      %752 = vmatpush2.msra.mxu0 0.0
      %753 = vmatprep.subr.mxu0 0.0
      %754 = vmatpush2.msra.mxu0 0.0
      %755 = vmatprep.subr.mxu0 0.0
      %756 = vmatpush2.msra.mxu0 0.0
      %757 = vmatprep.subr.mxu0 0.0
      %758 = vmatpush2.msra.mxu0 0.0
      %759 = vmatprep.mubr.f32.mxu0 0.0
      %760 = vmatmul.mubr.f32.gmra.mxu0 %v693
      %v761 = vpop.f32.mrf.mxu0
      %v762 = vadd.f32 0.0, %v761
      %v763 = vpop.f32.mrf.mxu0
      %764 = vdwg.mxu0
      %v765 = vld [vmem:[%s6] sm:$0xff]
      %766 = vrot.lane.b32.xlu0 %v598, 120
      %v767 = vpop.permute.xlu0 %766
      %768 = vrot.lane.b32.xlu0 %v595, 88
      %v769 = vpop.permute.xlu0 %768
      %v770 = vsel %vm602, %v767, 0
      %v772 = vsel %vm602, %v769, 0
      %774 = vmatprep.subr.mxu0 0.0
      %775 = vmatpush1.xpose.msra.mxu0 0.0
      %776 = vmatprep.subr.mxu0 0.0
      %777 = vmatpush1.xpose.msra.mxu0 0.0
      %778 = vmatprep.subr.mxu0 0.0
      %779 = vmatpush1.xpose.msra.mxu0 0.0
      %780 = vmatprep.subr.mxu0 0.0
      %781 = vmatpush1.xpose.msra.mxu0 0.0
      %782 = vmatprep.subr.mxu0 0.0
      %783 = vmatpush1.xpose.msra.mxu0 0.0
      %784 = vmatprep.subr.mxu0 0.0
      %785 = vmatpush1.xpose.msra.mxu0 0.0
      %786 = vmatprep.subr.mxu0 0.0
      %787 = vmatpush1.xpose.msra.mxu0 0.0
      %788 = vmatprep.subr.mxu0 0.0
      %789 = vmatpush1.xpose.msra.mxu0 0.0
      %790 = vmatprep.subr.mxu0 0.0
      %791 = vmatpush1.xpose.msra.mxu0 0.0
      %792 = vmatprep.subr.mxu0 0.0
      %793 = vmatpush1.xpose.msra.mxu0 0.0
      %794 = vmatprep.subr.mxu0 0.0
      %795 = vmatpush1.xpose.msra.mxu0 0.0
      %796 = vmatprep.subr.mxu0 0.0
      %797 = vmatpush1.xpose.msra.mxu0 0.0
      %798 = vmatprep.subr.mxu0 0.0
      %799 = vmatpush1.xpose.msra.mxu0 0.0
      %800 = vmatprep.subr.mxu0 0.0
      %801 = vmatpush1.xpose.msra.mxu0 0.0
      %802 = vmatprep.subr.mxu0 0.0
      %803 = vmatpush1.xpose.msra.mxu0 0.0
      %804 = vmatprep.subr.mxu0 0.0
      %805 = vmatpush1.xpose.msra.mxu0 %v772
      %806 = vmatprep.subr.mxu0 0.0
      %807 = vmatpush2.xpose.msra.mxu0 0.0
      %808 = vmatprep.subr.mxu0 0.0
      %809 = vmatpush2.xpose.msra.mxu0 0.0
      %810 = vmatprep.subr.mxu0 0.0
      %811 = vmatpush2.xpose.msra.mxu0 0.0
      %812 = vmatprep.subr.mxu0 0.0
      %813 = vmatpush2.xpose.msra.mxu0 0.0
      %814 = vmatprep.subr.mxu0 0.0
      %815 = vmatpush2.xpose.msra.mxu0 0.0
      %816 = vmatprep.subr.mxu0 0.0
      %817 = vmatpush2.xpose.msra.mxu0 0.0
      %818 = vmatprep.subr.mxu0 0.0
      %819 = vmatpush2.xpose.msra.mxu0 0.0
      %820 = vmatprep.subr.mxu0 0.0
      %821 = vmatpush2.xpose.msra.mxu0 0.0
      %822 = vmatprep.subr.mxu0 0.0
      %823 = vmatpush2.xpose.msra.mxu0 0.0
      %824 = vmatprep.subr.mxu0 0.0
      %825 = vmatpush2.xpose.msra.mxu0 0.0
      %826 = vmatprep.subr.mxu0 0.0
      %827 = vmatpush2.xpose.msra.mxu0 0.0
      %828 = vmatprep.subr.mxu0 0.0
      %829 = vmatpush2.xpose.msra.mxu0 0.0
      %830 = vmatprep.subr.mxu0 0.0
      %831 = vmatpush2.xpose.msra.mxu0 0.0
      %832 = vmatprep.subr.mxu0 0.0
      %833 = vmatpush2.xpose.msra.mxu0 0.0
      %834 = vmatprep.subr.mxu0 0.0
      %835 = vmatpush2.xpose.msra.mxu0 0.0
      %836 = vmatprep.subr.mxu0 0.0
      %837 = vmatpush2.xpose.msra.mxu0 0.0
      %838 = vmatprep.mubr.f32.mxu0 0.0
      %839 = vmatmul.mubr.f32.gmra.mxu0 %v770
      %v840 = vpop.f32.mrf.mxu0
      %v841 = vadd.f32 0.0, %v840
      %v842 = vpop.f32.mrf.mxu0
      %843 = vdwg.mxu0
      %v844 = vsel %vm602, %v841, -inf
      %845 = vmax.xlane.f32.xlu0 %v844
      %v846 = vpop.xlane.xlu0 %845
      %v847 = vsub.f32 %v841, %v846
      %v848 = vmul.f32 %v847, 1.442695
      %v849 = vpow.pop %v848
      %v850 = vsel %vm602, %v849, 0.0
      %851 = vadd.xlane.f32.xlu0 %v850
      %v852 = vpop.xlane.xlu0 %851
      %v853 = vrcp.pop %v852
      %v854 = vmul.f32 %v849, %v853
      %855 = vrot.lane.b32.xlu0 %v595, 56
      %v856 = vpop.permute.xlu0 %855
      %v859 = vsel %vm602, %v854, 0
      %861 = vmatprep.subr.mxu0 0.0
      %862 = vmatpush1.msra.mxu0 0.0
      %863 = vmatprep.subr.mxu0 0.0
      %864 = vmatpush1.msra.mxu0 0.0
      %865 = vmatprep.subr.mxu0 0.0
      %866 = vmatpush1.msra.mxu0 0.0
      %867 = vmatprep.subr.mxu0 0.0
      %868 = vmatpush1.msra.mxu0 0.0
      %869 = vmatprep.subr.mxu0 0.0
      %870 = vmatpush1.msra.mxu0 0.0
      %871 = vmatprep.subr.mxu0 0.0
      %872 = vmatpush1.msra.mxu0 0.0
      %873 = vmatprep.subr.mxu0 0.0
      %874 = vmatpush1.msra.mxu0 0.0
      %875 = vmatprep.subr.mxu0 0.0
      %876 = vmatpush1.msra.mxu0 0.0
      %877 = vmatprep.subr.mxu0 0.0
      %878 = vmatpush1.msra.mxu0 0.0
      %879 = vmatprep.subr.mxu0 0.0
      %880 = vmatpush1.msra.mxu0 0.0
      %881 = vmatprep.subr.mxu0 0.0
      %882 = vmatpush1.msra.mxu0 0.0
      %883 = vmatprep.subr.mxu0 0.0
      %884 = vmatpush1.msra.mxu0 0.0
      %885 = vmatprep.subr.mxu0 0.0
      %886 = vmatpush1.msra.mxu0 0.0
      %887 = vmatprep.subr.mxu0 0.0
      %888 = vmatpush1.msra.mxu0 0.0
      %889 = vmatprep.subr.mxu0 0.0
      %890 = vmatpush1.msra.mxu0 0.0
      %891 = vmatprep.subr.mxu0 0.0
      %892 = vmatpush1.msra.mxu0 %v856
      %893 = vmatprep.subr.mxu0 0.0
      %894 = vmatpush2.msra.mxu0 0.0
      %895 = vmatprep.subr.mxu0 0.0
      %896 = vmatpush2.msra.mxu0 0.0
      %897 = vmatprep.subr.mxu0 0.0
      %898 = vmatpush2.msra.mxu0 0.0
      %899 = vmatprep.subr.mxu0 0.0
      %900 = vmatpush2.msra.mxu0 0.0
      %901 = vmatprep.subr.mxu0 0.0
      %902 = vmatpush2.msra.mxu0 0.0
      %903 = vmatprep.subr.mxu0 0.0
      %904 = vmatpush2.msra.mxu0 0.0
      %905 = vmatprep.subr.mxu0 0.0
      %906 = vmatpush2.msra.mxu0 0.0
      %907 = vmatprep.subr.mxu0 0.0
      %908 = vmatpush2.msra.mxu0 0.0
      %909 = vmatprep.subr.mxu0 0.0
      %910 = vmatpush2.msra.mxu0 0.0
      %911 = vmatprep.subr.mxu0 0.0
      %912 = vmatpush2.msra.mxu0 0.0
      %913 = vmatprep.subr.mxu0 0.0
      %914 = vmatpush2.msra.mxu0 0.0
      %915 = vmatprep.subr.mxu0 0.0
      %916 = vmatpush2.msra.mxu0 0.0
      %917 = vmatprep.subr.mxu0 0.0
      %918 = vmatpush2.msra.mxu0 0.0
      %919 = vmatprep.subr.mxu0 0.0
      %920 = vmatpush2.msra.mxu0 0.0
      %921 = vmatprep.subr.mxu0 0.0
      %922 = vmatpush2.msra.mxu0 0.0
      %923 = vmatprep.subr.mxu0 0.0
      %924 = vmatpush2.msra.mxu0 0.0
      %925 = vmatprep.mubr.f32.mxu0 0.0
      %926 = vmatmul.mubr.f32.gmra.mxu0 %v859
      %v927 = vpop.f32.mrf.mxu0
      %v928 = vadd.f32 0.0, %v927
      %v929 = vpop.f32.mrf.mxu0
      %930 = vdwg.mxu0
      %v931 = vld [vmem:[%s6 + $0x8] sm:$0xff]
      %v933 = vsel %vm602, %v928, 0
      %935 = vmatprep.subr.mxu0 0.0
      %936 = vmatpush1.msra.mxu0 0.0
      %937 = vmatprep.subr.mxu0 0.0
      %938 = vmatpush1.msra.mxu0 0.0
      %939 = vmatprep.subr.mxu0 0.0
      %940 = vmatpush1.msra.mxu0 0.0
      %941 = vmatprep.subr.mxu0 0.0
      %942 = vmatpush1.msra.mxu0 0.0
      %943 = vmatprep.subr.mxu0 0.0
      %944 = vmatpush1.msra.mxu0 0.0
      %945 = vmatprep.subr.mxu0 0.0
      %946 = vmatpush1.msra.mxu0 0.0
      %947 = vmatprep.subr.mxu0 0.0
      %948 = vmatpush1.msra.mxu0 0.0
      %949 = vmatprep.subr.mxu0 0.0
      %950 = vmatpush1.msra.mxu0 0.0
      %951 = vmatprep.subr.mxu0 0.0
      %952 = vmatpush1.msra.mxu0 0.0
      %953 = vmatprep.subr.mxu0 0.0
      %954 = vmatpush1.msra.mxu0 0.0
      %955 = vmatprep.subr.mxu0 0.0
      %956 = vmatpush1.msra.mxu0 0.0
      %957 = vmatprep.subr.mxu0 0.0
      %958 = vmatpush1.msra.mxu0 0.0
      %959 = vmatprep.subr.mxu0 0.0
      %960 = vmatpush1.msra.mxu0 0.0
      %961 = vmatprep.subr.mxu0 0.0
      %962 = vmatpush1.msra.mxu0 0.0
      %963 = vmatprep.subr.mxu0 0.0
      %964 = vmatpush1.msra.mxu0 0.0
      %965 = vmatprep.subr.mxu0 0.0
      %966 = vmatpush1.msra.mxu0 %v931
      %967 = vmatprep.subr.mxu0 0.0
      %968 = vmatpush2.msra.mxu0 0.0
      %969 = vmatprep.subr.mxu0 0.0
      %970 = vmatpush2.msra.mxu0 0.0
      %971 = vmatprep.subr.mxu0 0.0
      %972 = vmatpush2.msra.mxu0 0.0
      %973 = vmatprep.subr.mxu0 0.0
      %974 = vmatpush2.msra.mxu0 0.0
      %975 = vmatprep.subr.mxu0 0.0
      %976 = vmatpush2.msra.mxu0 0.0
      %977 = vmatprep.subr.mxu0 0.0
      %978 = vmatpush2.msra.mxu0 0.0
      %979 = vmatprep.subr.mxu0 0.0
      %980 = vmatpush2.msra.mxu0 0.0
      %981 = vmatprep.subr.mxu0 0.0
      %982 = vmatpush2.msra.mxu0 0.0
      %983 = vmatprep.subr.mxu0 0.0
      %984 = vmatpush2.msra.mxu0 0.0
      %985 = vmatprep.subr.mxu0 0.0
      %986 = vmatpush2.msra.mxu0 0.0
      %987 = vmatprep.subr.mxu0 0.0
      %988 = vmatpush2.msra.mxu0 0.0
      %989 = vmatprep.subr.mxu0 0.0
      %990 = vmatpush2.msra.mxu0 0.0
      %991 = vmatprep.subr.mxu0 0.0
      %992 = vmatpush2.msra.mxu0 0.0
      %993 = vmatprep.subr.mxu0 0.0
      %994 = vmatpush2.msra.mxu0 0.0
      %995 = vmatprep.subr.mxu0 0.0
      %996 = vmatpush2.msra.mxu0 0.0
      %997 = vmatprep.subr.mxu0 0.0
      %998 = vmatpush2.msra.mxu0 0.0
      %999 = vmatprep.mubr.f32.mxu0 0.0
      %1000 = vmatmul.mubr.f32.gmra.mxu0 %v933
      %v1001 = vpop.f32.mrf.mxu0
      %v1002 = vadd.f32 0.0, %v1001
      %v1003 = vpop.f32.mrf.mxu0
      %1004 = vdwg.mxu0
      %v1006 = vsel %vm602, %v762, 0
      %1008 = vmatprep.subr.mxu0 0.0
      %1009 = vmatpush1.msra.mxu0 0.0
      %1010 = vmatprep.subr.mxu0 0.0
      %1011 = vmatpush1.msra.mxu0 0.0
      %1012 = vmatprep.subr.mxu0 0.0
      %1013 = vmatpush1.msra.mxu0 0.0
      %1014 = vmatprep.subr.mxu0 0.0
      %1015 = vmatpush1.msra.mxu0 0.0
      %1016 = vmatprep.subr.mxu0 0.0
      %1017 = vmatpush1.msra.mxu0 0.0
      %1018 = vmatprep.subr.mxu0 0.0
      %1019 = vmatpush1.msra.mxu0 0.0
      %1020 = vmatprep.subr.mxu0 0.0
      %1021 = vmatpush1.msra.mxu0 0.0
      %1022 = vmatprep.subr.mxu0 0.0
      %1023 = vmatpush1.msra.mxu0 0.0
      %1024 = vmatprep.subr.mxu0 0.0
      %1025 = vmatpush1.msra.mxu0 0.0
      %1026 = vmatprep.subr.mxu0 0.0
      %1027 = vmatpush1.msra.mxu0 0.0
      %1028 = vmatprep.subr.mxu0 0.0
      %1029 = vmatpush1.msra.mxu0 0.0
      %1030 = vmatprep.subr.mxu0 0.0
      %1031 = vmatpush1.msra.mxu0 0.0
      %1032 = vmatprep.subr.mxu0 0.0
      %1033 = vmatpush1.msra.mxu0 0.0
      %1034 = vmatprep.subr.mxu0 0.0
      %1035 = vmatpush1.msra.mxu0 0.0
      %1036 = vmatprep.subr.mxu0 0.0
      %1037 = vmatpush1.msra.mxu0 0.0
      %1038 = vmatprep.subr.mxu0 0.0
      %1039 = vmatpush1.msra.mxu0 %v765
      %1040 = vmatprep.subr.mxu0 0.0
      %1041 = vmatpush2.msra.mxu0 0.0
      %1042 = vmatprep.subr.mxu0 0.0
      %1043 = vmatpush2.msra.mxu0 0.0
      %1044 = vmatprep.subr.mxu0 0.0
      %1045 = vmatpush2.msra.mxu0 0.0
      %1046 = vmatprep.subr.mxu0 0.0
      %1047 = vmatpush2.msra.mxu0 0.0
      %1048 = vmatprep.subr.mxu0 0.0
      %1049 = vmatpush2.msra.mxu0 0.0
      %1050 = vmatprep.subr.mxu0 0.0
      %1051 = vmatpush2.msra.mxu0 0.0
      %1052 = vmatprep.subr.mxu0 0.0
      %1053 = vmatpush2.msra.mxu0 0.0
      %1054 = vmatprep.subr.mxu0 0.0
      %1055 = vmatpush2.msra.mxu0 0.0
      %1056 = vmatprep.subr.mxu0 0.0
      %1057 = vmatpush2.msra.mxu0 0.0
      %1058 = vmatprep.subr.mxu0 0.0
      %1059 = vmatpush2.msra.mxu0 0.0
      %1060 = vmatprep.subr.mxu0 0.0
      %1061 = vmatpush2.msra.mxu0 0.0
      %1062 = vmatprep.subr.mxu0 0.0
      %1063 = vmatpush2.msra.mxu0 0.0
      %1064 = vmatprep.subr.mxu0 0.0
      %1065 = vmatpush2.msra.mxu0 0.0
      %1066 = vmatprep.subr.mxu0 0.0
      %1067 = vmatpush2.msra.mxu0 0.0
      %1068 = vmatprep.subr.mxu0 0.0
      %1069 = vmatpush2.msra.mxu0 0.0
      %1070 = vmatprep.subr.mxu0 0.0
      %1071 = vmatpush2.msra.mxu0 0.0
      %1072 = vmatprep.mubr.f32.mxu0 0.0
      %1073 = vmatmul.mubr.f32.gmra.mxu0 %v1006
      %v1074 = vpop.f32.mrf.mxu0
      %v1075 = vadd.f32 %v1002, %v1074
      %v1076 = vpop.f32.mrf.mxu0
      %1077 = vdwg.mxu0
      %1078 = vrot.lane.b32.xlu0 %v598, 112
      %v1079 = vpop.permute.xlu0 %1078
      %1080 = vrot.lane.b32.xlu0 %v595, 80
      %v1081 = vpop.permute.xlu0 %1080
      %v1082 = vsel %vm602, %v1079, 0
      %v1084 = vsel %vm602, %v1081, 0
      %1086 = vmatprep.subr.mxu0 0.0
      %1087 = vmatpush1.xpose.msra.mxu0 0.0
      %1088 = vmatprep.subr.mxu0 0.0
      %1089 = vmatpush1.xpose.msra.mxu0 0.0
      %1090 = vmatprep.subr.mxu0 0.0
      %1091 = vmatpush1.xpose.msra.mxu0 0.0
      %1092 = vmatprep.subr.mxu0 0.0
      %1093 = vmatpush1.xpose.msra.mxu0 0.0
      %1094 = vmatprep.subr.mxu0 0.0
      %1095 = vmatpush1.xpose.msra.mxu0 0.0
      %1096 = vmatprep.subr.mxu0 0.0
      %1097 = vmatpush1.xpose.msra.mxu0 0.0
      %1098 = vmatprep.subr.mxu0 0.0
      %1099 = vmatpush1.xpose.msra.mxu0 0.0
      %1100 = vmatprep.subr.mxu0 0.0
      %1101 = vmatpush1.xpose.msra.mxu0 0.0
      %1102 = vmatprep.subr.mxu0 0.0
      %1103 = vmatpush1.xpose.msra.mxu0 0.0
      %1104 = vmatprep.subr.mxu0 0.0
      %1105 = vmatpush1.xpose.msra.mxu0 0.0
      %1106 = vmatprep.subr.mxu0 0.0
      %1107 = vmatpush1.xpose.msra.mxu0 0.0
      %1108 = vmatprep.subr.mxu0 0.0
      %1109 = vmatpush1.xpose.msra.mxu0 0.0
      %1110 = vmatprep.subr.mxu0 0.0
      %1111 = vmatpush1.xpose.msra.mxu0 0.0
      %1112 = vmatprep.subr.mxu0 0.0
      %1113 = vmatpush1.xpose.msra.mxu0 0.0
      %1114 = vmatprep.subr.mxu0 0.0
      %1115 = vmatpush1.xpose.msra.mxu0 0.0
      %1116 = vmatprep.subr.mxu0 0.0
      %1117 = vmatpush1.xpose.msra.mxu0 %v1084
      %1118 = vmatprep.subr.mxu0 0.0
      %1119 = vmatpush2.xpose.msra.mxu0 0.0
      %1120 = vmatprep.subr.mxu0 0.0
      %1121 = vmatpush2.xpose.msra.mxu0 0.0
      %1122 = vmatprep.subr.mxu0 0.0
      %1123 = vmatpush2.xpose.msra.mxu0 0.0
      %1124 = vmatprep.subr.mxu0 0.0
      %1125 = vmatpush2.xpose.msra.mxu0 0.0
      %1126 = vmatprep.subr.mxu0 0.0
      %1127 = vmatpush2.xpose.msra.mxu0 0.0
      %1128 = vmatprep.subr.mxu0 0.0
      %1129 = vmatpush2.xpose.msra.mxu0 0.0
      %1130 = vmatprep.subr.mxu0 0.0
      %1131 = vmatpush2.xpose.msra.mxu0 0.0
      %1132 = vmatprep.subr.mxu0 0.0
      %1133 = vmatpush2.xpose.msra.mxu0 0.0
      %1134 = vmatprep.subr.mxu0 0.0
      %1135 = vmatpush2.xpose.msra.mxu0 0.0
      %1136 = vmatprep.subr.mxu0 0.0
      %1137 = vmatpush2.xpose.msra.mxu0 0.0
      %1138 = vmatprep.subr.mxu0 0.0
      %1139 = vmatpush2.xpose.msra.mxu0 0.0
      %1140 = vmatprep.subr.mxu0 0.0
      %1141 = vmatpush2.xpose.msra.mxu0 0.0
      %1142 = vmatprep.subr.mxu0 0.0
      %1143 = vmatpush2.xpose.msra.mxu0 0.0
      %1144 = vmatprep.subr.mxu0 0.0
      %1145 = vmatpush2.xpose.msra.mxu0 0.0
      %1146 = vmatprep.subr.mxu0 0.0
      %1147 = vmatpush2.xpose.msra.mxu0 0.0
      %1148 = vmatprep.subr.mxu0 0.0
      %1149 = vmatpush2.xpose.msra.mxu0 0.0
      %1150 = vmatprep.mubr.f32.mxu0 0.0
      %1151 = vmatmul.mubr.f32.gmra.mxu0 %v1082
      %v1152 = vpop.f32.mrf.mxu0
      %v1153 = vadd.f32 0.0, %v1152
      %v1154 = vpop.f32.mrf.mxu0
      %1155 = vdwg.mxu0
      %v1156 = vsel %vm602, %v1153, -inf
      %1157 = vmax.xlane.f32.xlu0 %v1156
      %v1158 = vpop.xlane.xlu0 %1157
      %v1159 = vsub.f32 %v1153, %v1158
      %v1160 = vmul.f32 %v1159, 1.442695
      %v1161 = vpow.pop %v1160
      %v1162 = vsel %vm602, %v1161, 0.0
      %1163 = vadd.xlane.f32.xlu0 %v1162
      %v1164 = vpop.xlane.xlu0 %1163
      %v1165 = vrcp.pop %v1164
      %v1166 = vmul.f32 %v1161, %v1165
      %1167 = vrot.lane.b32.xlu0 %v595, 48
      %v1168 = vpop.permute.xlu0 %1167
      %v1171 = vsel %vm602, %v1166, 0
      %1173 = vmatprep.subr.mxu0 0.0
      %1174 = vmatpush1.msra.mxu0 0.0
      %1175 = vmatprep.subr.mxu0 0.0
      %1176 = vmatpush1.msra.mxu0 0.0
      %1177 = vmatprep.subr.mxu0 0.0
      %1178 = vmatpush1.msra.mxu0 0.0
      %1179 = vmatprep.subr.mxu0 0.0
      %1180 = vmatpush1.msra.mxu0 0.0
      %1181 = vmatprep.subr.mxu0 0.0
      %1182 = vmatpush1.msra.mxu0 0.0
      %1183 = vmatprep.subr.mxu0 0.0
      %1184 = vmatpush1.msra.mxu0 0.0
      %1185 = vmatprep.subr.mxu0 0.0
      %1186 = vmatpush1.msra.mxu0 0.0
      %1187 = vmatprep.subr.mxu0 0.0
      %1188 = vmatpush1.msra.mxu0 0.0
      %1189 = vmatprep.subr.mxu0 0.0
      %1190 = vmatpush1.msra.mxu0 0.0
      %1191 = vmatprep.subr.mxu0 0.0
      %1192 = vmatpush1.msra.mxu0 0.0
      %1193 = vmatprep.subr.mxu0 0.0
      %1194 = vmatpush1.msra.mxu0 0.0
      %1195 = vmatprep.subr.mxu0 0.0
      %1196 = vmatpush1.msra.mxu0 0.0
      %1197 = vmatprep.subr.mxu0 0.0
      %1198 = vmatpush1.msra.mxu0 0.0
      %1199 = vmatprep.subr.mxu0 0.0
      %1200 = vmatpush1.msra.mxu0 0.0
      %1201 = vmatprep.subr.mxu0 0.0
      %1202 = vmatpush1.msra.mxu0 0.0
      %1203 = vmatprep.subr.mxu0 0.0
      %1204 = vmatpush1.msra.mxu0 %v1168
      %1205 = vmatprep.subr.mxu0 0.0
      %1206 = vmatpush2.msra.mxu0 0.0
      %1207 = vmatprep.subr.mxu0 0.0
      %1208 = vmatpush2.msra.mxu0 0.0
      %1209 = vmatprep.subr.mxu0 0.0
      %1210 = vmatpush2.msra.mxu0 0.0
      %1211 = vmatprep.subr.mxu0 0.0
      %1212 = vmatpush2.msra.mxu0 0.0
      %1213 = vmatprep.subr.mxu0 0.0
      %1214 = vmatpush2.msra.mxu0 0.0
      %1215 = vmatprep.subr.mxu0 0.0
      %1216 = vmatpush2.msra.mxu0 0.0
      %1217 = vmatprep.subr.mxu0 0.0
      %1218 = vmatpush2.msra.mxu0 0.0
      %1219 = vmatprep.subr.mxu0 0.0
      %1220 = vmatpush2.msra.mxu0 0.0
      %1221 = vmatprep.subr.mxu0 0.0
      %1222 = vmatpush2.msra.mxu0 0.0
      %1223 = vmatprep.subr.mxu0 0.0
      %1224 = vmatpush2.msra.mxu0 0.0
      %1225 = vmatprep.subr.mxu0 0.0
      %1226 = vmatpush2.msra.mxu0 0.0
      %1227 = vmatprep.subr.mxu0 0.0
      %1228 = vmatpush2.msra.mxu0 0.0
      %1229 = vmatprep.subr.mxu0 0.0
      %1230 = vmatpush2.msra.mxu0 0.0
      %1231 = vmatprep.subr.mxu0 0.0
      %1232 = vmatpush2.msra.mxu0 0.0
      %1233 = vmatprep.subr.mxu0 0.0
      %1234 = vmatpush2.msra.mxu0 0.0
      %1235 = vmatprep.subr.mxu0 0.0
      %1236 = vmatpush2.msra.mxu0 0.0
      %1237 = vmatprep.mubr.f32.mxu0 0.0
      %1238 = vmatmul.mubr.f32.gmra.mxu0 %v1171
      %v1239 = vpop.f32.mrf.mxu0
      %v1240 = vadd.f32 0.0, %v1239
      %v1241 = vpop.f32.mrf.mxu0
      %1242 = vdwg.mxu0
      %v1243 = vld [vmem:[%s6 + $0x10] sm:$0xff]
      %v1245 = vsel %vm602, %v1240, 0
      %1247 = vmatprep.subr.mxu0 0.0
      %1248 = vmatpush1.msra.mxu0 0.0
      %1249 = vmatprep.subr.mxu0 0.0
      %1250 = vmatpush1.msra.mxu0 0.0
      %1251 = vmatprep.subr.mxu0 0.0
      %1252 = vmatpush1.msra.mxu0 0.0
      %1253 = vmatprep.subr.mxu0 0.0
      %1254 = vmatpush1.msra.mxu0 0.0
      %1255 = vmatprep.subr.mxu0 0.0
      %1256 = vmatpush1.msra.mxu0 0.0
      %1257 = vmatprep.subr.mxu0 0.0
      %1258 = vmatpush1.msra.mxu0 0.0
      %1259 = vmatprep.subr.mxu0 0.0
      %1260 = vmatpush1.msra.mxu0 0.0
      %1261 = vmatprep.subr.mxu0 0.0
      %1262 = vmatpush1.msra.mxu0 0.0
      %1263 = vmatprep.subr.mxu0 0.0
      %1264 = vmatpush1.msra.mxu0 0.0
      %1265 = vmatprep.subr.mxu0 0.0
      %1266 = vmatpush1.msra.mxu0 0.0
      %1267 = vmatprep.subr.mxu0 0.0
      %1268 = vmatpush1.msra.mxu0 0.0
      %1269 = vmatprep.subr.mxu0 0.0
      %1270 = vmatpush1.msra.mxu0 0.0
      %1271 = vmatprep.subr.mxu0 0.0
      %1272 = vmatpush1.msra.mxu0 0.0
      %1273 = vmatprep.subr.mxu0 0.0
      %1274 = vmatpush1.msra.mxu0 0.0
      %1275 = vmatprep.subr.mxu0 0.0
      %1276 = vmatpush1.msra.mxu0 0.0
      %1277 = vmatprep.subr.mxu0 0.0
      %1278 = vmatpush1.msra.mxu0 %v1243
      %1279 = vmatprep.subr.mxu0 0.0
      %1280 = vmatpush2.msra.mxu0 0.0
      %1281 = vmatprep.subr.mxu0 0.0
      %1282 = vmatpush2.msra.mxu0 0.0
      %1283 = vmatprep.subr.mxu0 0.0
      %1284 = vmatpush2.msra.mxu0 0.0
      %1285 = vmatprep.subr.mxu0 0.0
      %1286 = vmatpush2.msra.mxu0 0.0
      %1287 = vmatprep.subr.mxu0 0.0
      %1288 = vmatpush2.msra.mxu0 0.0
      %1289 = vmatprep.subr.mxu0 0.0
      %1290 = vmatpush2.msra.mxu0 0.0
      %1291 = vmatprep.subr.mxu0 0.0
      %1292 = vmatpush2.msra.mxu0 0.0
      %1293 = vmatprep.subr.mxu0 0.0
      %1294 = vmatpush2.msra.mxu0 0.0
      %1295 = vmatprep.subr.mxu0 0.0
      %1296 = vmatpush2.msra.mxu0 0.0
      %1297 = vmatprep.subr.mxu0 0.0
      %1298 = vmatpush2.msra.mxu0 0.0
      %1299 = vmatprep.subr.mxu0 0.0
      %1300 = vmatpush2.msra.mxu0 0.0
      %1301 = vmatprep.subr.mxu0 0.0
      %1302 = vmatpush2.msra.mxu0 0.0
      %1303 = vmatprep.subr.mxu0 0.0
      %1304 = vmatpush2.msra.mxu0 0.0
      %1305 = vmatprep.subr.mxu0 0.0
      %1306 = vmatpush2.msra.mxu0 0.0
      %1307 = vmatprep.subr.mxu0 0.0
      %1308 = vmatpush2.msra.mxu0 0.0
      %1309 = vmatprep.subr.mxu0 0.0
      %1310 = vmatpush2.msra.mxu0 0.0
      %1311 = vmatprep.mubr.f32.mxu0 0.0
      %1312 = vmatmul.mubr.f32.gmra.mxu0 %v1245
      %v1313 = vpop.f32.mrf.mxu0
      %v1314 = vadd.f32 0.0, %v1313
      %v1315 = vpop.f32.mrf.mxu0
      %1316 = vdwg.mxu0
      %v1317 = vadd.f32 %v1075, %v1314
      %1318 = vrot.lane.b32.xlu0 %v598, 104
      %v1319 = vpop.permute.xlu0 %1318
      %1320 = vrot.lane.b32.xlu0 %v595, 72
      %v1321 = vpop.permute.xlu0 %1320
      %v1322 = vsel %vm602, %v1319, 0
      %v1324 = vsel %vm602, %v1321, 0
      %1326 = vmatprep.subr.mxu0 0.0
      %1327 = vmatpush1.xpose.msra.mxu0 0.0
      %1328 = vmatprep.subr.mxu0 0.0
      %1329 = vmatpush1.xpose.msra.mxu0 0.0
      %1330 = vmatprep.subr.mxu0 0.0
      %1331 = vmatpush1.xpose.msra.mxu0 0.0
      %1332 = vmatprep.subr.mxu0 0.0
      %1333 = vmatpush1.xpose.msra.mxu0 0.0
      %1334 = vmatprep.subr.mxu0 0.0
      %1335 = vmatpush1.xpose.msra.mxu0 0.0
      %1336 = vmatprep.subr.mxu0 0.0
      %1337 = vmatpush1.xpose.msra.mxu0 0.0
      %1338 = vmatprep.subr.mxu0 0.0
      %1339 = vmatpush1.xpose.msra.mxu0 0.0
      %1340 = vmatprep.subr.mxu0 0.0
      %1341 = vmatpush1.xpose.msra.mxu0 0.0
      %1342 = vmatprep.subr.mxu0 0.0
      %1343 = vmatpush1.xpose.msra.mxu0 0.0
      %1344 = vmatprep.subr.mxu0 0.0
      %1345 = vmatpush1.xpose.msra.mxu0 0.0
      %1346 = vmatprep.subr.mxu0 0.0
      %1347 = vmatpush1.xpose.msra.mxu0 0.0
      %1348 = vmatprep.subr.mxu0 0.0
      %1349 = vmatpush1.xpose.msra.mxu0 0.0
      %1350 = vmatprep.subr.mxu0 0.0
      %1351 = vmatpush1.xpose.msra.mxu0 0.0
      %1352 = vmatprep.subr.mxu0 0.0
      %1353 = vmatpush1.xpose.msra.mxu0 0.0
      %1354 = vmatprep.subr.mxu0 0.0
      %1355 = vmatpush1.xpose.msra.mxu0 0.0
      %1356 = vmatprep.subr.mxu0 0.0
      %1357 = vmatpush1.xpose.msra.mxu0 %v1324
      %1358 = vmatprep.subr.mxu0 0.0
      %1359 = vmatpush2.xpose.msra.mxu0 0.0
      %1360 = vmatprep.subr.mxu0 0.0
      %1361 = vmatpush2.xpose.msra.mxu0 0.0
      %1362 = vmatprep.subr.mxu0 0.0
      %1363 = vmatpush2.xpose.msra.mxu0 0.0
      %1364 = vmatprep.subr.mxu0 0.0
      %1365 = vmatpush2.xpose.msra.mxu0 0.0
      %1366 = vmatprep.subr.mxu0 0.0
      %1367 = vmatpush2.xpose.msra.mxu0 0.0
      %1368 = vmatprep.subr.mxu0 0.0
      %1369 = vmatpush2.xpose.msra.mxu0 0.0
      %1370 = vmatprep.subr.mxu0 0.0
      %1371 = vmatpush2.xpose.msra.mxu0 0.0
      %1372 = vmatprep.subr.mxu0 0.0
      %1373 = vmatpush2.xpose.msra.mxu0 0.0
      %1374 = vmatprep.subr.mxu0 0.0
      %1375 = vmatpush2.xpose.msra.mxu0 0.0
      %1376 = vmatprep.subr.mxu0 0.0
      %1377 = vmatpush2.xpose.msra.mxu0 0.0
      %1378 = vmatprep.subr.mxu0 0.0
      %1379 = vmatpush2.xpose.msra.mxu0 0.0
      %1380 = vmatprep.subr.mxu0 0.0
      %1381 = vmatpush2.xpose.msra.mxu0 0.0
      %1382 = vmatprep.subr.mxu0 0.0
      %1383 = vmatpush2.xpose.msra.mxu0 0.0
      %1384 = vmatprep.subr.mxu0 0.0
      %1385 = vmatpush2.xpose.msra.mxu0 0.0
      %1386 = vmatprep.subr.mxu0 0.0
      %1387 = vmatpush2.xpose.msra.mxu0 0.0
      %1388 = vmatprep.subr.mxu0 0.0
      %1389 = vmatpush2.xpose.msra.mxu0 0.0
      %1390 = vmatprep.mubr.f32.mxu0 0.0
      %1391 = vmatmul.mubr.f32.gmra.mxu0 %v1322
      %v1392 = vpop.f32.mrf.mxu0
      %v1393 = vadd.f32 0.0, %v1392
      %v1394 = vpop.f32.mrf.mxu0
      %1395 = vdwg.mxu0
      %v1396 = vsel %vm602, %v1393, -inf
      %1397 = vmax.xlane.f32.xlu0 %v1396
      %v1398 = vpop.xlane.xlu0 %1397
      %v1399 = vsub.f32 %v1393, %v1398
      %v1400 = vmul.f32 %v1399, 1.442695
      %v1401 = vpow.pop %v1400
      %v1402 = vsel %vm602, %v1401, 0.0
      %1403 = vadd.xlane.f32.xlu0 %v1402
      %v1404 = vpop.xlane.xlu0 %1403
      %v1405 = vrcp.pop %v1404
      %v1406 = vmul.f32 %v1401, %v1405
      %1407 = vrot.lane.b32.xlu0 %v595, 40
      %v1408 = vpop.permute.xlu0 %1407
      %v1411 = vsel %vm602, %v1406, 0
      %1413 = vmatprep.subr.mxu0 0.0
      %1414 = vmatpush1.msra.mxu0 0.0
      %1415 = vmatprep.subr.mxu0 0.0
      %1416 = vmatpush1.msra.mxu0 0.0
      %1417 = vmatprep.subr.mxu0 0.0
      %1418 = vmatpush1.msra.mxu0 0.0
      %1419 = vmatprep.subr.mxu0 0.0
      %1420 = vmatpush1.msra.mxu0 0.0
      %1421 = vmatprep.subr.mxu0 0.0
      %1422 = vmatpush1.msra.mxu0 0.0
      %1423 = vmatprep.subr.mxu0 0.0
      %1424 = vmatpush1.msra.mxu0 0.0
      %1425 = vmatprep.subr.mxu0 0.0
      %1426 = vmatpush1.msra.mxu0 0.0
      %1427 = vmatprep.subr.mxu0 0.0
      %1428 = vmatpush1.msra.mxu0 0.0
      %1429 = vmatprep.subr.mxu0 0.0
      %1430 = vmatpush1.msra.mxu0 0.0
      %1431 = vmatprep.subr.mxu0 0.0
      %1432 = vmatpush1.msra.mxu0 0.0
      %1433 = vmatprep.subr.mxu0 0.0
      %1434 = vmatpush1.msra.mxu0 0.0
      %1435 = vmatprep.subr.mxu0 0.0
      %1436 = vmatpush1.msra.mxu0 0.0
      %1437 = vmatprep.subr.mxu0 0.0
      %1438 = vmatpush1.msra.mxu0 0.0
      %1439 = vmatprep.subr.mxu0 0.0
      %1440 = vmatpush1.msra.mxu0 0.0
      %1441 = vmatprep.subr.mxu0 0.0
      %1442 = vmatpush1.msra.mxu0 0.0
      %1443 = vmatprep.subr.mxu0 0.0
      %1444 = vmatpush1.msra.mxu0 %v1408
      %1445 = vmatprep.subr.mxu0 0.0
      %1446 = vmatpush2.msra.mxu0 0.0
      %1447 = vmatprep.subr.mxu0 0.0
      %1448 = vmatpush2.msra.mxu0 0.0
      %1449 = vmatprep.subr.mxu0 0.0
      %1450 = vmatpush2.msra.mxu0 0.0
      %1451 = vmatprep.subr.mxu0 0.0
      %1452 = vmatpush2.msra.mxu0 0.0
      %1453 = vmatprep.subr.mxu0 0.0
      %1454 = vmatpush2.msra.mxu0 0.0
      %1455 = vmatprep.subr.mxu0 0.0
      %1456 = vmatpush2.msra.mxu0 0.0
      %1457 = vmatprep.subr.mxu0 0.0
      %1458 = vmatpush2.msra.mxu0 0.0
      %1459 = vmatprep.subr.mxu0 0.0
      %1460 = vmatpush2.msra.mxu0 0.0
      %1461 = vmatprep.subr.mxu0 0.0
      %1462 = vmatpush2.msra.mxu0 0.0
      %1463 = vmatprep.subr.mxu0 0.0
      %1464 = vmatpush2.msra.mxu0 0.0
      %1465 = vmatprep.subr.mxu0 0.0
      %1466 = vmatpush2.msra.mxu0 0.0
      %1467 = vmatprep.subr.mxu0 0.0
      %1468 = vmatpush2.msra.mxu0 0.0
      %1469 = vmatprep.subr.mxu0 0.0
      %1470 = vmatpush2.msra.mxu0 0.0
      %1471 = vmatprep.subr.mxu0 0.0
      %1472 = vmatpush2.msra.mxu0 0.0
      %1473 = vmatprep.subr.mxu0 0.0
      %1474 = vmatpush2.msra.mxu0 0.0
      %1475 = vmatprep.subr.mxu0 0.0
      %1476 = vmatpush2.msra.mxu0 0.0
      %1477 = vmatprep.mubr.f32.mxu0 0.0
      %1478 = vmatmul.mubr.f32.gmra.mxu0 %v1411
      %v1479 = vpop.f32.mrf.mxu0
      %v1480 = vadd.f32 0.0, %v1479
      %v1481 = vpop.f32.mrf.mxu0
      %1482 = vdwg.mxu0
      %v1483 = vld [vmem:[%s6 + $0x18] sm:$0xff]
      %v1485 = vsel %vm602, %v1480, 0
      %1487 = vmatprep.subr.mxu0 0.0
      %1488 = vmatpush1.msra.mxu0 0.0
      %1489 = vmatprep.subr.mxu0 0.0
      %1490 = vmatpush1.msra.mxu0 0.0
      %1491 = vmatprep.subr.mxu0 0.0
      %1492 = vmatpush1.msra.mxu0 0.0
      %1493 = vmatprep.subr.mxu0 0.0
      %1494 = vmatpush1.msra.mxu0 0.0
      %1495 = vmatprep.subr.mxu0 0.0
      %1496 = vmatpush1.msra.mxu0 0.0
      %1497 = vmatprep.subr.mxu0 0.0
      %1498 = vmatpush1.msra.mxu0 0.0
      %1499 = vmatprep.subr.mxu0 0.0
      %1500 = vmatpush1.msra.mxu0 0.0
      %1501 = vmatprep.subr.mxu0 0.0
      %1502 = vmatpush1.msra.mxu0 0.0
      %1503 = vmatprep.subr.mxu0 0.0
      %1504 = vmatpush1.msra.mxu0 0.0
      %1505 = vmatprep.subr.mxu0 0.0
      %1506 = vmatpush1.msra.mxu0 0.0
      %1507 = vmatprep.subr.mxu0 0.0
      %1508 = vmatpush1.msra.mxu0 0.0
      %1509 = vmatprep.subr.mxu0 0.0
      %1510 = vmatpush1.msra.mxu0 0.0
      %1511 = vmatprep.subr.mxu0 0.0
      %1512 = vmatpush1.msra.mxu0 0.0
      %1513 = vmatprep.subr.mxu0 0.0
      %1514 = vmatpush1.msra.mxu0 0.0
      %1515 = vmatprep.subr.mxu0 0.0
      %1516 = vmatpush1.msra.mxu0 0.0
      %1517 = vmatprep.subr.mxu0 0.0
      %1518 = vmatpush1.msra.mxu0 %v1483
      %1519 = vmatprep.subr.mxu0 0.0
      %1520 = vmatpush2.msra.mxu0 0.0
      %1521 = vmatprep.subr.mxu0 0.0
      %1522 = vmatpush2.msra.mxu0 0.0
      %1523 = vmatprep.subr.mxu0 0.0
      %1524 = vmatpush2.msra.mxu0 0.0
      %1525 = vmatprep.subr.mxu0 0.0
      %1526 = vmatpush2.msra.mxu0 0.0
      %1527 = vmatprep.subr.mxu0 0.0
      %1528 = vmatpush2.msra.mxu0 0.0
      %1529 = vmatprep.subr.mxu0 0.0
      %1530 = vmatpush2.msra.mxu0 0.0
      %1531 = vmatprep.subr.mxu0 0.0
      %1532 = vmatpush2.msra.mxu0 0.0
      %1533 = vmatprep.subr.mxu0 0.0
      %1534 = vmatpush2.msra.mxu0 0.0
      %1535 = vmatprep.subr.mxu0 0.0
      %1536 = vmatpush2.msra.mxu0 0.0
      %1537 = vmatprep.subr.mxu0 0.0
      %1538 = vmatpush2.msra.mxu0 0.0
      %1539 = vmatprep.subr.mxu0 0.0
      %1540 = vmatpush2.msra.mxu0 0.0
      %1541 = vmatprep.subr.mxu0 0.0
      %1542 = vmatpush2.msra.mxu0 0.0
      %1543 = vmatprep.subr.mxu0 0.0
      %1544 = vmatpush2.msra.mxu0 0.0
      %1545 = vmatprep.subr.mxu0 0.0
      %1546 = vmatpush2.msra.mxu0 0.0
      %1547 = vmatprep.subr.mxu0 0.0
      %1548 = vmatpush2.msra.mxu0 0.0
      %1549 = vmatprep.subr.mxu0 0.0
      %1550 = vmatpush2.msra.mxu0 0.0
      %1551 = vmatprep.mubr.f32.mxu0 0.0
      %1552 = vmatmul.mubr.f32.gmra.mxu0 %v1485
      %v1553 = vpop.f32.mrf.mxu0
      %v1554 = vadd.f32 0.0, %v1553
      %v1555 = vpop.f32.mrf.mxu0
      %1556 = vdwg.mxu0
      %v1557 = vadd.f32 %v1317, %v1554
      %v1558 = vadd.f32 %v482, %v1557
      %v1559 = vld [vmem:[%s7] sm:$0x1]
      %v1561 = vlaneseq
      %v1562 = vshrl.u32 %v1561, 7
      %v1563 = vsub.s32 0, %v1562
      %v1564 = vrot.slane %v1559, %v1563
      %v1566 = vadd.f32 %v1558, %v1564
      %v1567 = vsel %vm483, %v1566, 0.0
      %1568 = vadd.xlane.f32.xlu0 %v1567
      %v1569 = vpop.xlane.xlu0 %1568
      %v1570 = vmul.f32 %v1569, %v487
      %v1571 = vsub.f32 %v1566, %v1570
      %v1572 = vmul.f32 %v1571, %v1571
      %v1573 = vsel %vm483, %v1572, 0.0
      %1574 = vadd.xlane.f32.xlu0 %v1573
      %v1575 = vpop.xlane.xlu0 %1574
      %v1576 = vmul.f32 %v1575, %v487
      %v1577 = vadd.f32 %v1576, 1e-05
      %v1578 = vrsqrt.pop %v1577
      %v1579 = vmul.f32 %v1571, %v1578
      %v1580 = vld [vmem:[%s8] sm:$0x1]
      %v1582 = vlaneseq
      %v1583 = vshrl.u32 %v1582, 7
      %v1584 = vsub.s32 0, %v1583
      %v1585 = vrot.slane %v1580, %v1584
      %v1587 = vmul.f32 %v1579, %v1585
      %v1588 = vld [vmem:[%s9] sm:$0x1]
      %v1590 = vlaneseq
      %v1591 = vshrl.u32 %v1590, 7
      %v1592 = vsub.s32 0, %v1591
      %v1593 = vrot.slane %v1588, %v1592
      %v1595 = vadd.f32 %v1587, %v1593
      %v1596 = vld [vmem:[%s10] sm:$0xff]
      %v1597 = vld [vmem:[%s10 + $0x8] sm:$0xff]
      %v1598 = vld [vmem:[%s10 + $0x10] sm:$0xff]
      %v1599 = vld [vmem:[%s10 + $0x18] sm:$0xff]
      %v1600 = vld [vmem:[%s11] sm:$0x1]
      %v1602 = vlaneseq
      %v1603 = vshrl.u32 %v1602, 7
      %v1604 = vsub.s32 0, %v1603
      %v1605 = vrot.slane %v1600, %v1604
      %v1608 = vsel %vm483, %v1595, 0
      %1610 = vmatprep.subr.mxu0 0.0
      %1611 = vmatpush1.msra.mxu0 0.0
      %1612 = vmatprep.subr.mxu0 0.0
      %1613 = vmatpush1.msra.mxu0 0.0
      %1614 = vmatprep.subr.mxu0 0.0
      %1615 = vmatpush1.msra.mxu0 0.0
      %1616 = vmatprep.subr.mxu0 0.0
      %1617 = vmatpush1.msra.mxu0 0.0
      %1618 = vmatprep.subr.mxu0 0.0
      %1619 = vmatpush1.msra.mxu0 0.0
      %1620 = vmatprep.subr.mxu0 0.0
      %1621 = vmatpush1.msra.mxu0 0.0
      %1622 = vmatprep.subr.mxu0 0.0
      %1623 = vmatpush1.msra.mxu0 0.0
      %1624 = vmatprep.subr.mxu0 0.0
      %1625 = vmatpush1.msra.mxu0 0.0
      %1626 = vmatprep.subr.mxu0 0.0
      %1627 = vmatpush1.msra.mxu0 0.0
      %1628 = vmatprep.subr.mxu0 0.0
      %1629 = vmatpush1.msra.mxu0 0.0
      %1630 = vmatprep.subr.mxu0 0.0
      %1631 = vmatpush1.msra.mxu0 0.0
      %1632 = vmatprep.subr.mxu0 0.0
      %1633 = vmatpush1.msra.mxu0 0.0
      %1634 = vmatprep.subr.mxu0 0.0
      %1635 = vmatpush1.msra.mxu0 %v1599
      %1636 = vmatprep.subr.mxu0 0.0
      %1637 = vmatpush1.msra.mxu0 %v1598
      %1638 = vmatprep.subr.mxu0 0.0
      %1639 = vmatpush1.msra.mxu0 %v1597
      %1640 = vmatprep.subr.mxu0 0.0
      %1641 = vmatpush1.msra.mxu0 %v1596
      %1642 = vmatprep.subr.mxu0 0.0
      %1643 = vmatpush2.msra.mxu0 0.0
      %1644 = vmatprep.subr.mxu0 0.0
      %1645 = vmatpush2.msra.mxu0 0.0
      %1646 = vmatprep.subr.mxu0 0.0
      %1647 = vmatpush2.msra.mxu0 0.0
      %1648 = vmatprep.subr.mxu0 0.0
      %1649 = vmatpush2.msra.mxu0 0.0
      %1650 = vmatprep.subr.mxu0 0.0
      %1651 = vmatpush2.msra.mxu0 0.0
      %1652 = vmatprep.subr.mxu0 0.0
      %1653 = vmatpush2.msra.mxu0 0.0
      %1654 = vmatprep.subr.mxu0 0.0
      %1655 = vmatpush2.msra.mxu0 0.0
      %1656 = vmatprep.subr.mxu0 0.0
      %1657 = vmatpush2.msra.mxu0 0.0
      %1658 = vmatprep.subr.mxu0 0.0
      %1659 = vmatpush2.msra.mxu0 0.0
      %1660 = vmatprep.subr.mxu0 0.0
      %1661 = vmatpush2.msra.mxu0 0.0
      %1662 = vmatprep.subr.mxu0 0.0
      %1663 = vmatpush2.msra.mxu0 0.0
      %1664 = vmatprep.subr.mxu0 0.0
      %1665 = vmatpush2.msra.mxu0 0.0
      %1666 = vmatprep.subr.mxu0 0.0
      %1667 = vmatpush2.msra.mxu0 0.0
      %1668 = vmatprep.subr.mxu0 0.0
      %1669 = vmatpush2.msra.mxu0 0.0
      %1670 = vmatprep.subr.mxu0 0.0
      %1671 = vmatpush2.msra.mxu0 0.0
      %1672 = vmatprep.subr.mxu0 0.0
      %1673 = vmatpush2.msra.mxu0 0.0
      %1674 = vmatprep.mubr.f32.mxu0 0.0
      %1675 = vmatmul.mubr.f32.gmra.mxu0 %v1608
      %v1676 = vpop.f32.mrf.mxu0
      %v1677 = vadd.f32 %v1605, %v1676
      %v1678 = vpop.f32.mrf.mxu0
      %1679 = vdwg.mxu0
      %v1680 = vmul.f32 %v1677, 0.5
      %v1681 = vmul.f32 %v1677, 0.70710677
      %vm1682 = vcmp.ge.f32.partialorder %v1681, 0.0
      %v1683 = vsel %vm1682, 1.0, -1.0
      %v1684 = vand.u32 2147483647, %v1681
      %v1685 = vmul.f32 %v1684, 0.3275911
      %v1686 = vadd.f32 %v1685, 1.0
      %v1687 = vrcp.pop %v1686
      %v1688 = vmul.f32 1.0, %v1687
      %v1689 = vmul.f32 %v1688, 1.0614054
      %v1690 = vadd.f32 %v1689, -1.4531521
      %v1691 = vmul.f32 %v1690, %v1688
      %v1692 = vadd.f32 %v1691, 1.4214138
      %v1693 = vmul.f32 %v1692, %v1688
      %v1694 = vadd.f32 %v1693, -0.28449672
      %v1695 = vmul.f32 %v1694, %v1688
      %v1696 = vadd.f32 %v1695, 0.2548296
      %v1697 = vmul.f32 %v1696, %v1688
      %v1698 = vsub.f32 0.0, %v1684
      %v1699 = vmul.f32 %v1698, %v1684
      %v1700 = vmul.f32 %v1699, 1.442695
      %v1701 = vpow.pop %v1700
      %v1702 = vmul.f32 %v1697, %v1701
      %v1703 = vsub.f32 1.0, %v1702
      %v1704 = vmul.f32 %v1683, %v1703
      %v1705 = vadd.f32 %v1704, 1.0
      %v1706 = vmul.f32 %v1680, %v1705
      %v1707 = vld [vmem:[%s12] sm:$0xff]
      %v1708 = vld [vmem:[%s12 + $0x8] sm:$0xff]
      %v1709 = vld [vmem:[%s12 + $0x10] sm:$0xff]
      %v1710 = vld [vmem:[%s12 + $0x18] sm:$0xff]
      %v1711 = vld [vmem:[%s12 + $0x20] sm:$0xff]
      %v1712 = vld [vmem:[%s12 + $0x28] sm:$0xff]
      %v1713 = vld [vmem:[%s12 + $0x30] sm:$0xff]
      %v1714 = vld [vmem:[%s12 + $0x38] sm:$0xff]
      %v1715 = vld [vmem:[%s12 + $0x40] sm:$0xff]
      %v1716 = vld [vmem:[%s12 + $0x48] sm:$0xff]
      %v1717 = vld [vmem:[%s12 + $0x50] sm:$0xff]
      %v1718 = vld [vmem:[%s12 + $0x58] sm:$0xff]
      %v1719 = vld [vmem:[%s12 + $0x60] sm:$0xff]
      %v1720 = vld [vmem:[%s12 + $0x68] sm:$0xff]
      %v1721 = vld [vmem:[%s12 + $0x70] sm:$0xff]
      %v1722 = vld [vmem:[%s12 + $0x78] sm:$0xff]
      %1723 = vmatprep.subr.mxu0 0.0
      %1724 = vmatpush1.msra.mxu0 %v1722
      %1725 = vmatprep.subr.mxu0 0.0
      %1726 = vmatpush1.msra.mxu0 %v1721
      %1727 = vmatprep.subr.mxu0 0.0
      %1728 = vmatpush1.msra.mxu0 %v1720
      %1729 = vmatprep.subr.mxu0 0.0
      %1730 = vmatpush1.msra.mxu0 %v1719
      %1731 = vmatprep.subr.mxu0 0.0
      %1732 = vmatpush1.msra.mxu0 %v1718
      %1733 = vmatprep.subr.mxu0 0.0
      %1734 = vmatpush1.msra.mxu0 %v1717
      %1735 = vmatprep.subr.mxu0 0.0
      %1736 = vmatpush1.msra.mxu0 %v1716
      %1737 = vmatprep.subr.mxu0 0.0
      %1738 = vmatpush1.msra.mxu0 %v1715
      %1739 = vmatprep.subr.mxu0 0.0
      %1740 = vmatpush1.msra.mxu0 %v1714
      %1741 = vmatprep.subr.mxu0 0.0
      %1742 = vmatpush1.msra.mxu0 %v1713
      %1743 = vmatprep.subr.mxu0 0.0
      %1744 = vmatpush1.msra.mxu0 %v1712
      %1745 = vmatprep.subr.mxu0 0.0
      %1746 = vmatpush1.msra.mxu0 %v1711
      %1747 = vmatprep.subr.mxu0 0.0
      %1748 = vmatpush1.msra.mxu0 %v1710
      %1749 = vmatprep.subr.mxu0 0.0
      %1750 = vmatpush1.msra.mxu0 %v1709
      %1751 = vmatprep.subr.mxu0 0.0
      %1752 = vmatpush1.msra.mxu0 %v1708
      %1753 = vmatprep.subr.mxu0 0.0
      %1754 = vmatpush1.msra.mxu0 %v1707
      %1755 = vmatprep.subr.mxu0 0.0
      %1756 = vmatpush2.msra.mxu0 0.0
      %1757 = vmatprep.subr.mxu0 0.0
      %1758 = vmatpush2.msra.mxu0 0.0
      %1759 = vmatprep.subr.mxu0 0.0
      %1760 = vmatpush2.msra.mxu0 0.0
      %1761 = vmatprep.subr.mxu0 0.0
      %1762 = vmatpush2.msra.mxu0 0.0
      %1763 = vmatprep.subr.mxu0 0.0
      %1764 = vmatpush2.msra.mxu0 0.0
      %1765 = vmatprep.subr.mxu0 0.0
      %1766 = vmatpush2.msra.mxu0 0.0
      %1767 = vmatprep.subr.mxu0 0.0
      %1768 = vmatpush2.msra.mxu0 0.0
      %1769 = vmatprep.subr.mxu0 0.0
      %1770 = vmatpush2.msra.mxu0 0.0
      %1771 = vmatprep.subr.mxu0 0.0
      %1772 = vmatpush2.msra.mxu0 0.0
      %1773 = vmatprep.subr.mxu0 0.0
      %1774 = vmatpush2.msra.mxu0 0.0
      %1775 = vmatprep.subr.mxu0 0.0
      %1776 = vmatpush2.msra.mxu0 0.0
      %1777 = vmatprep.subr.mxu0 0.0
      %1778 = vmatpush2.msra.mxu0 0.0
      %1779 = vmatprep.subr.mxu0 0.0
      %1780 = vmatpush2.msra.mxu0 0.0
      %1781 = vmatprep.subr.mxu0 0.0
      %1782 = vmatpush2.msra.mxu0 0.0
      %1783 = vmatprep.subr.mxu0 0.0
      %1784 = vmatpush2.msra.mxu0 0.0
      %1785 = vmatprep.subr.mxu0 0.0
      %1786 = vmatpush2.msra.mxu0 0.0
      %1787 = vmatprep.mubr.f32.mxu0 0.0
      %1788 = vmatmul.mubr.f32.gmra.mxu0 %v1706
      %v1789 = vpop.f32.mrf.mxu0
      %v1790 = vadd.f32 0.0, %v1789
      %v1791 = vpop.f32.mrf.mxu0
      %1792 = vdwg.mxu0
      %v1793 = vadd.f32 %v1566, %v1790
      %v1794 = vld [vmem:[%s13] sm:$0x1]
      %v1796 = vlaneseq
      %v1797 = vshrl.u32 %v1796, 7
      %v1798 = vsub.s32 0, %v1797
      %v1799 = vrot.slane %v1794, %v1798
      %v1801 = vadd.f32 %v1793, %v1799
      %1802 = vst.msk [vmem:[%s479] sm:$0xff] %vm483, %v1801
      %p1803 = scmp.lt.s32.totalorder %s25, 1
      %s1804 = scalar_select %p1803, %s25, 1
      %s1805 = smul.addr %s1804, 8
      %s1806 = scalar_lea.vmem %s14, %s1805
      // Predicated region
      $region77: #{mae_branch_forward.6} parent=75 // pred_check
        %p1807 = pneg %p347
      $region78: #{mae_branch_forward.6} parent=75 // pred_check_branch
        %1809 = sbr.rel (%p1807) target = $region80
      $region79: #{mae_branch_forward.6} parent=75 // pred_region
        _
      $region80: #{mae_branch_forward.6} parent=75 // pred_fallthru
        _
    $region76: #{mae_branch_forward.6} parent=5 // pred_fallthru
      _
    %p1810 = scmp.le.s32.totalorder 2, %s20
    // Predicated region
    $region81: #{mae_branch_forward.6} parent=5 // pred_check
      %p1811 = pneg %p1810
    $region82: #{mae_branch_forward.6} parent=5 // pred_check_branch
      %1813 = sbr.rel (%p1811) target = $region84
    $region83: #{mae_branch_forward.6} parent=5 // pred_region
      %s1814 = ssub.s32 %s20, 2
      // Predicated region
      $region85: #{mae_branch_forward.6} parent=83 // pred_check
        %p1815 = pneg %p353
      $region86: #{mae_branch_forward.6} parent=83 // pred_check_branch
        %1817 = sbr.rel (%p1815) target = $region88
      $region87: #{mae_branch_forward.6} parent=83 // pred_region
        %p1818 = scmp.lt.s32.totalorder %s26, 1
        %s1819 = scalar_select %p1818, %s26, 1
        %s1820 = smul.addr %s1819, 8
        %s1821 = scalar_lea.vmem %s14, %s1820
      $region88: #{mae_branch_forward.6} parent=83 // pred_fallthru
        _
    $region84: #{mae_branch_forward.6} parent=5 // pred_fallthru
      _
  $region6: #{mae_branch_forward.6} parent=0 // loop_footer
    %s24 = sadd.s32 1, %s20
  $region7: #{mae_branch_forward.6} parent=0 // loop_footer_branch
    %19 = sbr.rel target = $region3
  $region8: #{mae_branch_forward.6} parent=0 // loop_exit
    _

// kernel: mae_branch_forward.9
$region0: #{mae_branch_forward.9}
  #allocation0 [shape = 'u32[]', space=smem, size = 0x4, offset = 0x4, fixed_abs, tag = 'smem constant byte address 0x4 - core index']
  #allocation1 [shape = 'u32[144,128]{1,0:T(1,128)}', space=vmem, size = 0x12000, scoped, tag = 'internal scratch']
  %s0 = inlined_call_operand.vmem [shape: f32[2,16,32], index: 0, kind: input, shape index: {}]
  %s1 = inlined_call_operand.vmem [shape: f32[2,16,32], index: 1, kind: input, shape index: {}]
  %s2 = inlined_call_operand.vmem [shape: f32[1,32], index: 2, kind: input, shape index: {}]
  %s3 = inlined_call_operand.vmem [shape: f32[1,32], index: 3, kind: input, shape index: {}]
  %s4 = inlined_call_operand.vmem [shape: f32[32,96], index: 4, kind: input, shape index: {}]
  %s5 = inlined_call_operand.vmem [shape: f32[1,96], index: 5, kind: input, shape index: {}]
  %s6 = inlined_call_operand.vmem [shape: f32[32,32], index: 6, kind: input, shape index: {}]
  %s7 = inlined_call_operand.vmem [shape: f32[1,32], index: 7, kind: input, shape index: {}]
  %s8 = inlined_call_operand.vmem [shape: f32[1,32], index: 8, kind: input, shape index: {}]
  %s9 = inlined_call_operand.vmem [shape: f32[1,32], index: 9, kind: input, shape index: {}]
  %s10 = inlined_call_operand.vmem [shape: f32[32,128], index: 10, kind: input, shape index: {}]
  %s11 = inlined_call_operand.vmem [shape: f32[1,128], index: 11, kind: input, shape index: {}]
  %s12 = inlined_call_operand.vmem [shape: f32[128,32], index: 12, kind: input, shape index: {}]
  %s13 = inlined_call_operand.vmem [shape: f32[1,32], index: 13, kind: input, shape index: {}]
  %s14 = inlined_call_operand.vmem [shape: f32[2,16,32], index: 14, kind: output, shape index: {}]
  %s15 = sld [smem:[#allocation0]]
  $region89: #{mae_branch_forward.9} parent=0
    _
  %s17 = ssub.s32 1, %s15
  %s18 = scalar_select 0, %s17, %s15
  loop: start=0, step=1, limit=4
  $region2: #{mae_branch_forward.9} parent=0 // loop_pre_header
    _
  $region3: #{mae_branch_forward.9} parent=0 // loop_header
    %s20 = sphi 0, %s24
    %p21 = scmp.ge.s32.totalorder %s20, 4
    %s30 = sphi 0, %s32
    %s33 = sphi 0, %s30
    %s34 = sphi 0, %s33
    %s50 = sphi 0, %s34
    %s56 = sphi 0, %s58
    %s59 = sphi 0, %s56
    %s60 = sphi 0, %s59
    %s76 = sphi 0, %s60
    %s80 = sphi 0, %s80
    %s82 = sphi 0, %s80
    %s83 = sphi 0, %s82
    %s97 = sphi 0, %s83
    %s101 = sphi 0, %s101
    %s103 = sphi 0, %s101
    %s104 = sphi 0, %s103
    %s118 = sphi 0, %s104
    %s122 = sphi 0, %s122
    %s124 = sphi 0, %s122
    %s125 = sphi 0, %s124
    %s139 = sphi 0, %s125
    %s143 = sphi 0, %s143
    %s145 = sphi 0, %s143
    %s146 = sphi 0, %s145
    %s160 = sphi 0, %s146
    %s164 = sphi 0, %s164
    %s166 = sphi 0, %s164
    %s167 = sphi 0, %s166
    %s181 = sphi 0, %s167
    %s185 = sphi 0, %s185
    %s187 = sphi 0, %s185
    %s188 = sphi 0, %s187
    %s202 = sphi 0, %s188
    %s206 = sphi 0, %s206
    %s208 = sphi 0, %s206
    %s209 = sphi 0, %s208
    %s223 = sphi 0, %s209
    %s227 = sphi 0, %s227
    %s229 = sphi 0, %s227
    %s230 = sphi 0, %s229
    %s244 = sphi 0, %s230
    %s248 = sphi 0, %s248
    %s250 = sphi 0, %s248
    %s251 = sphi 0, %s250
    %s265 = sphi 0, %s251
    %s269 = sphi 0, %s269
    %s271 = sphi 0, %s269
    %s272 = sphi 0, %s271
    %s286 = sphi 0, %s272
    %s290 = sphi 0, %s290
    %s292 = sphi 0, %s290
    %s293 = sphi 0, %s292
    %s307 = sphi 0, %s293
    %s311 = sphi 0, %s311
    %s313 = sphi 0, %s311
    %s314 = sphi 0, %s313
    %s328 = sphi 0, %s314
    %s334 = sphi 0, %s336
    %s337 = sphi 0, %s334
    %s338 = sphi 0, %s337
    %s354 = sphi 0, %s338
  $region4: #{mae_branch_forward.9} parent=0 // loop_header_branch
    %23 = sbr.rel (%p21) target = $region8
  $region5: #{mae_branch_forward.9} parent=0 // loop_body
    %s25 = ssub.s32 %s20, 1
    %s26 = ssub.s32 %s20, 2
    %s27 = sadd.s32 %s20, 1
    %s28 = ssub.s32 %s20, %s27
    %p29 = scmp.eq.s32.totalorder %s28, 0
    %s31 = sadd.s32 %s30, 1
    %s32 = scalar_select %p29, %s30, %s31
    %p35 = pneg %p29
    %p36 = scmp.eq.s32.totalorder %s20, 1
    %p37 = por %p35, %p36
    %p38 = scmp.ne.s32.totalorder %s30, %s33
    %p39 = scmp.eq.s32.totalorder %s20, 0
    %p40 = por %p38, %p39
    %p41 = scmp.ne.s32.totalorder %s30, %s33
    %p42 = scmp.eq.s32.totalorder %s25, 1
    %p43 = por %p41, %p42
    %p44 = scmp.ne.s32.totalorder %s33, %s34
    %p45 = scmp.eq.s32.totalorder %s25, 0
    %p46 = por %p44, %p45
    %p47 = scmp.ne.s32.totalorder %s33, %s34
    %p48 = scmp.eq.s32.totalorder %s26, 1
    %p49 = por %p47, %p48
    %p51 = scmp.ne.s32.totalorder %s34, %s50
    %p52 = scmp.eq.s32.totalorder %s26, 0
    %p53 = por %p51, %p52
    %s54 = ssub.s32 %s20, %s27
    %p55 = scmp.eq.s32.totalorder %s54, 0
    %s57 = sadd.s32 %s56, 1
    %s58 = scalar_select %p55, %s56, %s57
    %p61 = pneg %p55
    %p62 = scmp.eq.s32.totalorder %s20, 1
    %p63 = por %p61, %p62
    %p64 = scmp.ne.s32.totalorder %s56, %s59
    %p65 = scmp.eq.s32.totalorder %s20, 0
    %p66 = por %p64, %p65
    %p67 = scmp.ne.s32.totalorder %s56, %s59
    %p68 = scmp.eq.s32.totalorder %s25, 1
    %p69 = por %p67, %p68
    %p70 = scmp.ne.s32.totalorder %s59, %s60
    %p71 = scmp.eq.s32.totalorder %s25, 0
    %p72 = por %p70, %p71
    %p73 = scmp.ne.s32.totalorder %s59, %s60
    %p74 = scmp.eq.s32.totalorder %s26, 1
    %p75 = por %p73, %p74
    %p77 = scmp.ne.s32.totalorder %s60, %s76
    %p78 = scmp.eq.s32.totalorder %s26, 0
    %p79 = por %p77, %p78
    %s81 = sadd.s32 %s80, 1
    %p84 = scmp.eq.s32.totalorder %s20, 1
    %p85 = scmp.ne.s32.totalorder %s80, %s82
    %p86 = scmp.eq.s32.totalorder %s20, 0
    %p87 = por %p85, %p86
    %p88 = scmp.ne.s32.totalorder %s80, %s82
    %p89 = scmp.eq.s32.totalorder %s25, 1
    %p90 = por %p88, %p89
    %p91 = scmp.ne.s32.totalorder %s82, %s83
    %p92 = scmp.eq.s32.totalorder %s25, 0
    %p93 = por %p91, %p92
    %p94 = scmp.ne.s32.totalorder %s82, %s83
    %p95 = scmp.eq.s32.totalorder %s26, 1
    %p96 = por %p94, %p95
    %p98 = scmp.ne.s32.totalorder %s83, %s97
    %p99 = scmp.eq.s32.totalorder %s26, 0
    %p100 = por %p98, %p99
    %s102 = sadd.s32 %s101, 1
    %p105 = scmp.eq.s32.totalorder %s20, 1
    %p106 = scmp.ne.s32.totalorder %s101, %s103
    %p107 = scmp.eq.s32.totalorder %s20, 0
    %p108 = por %p106, %p107
    %p109 = scmp.ne.s32.totalorder %s101, %s103
    %p110 = scmp.eq.s32.totalorder %s25, 1
    %p111 = por %p109, %p110
    %p112 = scmp.ne.s32.totalorder %s103, %s104
    %p113 = scmp.eq.s32.totalorder %s25, 0
    %p114 = por %p112, %p113
    %p115 = scmp.ne.s32.totalorder %s103, %s104
    %p116 = scmp.eq.s32.totalorder %s26, 1
    %p117 = por %p115, %p116
    %p119 = scmp.ne.s32.totalorder %s104, %s118
    %p120 = scmp.eq.s32.totalorder %s26, 0
    %p121 = por %p119, %p120
    %s123 = sadd.s32 %s122, 1
    %p126 = scmp.eq.s32.totalorder %s20, 1
    %p127 = scmp.ne.s32.totalorder %s122, %s124
    %p128 = scmp.eq.s32.totalorder %s20, 0
    %p129 = por %p127, %p128
    %p130 = scmp.ne.s32.totalorder %s122, %s124
    %p131 = scmp.eq.s32.totalorder %s25, 1
    %p132 = por %p130, %p131
    %p133 = scmp.ne.s32.totalorder %s124, %s125
    %p134 = scmp.eq.s32.totalorder %s25, 0
    %p135 = por %p133, %p134
    %p136 = scmp.ne.s32.totalorder %s124, %s125
    %p137 = scmp.eq.s32.totalorder %s26, 1
    %p138 = por %p136, %p137
    %p140 = scmp.ne.s32.totalorder %s125, %s139
    %p141 = scmp.eq.s32.totalorder %s26, 0
    %p142 = por %p140, %p141
    %s144 = sadd.s32 %s143, 1
    %p147 = scmp.eq.s32.totalorder %s20, 1
    %p148 = scmp.ne.s32.totalorder %s143, %s145
    %p149 = scmp.eq.s32.totalorder %s20, 0
    %p150 = por %p148, %p149
    %p151 = scmp.ne.s32.totalorder %s143, %s145
    %p152 = scmp.eq.s32.totalorder %s25, 1
    %p153 = por %p151, %p152
    %p154 = scmp.ne.s32.totalorder %s145, %s146
    %p155 = scmp.eq.s32.totalorder %s25, 0
    %p156 = por %p154, %p155
    %p157 = scmp.ne.s32.totalorder %s145, %s146
    %p158 = scmp.eq.s32.totalorder %s26, 1
    %p159 = por %p157, %p158
    %p161 = scmp.ne.s32.totalorder %s146, %s160
    %p162 = scmp.eq.s32.totalorder %s26, 0
    %p163 = por %p161, %p162
    %s165 = sadd.s32 %s164, 1
    %p168 = scmp.eq.s32.totalorder %s20, 1
    %p169 = scmp.ne.s32.totalorder %s164, %s166
    %p170 = scmp.eq.s32.totalorder %s20, 0
    %p171 = por %p169, %p170
    %p172 = scmp.ne.s32.totalorder %s164, %s166
    %p173 = scmp.eq.s32.totalorder %s25, 1
    %p174 = por %p172, %p173
    %p175 = scmp.ne.s32.totalorder %s166, %s167
    %p176 = scmp.eq.s32.totalorder %s25, 0
    %p177 = por %p175, %p176
    %p178 = scmp.ne.s32.totalorder %s166, %s167
    %p179 = scmp.eq.s32.totalorder %s26, 1
    %p180 = por %p178, %p179
    %p182 = scmp.ne.s32.totalorder %s167, %s181
    %p183 = scmp.eq.s32.totalorder %s26, 0
    %p184 = por %p182, %p183
    %s186 = sadd.s32 %s185, 1
    %p189 = scmp.eq.s32.totalorder %s20, 1
    %p190 = scmp.ne.s32.totalorder %s185, %s187
    %p191 = scmp.eq.s32.totalorder %s20, 0
    %p192 = por %p190, %p191
    %p193 = scmp.ne.s32.totalorder %s185, %s187
    %p194 = scmp.eq.s32.totalorder %s25, 1
    %p195 = por %p193, %p194
    %p196 = scmp.ne.s32.totalorder %s187, %s188
    %p197 = scmp.eq.s32.totalorder %s25, 0
    %p198 = por %p196, %p197
    %p199 = scmp.ne.s32.totalorder %s187, %s188
    %p200 = scmp.eq.s32.totalorder %s26, 1
    %p201 = por %p199, %p200
    %p203 = scmp.ne.s32.totalorder %s188, %s202
    %p204 = scmp.eq.s32.totalorder %s26, 0
    %p205 = por %p203, %p204
    %s207 = sadd.s32 %s206, 1
    %p210 = scmp.eq.s32.totalorder %s20, 1
    %p211 = scmp.ne.s32.totalorder %s206, %s208
    %p212 = scmp.eq.s32.totalorder %s20, 0
    %p213 = por %p211, %p212
    %p214 = scmp.ne.s32.totalorder %s206, %s208
    %p215 = scmp.eq.s32.totalorder %s25, 1
    %p216 = por %p214, %p215
    %p217 = scmp.ne.s32.totalorder %s208, %s209
    %p218 = scmp.eq.s32.totalorder %s25, 0
    %p219 = por %p217, %p218
    %p220 = scmp.ne.s32.totalorder %s208, %s209
    %p221 = scmp.eq.s32.totalorder %s26, 1
    %p222 = por %p220, %p221
    %p224 = scmp.ne.s32.totalorder %s209, %s223
    %p225 = scmp.eq.s32.totalorder %s26, 0
    %p226 = por %p224, %p225
    %s228 = sadd.s32 %s227, 1
    %p231 = scmp.eq.s32.totalorder %s20, 1
    %p232 = scmp.ne.s32.totalorder %s227, %s229
    %p233 = scmp.eq.s32.totalorder %s20, 0
    %p234 = por %p232, %p233
    %p235 = scmp.ne.s32.totalorder %s227, %s229
    %p236 = scmp.eq.s32.totalorder %s25, 1
    %p237 = por %p235, %p236
    %p238 = scmp.ne.s32.totalorder %s229, %s230
    %p239 = scmp.eq.s32.totalorder %s25, 0
    %p240 = por %p238, %p239
    %p241 = scmp.ne.s32.totalorder %s229, %s230
    %p242 = scmp.eq.s32.totalorder %s26, 1
    %p243 = por %p241, %p242
    %p245 = scmp.ne.s32.totalorder %s230, %s244
    %p246 = scmp.eq.s32.totalorder %s26, 0
    %p247 = por %p245, %p246
    %s249 = sadd.s32 %s248, 1
    %p252 = scmp.eq.s32.totalorder %s20, 1
    %p253 = scmp.ne.s32.totalorder %s248, %s250
    %p254 = scmp.eq.s32.totalorder %s20, 0
    %p255 = por %p253, %p254
    %p256 = scmp.ne.s32.totalorder %s248, %s250
    %p257 = scmp.eq.s32.totalorder %s25, 1
    %p258 = por %p256, %p257
    %p259 = scmp.ne.s32.totalorder %s250, %s251
    %p260 = scmp.eq.s32.totalorder %s25, 0
    %p261 = por %p259, %p260
    %p262 = scmp.ne.s32.totalorder %s250, %s251
    %p263 = scmp.eq.s32.totalorder %s26, 1
    %p264 = por %p262, %p263
    %p266 = scmp.ne.s32.totalorder %s251, %s265
    %p267 = scmp.eq.s32.totalorder %s26, 0
    %p268 = por %p266, %p267
    %s270 = sadd.s32 %s269, 1
    %p273 = scmp.eq.s32.totalorder %s20, 1
    %p274 = scmp.ne.s32.totalorder %s269, %s271
    %p275 = scmp.eq.s32.totalorder %s20, 0
    %p276 = por %p274, %p275
    %p277 = scmp.ne.s32.totalorder %s269, %s271
    %p278 = scmp.eq.s32.totalorder %s25, 1
    %p279 = por %p277, %p278
    %p280 = scmp.ne.s32.totalorder %s271, %s272
    %p281 = scmp.eq.s32.totalorder %s25, 0
    %p282 = por %p280, %p281
    %p283 = scmp.ne.s32.totalorder %s271, %s272
    %p284 = scmp.eq.s32.totalorder %s26, 1
    %p285 = por %p283, %p284
    %p287 = scmp.ne.s32.totalorder %s272, %s286
    %p288 = scmp.eq.s32.totalorder %s26, 0
    %p289 = por %p287, %p288
    %s291 = sadd.s32 %s290, 1
    %p294 = scmp.eq.s32.totalorder %s20, 1
    %p295 = scmp.ne.s32.totalorder %s290, %s292
    %p296 = scmp.eq.s32.totalorder %s20, 0
    %p297 = por %p295, %p296
    %p298 = scmp.ne.s32.totalorder %s290, %s292
    %p299 = scmp.eq.s32.totalorder %s25, 1
    %p300 = por %p298, %p299
    %p301 = scmp.ne.s32.totalorder %s292, %s293
    %p302 = scmp.eq.s32.totalorder %s25, 0
    %p303 = por %p301, %p302
    %p304 = scmp.ne.s32.totalorder %s292, %s293
    %p305 = scmp.eq.s32.totalorder %s26, 1
    %p306 = por %p304, %p305
    %p308 = scmp.ne.s32.totalorder %s293, %s307
    %p309 = scmp.eq.s32.totalorder %s26, 0
    %p310 = por %p308, %p309
    %s312 = sadd.s32 %s311, 1
    %p315 = scmp.eq.s32.totalorder %s20, 1
    %p316 = scmp.ne.s32.totalorder %s311, %s313
    %p317 = scmp.eq.s32.totalorder %s20, 0
    %p318 = por %p316, %p317
    %p319 = scmp.ne.s32.totalorder %s311, %s313
    %p320 = scmp.eq.s32.totalorder %s25, 1
    %p321 = por %p319, %p320
    %p322 = scmp.ne.s32.totalorder %s313, %s314
    %p323 = scmp.eq.s32.totalorder %s25, 0
    %p324 = por %p322, %p323
    %p325 = scmp.ne.s32.totalorder %s313, %s314
    %p326 = scmp.eq.s32.totalorder %s26, 1
    %p327 = por %p325, %p326
    %p329 = scmp.ne.s32.totalorder %s314, %s328
    %p330 = scmp.eq.s32.totalorder %s26, 0
    %p331 = por %p329, %p330
    %s332 = ssub.s32 %s20, %s27
    %p333 = scmp.eq.s32.totalorder %s332, 0
    %s335 = sadd.s32 %s334, 1
    %s336 = scalar_select %p333, %s334, %s335
    %p339 = pneg %p333
    %p340 = scmp.eq.s32.totalorder %s20, 1
    %p341 = por %p339, %p340
    %p342 = scmp.ne.s32.totalorder %s334, %s337
    %p343 = scmp.eq.s32.totalorder %s20, 0
    %p344 = por %p342, %p343
    %p345 = scmp.ne.s32.totalorder %s334, %s337
    %p346 = scmp.eq.s32.totalorder %s25, 1
    %p347 = por %p345, %p346
    %p348 = scmp.ne.s32.totalorder %s337, %s338
    %p349 = scmp.eq.s32.totalorder %s25, 0
    %p350 = por %p348, %p349
    %p351 = scmp.ne.s32.totalorder %s337, %s338
    %p352 = scmp.eq.s32.totalorder %s26, 1
    %p353 = por %p351, %p352
    %p355 = scmp.ne.s32.totalorder %s338, %s354
    %p356 = scmp.eq.s32.totalorder %s26, 0
    %p357 = por %p355, %p356
    %p358 = scmp.le.s32.totalorder 1, %s20
    %p359 = scmp.lt.s32.totalorder %s20, 3
    %p360 = pnand %p358, %p359
    %p361 = pneg %p360
    // Predicated region
    $region9: #{mae_branch_forward.9} parent=5 // pred_check
      _
    $region10: #{mae_branch_forward.9} parent=5 // pred_check_branch
      %363 = sbr.rel (%p360) target = $region12
    $region11: #{mae_branch_forward.9} parent=5 // pred_region
      %s364 = ssub.s32 %s20, 1
      // Predicated region
      $region13: #{mae_branch_forward.9} parent=11 // pred_check
        %p365 = pneg %p93
      $region14: #{mae_branch_forward.9} parent=11 // pred_check_branch
        %367 = sbr.rel (%p365) target = $region16
      $region15: #{mae_branch_forward.9} parent=11 // pred_region
        _
      $region16: #{mae_branch_forward.9} parent=11 // pred_fallthru
        _
      // Predicated region
      $region17: #{mae_branch_forward.9} parent=11 // pred_check
        %p368 = pneg %p114
      $region18: #{mae_branch_forward.9} parent=11 // pred_check_branch
        %370 = sbr.rel (%p368) target = $region20
      $region19: #{mae_branch_forward.9} parent=11 // pred_region
        _
      $region20: #{mae_branch_forward.9} parent=11 // pred_fallthru
        _
      // Predicated region
      $region21: #{mae_branch_forward.9} parent=11 // pred_check
        %p371 = pneg %p135
      $region22: #{mae_branch_forward.9} parent=11 // pred_check_branch
        %373 = sbr.rel (%p371) target = $region24
      $region23: #{mae_branch_forward.9} parent=11 // pred_region
        _
      $region24: #{mae_branch_forward.9} parent=11 // pred_fallthru
        _
      // Predicated region
      $region25: #{mae_branch_forward.9} parent=11 // pred_check
        %p374 = pneg %p156
      $region26: #{mae_branch_forward.9} parent=11 // pred_check_branch
        %376 = sbr.rel (%p374) target = $region28
      $region27: #{mae_branch_forward.9} parent=11 // pred_region
        _
      $region28: #{mae_branch_forward.9} parent=11 // pred_fallthru
        _
      // Predicated region
      $region29: #{mae_branch_forward.9} parent=11 // pred_check
        %p377 = pneg %p177
      $region30: #{mae_branch_forward.9} parent=11 // pred_check_branch
        %379 = sbr.rel (%p377) target = $region32
      $region31: #{mae_branch_forward.9} parent=11 // pred_region
        _
      $region32: #{mae_branch_forward.9} parent=11 // pred_fallthru
        _
      // Predicated region
      $region33: #{mae_branch_forward.9} parent=11 // pred_check
        %p380 = pneg %p198
      $region34: #{mae_branch_forward.9} parent=11 // pred_check_branch
        %382 = sbr.rel (%p380) target = $region36
      $region35: #{mae_branch_forward.9} parent=11 // pred_region
        _
      $region36: #{mae_branch_forward.9} parent=11 // pred_fallthru
        _
      // Predicated region
      $region37: #{mae_branch_forward.9} parent=11 // pred_check
        %p383 = pneg %p219
      $region38: #{mae_branch_forward.9} parent=11 // pred_check_branch
        %385 = sbr.rel (%p383) target = $region40
      $region39: #{mae_branch_forward.9} parent=11 // pred_region
        _
      $region40: #{mae_branch_forward.9} parent=11 // pred_fallthru
        _
      // Predicated region
      $region41: #{mae_branch_forward.9} parent=11 // pred_check
        %p386 = pneg %p240
      $region42: #{mae_branch_forward.9} parent=11 // pred_check_branch
        %388 = sbr.rel (%p386) target = $region44
      $region43: #{mae_branch_forward.9} parent=11 // pred_region
        _
      $region44: #{mae_branch_forward.9} parent=11 // pred_fallthru
        _
      // Predicated region
      $region45: #{mae_branch_forward.9} parent=11 // pred_check
        %p389 = pneg %p261
      $region46: #{mae_branch_forward.9} parent=11 // pred_check_branch
        %391 = sbr.rel (%p389) target = $region48
      $region47: #{mae_branch_forward.9} parent=11 // pred_region
        _
      $region48: #{mae_branch_forward.9} parent=11 // pred_fallthru
        _
      // Predicated region
      $region49: #{mae_branch_forward.9} parent=11 // pred_check
        %p392 = pneg %p282
      $region50: #{mae_branch_forward.9} parent=11 // pred_check_branch
        %394 = sbr.rel (%p392) target = $region52
      $region51: #{mae_branch_forward.9} parent=11 // pred_region
        _
      $region52: #{mae_branch_forward.9} parent=11 // pred_fallthru
        _
      // Predicated region
      $region53: #{mae_branch_forward.9} parent=11 // pred_check
        %p395 = pneg %p303
      $region54: #{mae_branch_forward.9} parent=11 // pred_check_branch
        %397 = sbr.rel (%p395) target = $region56
      $region55: #{mae_branch_forward.9} parent=11 // pred_region
        _
      $region56: #{mae_branch_forward.9} parent=11 // pred_fallthru
        _
      // Predicated region
      $region57: #{mae_branch_forward.9} parent=11 // pred_check
        %p398 = pneg %p324
      $region58: #{mae_branch_forward.9} parent=11 // pred_check_branch
        %400 = sbr.rel (%p398) target = $region60
      $region59: #{mae_branch_forward.9} parent=11 // pred_region
        _
      $region60: #{mae_branch_forward.9} parent=11 // pred_fallthru
        _
    $region12: #{mae_branch_forward.9} parent=5 // pred_fallthru
      _
    %p401 = scmp.lt.s32.totalorder %s20, 2
    // Predicated region
    $region61: #{mae_branch_forward.9} parent=5 // pred_check
      %p402 = pneg %p401
    $region62: #{mae_branch_forward.9} parent=5 // pred_check_branch
      %404 = sbr.rel (%p402) target = $region64
    $region63: #{mae_branch_forward.9} parent=5 // pred_region
      // Predicated region
      $region65: #{mae_branch_forward.9} parent=63 // pred_check
        %p405 = pneg %p40
      $region66: #{mae_branch_forward.9} parent=63 // pred_check_branch
        %407 = sbr.rel (%p405) target = $region68
      $region67: #{mae_branch_forward.9} parent=63 // pred_region
        %p408 = scmp.lt.s32.totalorder %s20, 1
        %s409 = scalar_select %p408, %s20, 1
        %s410 = smul.addr %s409, 2
        %s411 = smul.addr %s410, 8
        %s412 = scalar_lea.vmem %s0, %s411
      $region68: #{mae_branch_forward.9} parent=63 // pred_fallthru
        _
      // Predicated region
      $region69: #{mae_branch_forward.9} parent=63 // pred_check
        %p413 = pneg %p66
      $region70: #{mae_branch_forward.9} parent=63 // pred_check_branch
        %415 = sbr.rel (%p413) target = $region72
      $region71: #{mae_branch_forward.9} parent=63 // pred_region
        %p416 = scmp.lt.s32.totalorder %s20, 1
        %s417 = scalar_select %p416, %s20, 1
        %s418 = smul.addr %s417, 2
        %s419 = smul.addr %s418, 8
        %s420 = scalar_lea.vmem %s1, %s419
      $region72: #{mae_branch_forward.9} parent=63 // pred_fallthru
        _
    $region64: #{mae_branch_forward.9} parent=5 // pred_fallthru
      _
    %p421 = scmp.le.s32.totalorder 1, %s20
    %p422 = scmp.lt.s32.totalorder %s20, 3
    %p423 = pnand %p421, %p422
    %p424 = pneg %p423
    // Predicated region
    $region73: #{mae_branch_forward.9} parent=5 // pred_check
      _
    $region74: #{mae_branch_forward.9} parent=5 // pred_check_branch
      %426 = sbr.rel (%p423) target = $region76
    $region75: #{mae_branch_forward.9} parent=5 // pred_region
      %s427 = ssub.s32 %s20, 1
      %p428 = scmp.lt.s32.totalorder %s25, 1
      %s429 = scalar_select %p428, %s25, 1
      %s430 = smul.addr %s429, 2
      %s431 = smul.addr %s430, 8
      %s432 = scalar_lea.vmem %s0, %s431
      %p433 = pneg %p46
      %p434 = pneg %p43
      %p435 = scmp.lt.s32.totalorder %s25, 1
      %s436 = scalar_select %p435, %s25, 1
      %s437 = smul.addr %s436, 2
      %s438 = smul.addr %s437, 8
      %s439 = scalar_lea.vmem %s1, %s438
      %p440 = pneg %p72
      %p441 = pneg %p69
      %p442 = pneg %p93
      %p443 = pneg %p90
      %p444 = pneg %p114
      %p445 = pneg %p111
      %p446 = pneg %p135
      %p447 = pneg %p132
      %p448 = pneg %p156
      %p449 = pneg %p153
      %p450 = pneg %p177
      %p451 = pneg %p174
      %p452 = pneg %p198
      %p453 = pneg %p195
      %p454 = pneg %p219
      %p455 = pneg %p216
      %p456 = pneg %p240
      %p457 = pneg %p237
      %p458 = pneg %p261
      %p459 = pneg %p258
      %p460 = pneg %p282
      %p461 = pneg %p279
      %p462 = pneg %p303
      %p463 = pneg %p300
      %p464 = pneg %p324
      %p465 = pneg %p321
      %p466 = pneg %p350
      %p467 = pneg %p347
      %p468 = scmp.lt.s32.totalorder %s25, 1
      %s469 = scalar_select %p468, %s25, 1
      %s470 = smul.addr %s469, 2
      %s471 = smul.addr %s470, 8
      %s472 = scalar_lea.vmem %s14, %s471
      %p473 = scmp.lt.s32.totalorder %s25, 1
      %s474 = scalar_select %p473, %s25, 1
      %s475 = smul.addr %s474, 2
      %s476 = smul.addr %s475, 8
      %s477 = scalar_lea.vmem %s0, %s476
      %p478 = scmp.lt.s32.totalorder %s25, 1
      %s479 = scalar_select %p478, %s25, 1
      %s480 = smul.addr %s479, 2
      %s481 = smul.addr %s480, 8
      %s482 = scalar_lea.vmem %s1, %s481
      %p483 = scmp.lt.s32.totalorder %s25, 1
      %s484 = scalar_select %p483, %s25, 1
      %s485 = smul.addr %s484, 2
      %s486 = smul.addr %s485, 8
      %s487 = scalar_lea.vmem %s14, %s486
      %v488 = vld [vmem:[%s477] sm:$0xff]
      %v489 = vld [vmem:[%s477 + $0x8] sm:$0xff]
      %v490 = vld [vmem:[%s482] sm:$0xff]
      %v491 = vld [vmem:[%s482 + $0x8] sm:$0xff]
      %v492 = vadd.f32 %v488, %v490
      %v493 = vadd.f32 %v489, %v491
      %vm494 = vcmask 261120
      %v495 = vsel %vm494, %v492, 0.0
      %496 = vadd.xlane.f32.xlu0 %v495
      %v497 = vpop.xlane.xlu0 %496
      %v498 = vsel %vm494, %v493, 0.0
      %499 = vadd.xlane.f32.xlu0 %v498
      %v500 = vpop.xlane.xlu0 %499
      %v501 = vrcp.pop 32.0
      %v502 = vmul.f32 %v497, %v501
      %v503 = vmul.f32 %v500, %v501
      %v504 = vsub.f32 %v492, %v502
      %v505 = vsub.f32 %v493, %v503
      %v506 = vmul.f32 %v504, %v504
      %v507 = vmul.f32 %v505, %v505
      %v508 = vsel %vm494, %v506, 0.0
      %509 = vadd.xlane.f32.xlu0 %v508
      %v510 = vpop.xlane.xlu0 %509
      %v511 = vsel %vm494, %v507, 0.0
      %512 = vadd.xlane.f32.xlu0 %v511
      %v513 = vpop.xlane.xlu0 %512
      %v514 = vmul.f32 %v510, %v501
      %v515 = vmul.f32 %v513, %v501
      %v516 = vadd.f32 %v514, 1e-05
      %v517 = vadd.f32 %v515, 1e-05
      %v518 = vrsqrt.pop %v516
      %v519 = vrsqrt.pop %v517
      %v520 = vmul.f32 %v504, %v518
      %v521 = vmul.f32 %v505, %v519
      %v522 = vld [vmem:[%s2] sm:$0x1]
      %v524 = vlaneseq
      %v525 = vshrl.u32 %v524, 7
      %v526 = vsub.s32 0, %v525
      %v527 = vrot.slane %v522, %v526
      %v529 = vmul.f32 %v520, %v527
      %v530 = vmul.f32 %v521, %v527
      %v531 = vld [vmem:[%s3] sm:$0x1]
      %v533 = vlaneseq
      %v534 = vshrl.u32 %v533, 7
      %v535 = vsub.s32 0, %v534
      %v536 = vrot.slane %v531, %v535
      %v538 = vadd.f32 %v529, %v536
      %v539 = vadd.f32 %v530, %v536
      %v540 = vld [vmem:[%s4] sm:$0xff]
      %v541 = vld [vmem:[%s4 + $0x8] sm:$0xff]
      %v542 = vld [vmem:[%s4 + $0x10] sm:$0xff]
      %v543 = vld [vmem:[%s4 + $0x18] sm:$0xff]
      %v544 = vld [vmem:[%s5] sm:$0x1]
      %v546 = vlaneseq
      %v547 = vshrl.u32 %v546, 7
      %v548 = vsub.s32 0, %v547
      %v549 = vrot.slane %v544, %v548
      %v552 = vsel %vm494, %v538, 0
      %v555 = vsel %vm494, %v539, 0
      %557 = vmatprep.subr.mxu0 0.0
      %558 = vmatpush1.msra.mxu0 0.0
      %559 = vmatprep.subr.mxu0 0.0
      %560 = vmatpush1.msra.mxu0 0.0
      %561 = vmatprep.subr.mxu0 0.0
      %562 = vmatpush1.msra.mxu0 0.0
      %563 = vmatprep.subr.mxu0 0.0
      %564 = vmatpush1.msra.mxu0 0.0
      %565 = vmatprep.subr.mxu0 0.0
      %566 = vmatpush1.msra.mxu0 0.0
      %567 = vmatprep.subr.mxu0 0.0
      %568 = vmatpush1.msra.mxu0 0.0
      %569 = vmatprep.subr.mxu0 0.0
      %570 = vmatpush1.msra.mxu0 0.0
      %571 = vmatprep.subr.mxu0 0.0
      %572 = vmatpush1.msra.mxu0 0.0
      %573 = vmatprep.subr.mxu0 0.0
      %574 = vmatpush1.msra.mxu0 0.0
      %575 = vmatprep.subr.mxu0 0.0
      %576 = vmatpush1.msra.mxu0 0.0
      %577 = vmatprep.subr.mxu0 0.0
      %578 = vmatpush1.msra.mxu0 0.0
      %579 = vmatprep.subr.mxu0 0.0
      %580 = vmatpush1.msra.mxu0 0.0
      %581 = vmatprep.subr.mxu0 0.0
      %582 = vmatpush1.msra.mxu0 %v543
      %583 = vmatprep.subr.mxu0 0.0
      %584 = vmatpush1.msra.mxu0 %v542
      %585 = vmatprep.subr.mxu0 0.0
      %586 = vmatpush1.msra.mxu0 %v541
      %587 = vmatprep.subr.mxu0 0.0
      %588 = vmatpush1.msra.mxu0 %v540
      %589 = vmatprep.subr.mxu0 0.0
      %590 = vmatpush2.msra.mxu0 0.0
      %591 = vmatprep.subr.mxu0 0.0
      %592 = vmatpush2.msra.mxu0 0.0
      %593 = vmatprep.subr.mxu0 0.0
      %594 = vmatpush2.msra.mxu0 0.0
      %595 = vmatprep.subr.mxu0 0.0
      %596 = vmatpush2.msra.mxu0 0.0
      %597 = vmatprep.subr.mxu0 0.0
      %598 = vmatpush2.msra.mxu0 0.0
      %599 = vmatprep.subr.mxu0 0.0
      %600 = vmatpush2.msra.mxu0 0.0
      %601 = vmatprep.subr.mxu0 0.0
      %602 = vmatpush2.msra.mxu0 0.0
      %603 = vmatprep.subr.mxu0 0.0
      %604 = vmatpush2.msra.mxu0 0.0
      %605 = vmatprep.subr.mxu0 0.0
      %606 = vmatpush2.msra.mxu0 0.0
      %607 = vmatprep.subr.mxu0 0.0
      %608 = vmatpush2.msra.mxu0 0.0
      %609 = vmatprep.subr.mxu0 0.0
      %610 = vmatpush2.msra.mxu0 0.0
      %611 = vmatprep.subr.mxu0 0.0
      %612 = vmatpush2.msra.mxu0 0.0
      %613 = vmatprep.subr.mxu0 0.0
      %614 = vmatpush2.msra.mxu0 0.0
      %615 = vmatprep.subr.mxu0 0.0
      %616 = vmatpush2.msra.mxu0 0.0
      %617 = vmatprep.subr.mxu0 0.0
      %618 = vmatpush2.msra.mxu0 0.0
      %619 = vmatprep.subr.mxu0 0.0
      %620 = vmatpush2.msra.mxu0 0.0
      %621 = vmatprep.mubr.f32.mxu0 0.0
      %622 = vmatmul.mubr.f32.gmra.mxu0 %v552
      %v623 = vpop.f32.mrf.mxu0
      %v624 = vadd.f32 %v549, %v623
      %v625 = vpop.f32.mrf.mxu0
      %626 = vmatprep.mubr.f32.mxu0 0.0
      %627 = vmatmul.mubr.f32.gmra.mxu0 %v555
      %v628 = vpop.f32.mrf.mxu0
      %v629 = vadd.f32 %v549, %v628
      %v630 = vpop.f32.mrf.mxu0
      %631 = vdwg.mxu0
      %v632 = vmul.f32 %v624, 0.35355338
      %v633 = vmul.f32 %v629, 0.35355338
      %636 = vrot.lane.b32.xlu0 %v624, 96
      %v637 = vpop.permute.xlu0 %636
      %638 = vrot.lane.b32.xlu0 %v629, 96
      %v639 = vpop.permute.xlu0 %638
      %vm640 = vcmask 64512
      %v642 = vsel %vm640, %v632, 0
      %v645 = vsel %vm640, %v633, 0
      %v647 = vsel %vm640, %v637, 0
      %v649 = vsel %vm640, %v639, 0
      %651 = vmatprep.subr.mxu0 0.0
      %652 = vmatpush1.xpose.msra.mxu0 0.0
      %653 = vmatprep.subr.mxu0 0.0
      %654 = vmatpush1.xpose.msra.mxu0 0.0
      %655 = vmatprep.subr.mxu0 0.0
      %656 = vmatpush1.xpose.msra.mxu0 0.0
      %657 = vmatprep.subr.mxu0 0.0
      %658 = vmatpush1.xpose.msra.mxu0 0.0
      %659 = vmatprep.subr.mxu0 0.0
      %660 = vmatpush1.xpose.msra.mxu0 0.0
      %661 = vmatprep.subr.mxu0 0.0
      %662 = vmatpush1.xpose.msra.mxu0 0.0
      %663 = vmatprep.subr.mxu0 0.0
      %664 = vmatpush1.xpose.msra.mxu0 0.0
      %665 = vmatprep.subr.mxu0 0.0
      %666 = vmatpush1.xpose.msra.mxu0 0.0
      %667 = vmatprep.subr.mxu0 0.0
      %668 = vmatpush1.xpose.msra.mxu0 0.0
      %669 = vmatprep.subr.mxu0 0.0
      %670 = vmatpush1.xpose.msra.mxu0 0.0
      %671 = vmatprep.subr.mxu0 0.0
      %672 = vmatpush1.xpose.msra.mxu0 0.0
      %673 = vmatprep.subr.mxu0 0.0
      %674 = vmatpush1.xpose.msra.mxu0 0.0
      %675 = vmatprep.subr.mxu0 0.0
      %676 = vmatpush1.xpose.msra.mxu0 0.0
      %677 = vmatprep.subr.mxu0 0.0
      %678 = vmatpush1.xpose.msra.mxu0 0.0
      %679 = vmatprep.subr.mxu0 0.0
      %680 = vmatpush1.xpose.msra.mxu0 %v649
      %681 = vmatprep.subr.mxu0 0.0
      %682 = vmatpush1.xpose.msra.mxu0 %v647
      %683 = vmatprep.subr.mxu0 0.0
      %684 = vmatpush2.xpose.msra.mxu0 0.0
      %685 = vmatprep.subr.mxu0 0.0
      %686 = vmatpush2.xpose.msra.mxu0 0.0
      %687 = vmatprep.subr.mxu0 0.0
      %688 = vmatpush2.xpose.msra.mxu0 0.0
      %689 = vmatprep.subr.mxu0 0.0
      %690 = vmatpush2.xpose.msra.mxu0 0.0
      %691 = vmatprep.subr.mxu0 0.0
      %692 = vmatpush2.xpose.msra.mxu0 0.0
      %693 = vmatprep.subr.mxu0 0.0
      %694 = vmatpush2.xpose.msra.mxu0 0.0
      %695 = vmatprep.subr.mxu0 0.0
      %696 = vmatpush2.xpose.msra.mxu0 0.0
      %697 = vmatprep.subr.mxu0 0.0
      %698 = vmatpush2.xpose.msra.mxu0 0.0
      %699 = vmatprep.subr.mxu0 0.0
      %700 = vmatpush2.xpose.msra.mxu0 0.0
      %701 = vmatprep.subr.mxu0 0.0
      %702 = vmatpush2.xpose.msra.mxu0 0.0
      %703 = vmatprep.subr.mxu0 0.0
      %704 = vmatpush2.xpose.msra.mxu0 0.0
      %705 = vmatprep.subr.mxu0 0.0
      %706 = vmatpush2.xpose.msra.mxu0 0.0
      %707 = vmatprep.subr.mxu0 0.0
      %708 = vmatpush2.xpose.msra.mxu0 0.0
      %709 = vmatprep.subr.mxu0 0.0
      %710 = vmatpush2.xpose.msra.mxu0 0.0
      %711 = vmatprep.subr.mxu0 0.0
      %712 = vmatpush2.xpose.msra.mxu0 0.0
      %713 = vmatprep.subr.mxu0 0.0
      %714 = vmatpush2.xpose.msra.mxu0 0.0
      %715 = vmatprep.mubr.f32.mxu0 0.0
      %716 = vmatmul.mubr.f32.gmra.mxu0 %v642
      %v717 = vpop.f32.mrf.mxu0
      %v718 = vadd.f32 0.0, %v717
      %v719 = vpop.f32.mrf.mxu0
      %720 = vmatprep.mubr.f32.mxu0 0.0
      %721 = vmatmul.mubr.f32.gmra.mxu0 %v645
      %v722 = vpop.f32.mrf.mxu0
      %v723 = vadd.f32 0.0, %v722
      %v724 = vpop.f32.mrf.mxu0
      %725 = vdwg.mxu0
      %vm726 = vcmask 130048
      %v727 = vsel %vm726, %v718, -inf
      %728 = vmax.xlane.f32.xlu0 %v727
      %v729 = vpop.xlane.xlu0 %728
      %v730 = vsel %vm726, %v723, -inf
      %731 = vmax.xlane.f32.xlu0 %v730
      %v732 = vpop.xlane.xlu0 %731
      %v733 = vsub.f32 %v718, %v729
      %v734 = vsub.f32 %v723, %v732
      %v735 = vmul.f32 %v733, 1.442695
      %v736 = vpow.pop %v735
      %v737 = vmul.f32 %v734, 1.442695
      %v738 = vpow.pop %v737
      %v739 = vsel %vm726, %v736, 0.0
      %740 = vadd.xlane.f32.xlu0 %v739
      %v741 = vpop.xlane.xlu0 %740
      %v742 = vsel %vm726, %v738, 0.0
      %743 = vadd.xlane.f32.xlu0 %v742
      %v744 = vpop.xlane.xlu0 %743
      %v745 = vrcp.pop %v741
      %v746 = vrcp.pop %v744
      %v747 = vmul.f32 %v736, %v745
      %v748 = vmul.f32 %v738, %v746
      %749 = vrot.lane.b32.xlu0 %v624, 64
      %v750 = vpop.permute.xlu0 %749
      %751 = vrot.lane.b32.xlu0 %v629, 64
      %v752 = vpop.permute.xlu0 %751
      %v756 = vsel %vm726, %v747, 0
      %v759 = vsel %vm726, %v748, 0
      %761 = vmatprep.subr.mxu0 0.0
      %762 = vmatpush1.msra.mxu0 0.0
      %763 = vmatprep.subr.mxu0 0.0
      %764 = vmatpush1.msra.mxu0 0.0
      %765 = vmatprep.subr.mxu0 0.0
      %766 = vmatpush1.msra.mxu0 0.0
      %767 = vmatprep.subr.mxu0 0.0
      %768 = vmatpush1.msra.mxu0 0.0
      %769 = vmatprep.subr.mxu0 0.0
      %770 = vmatpush1.msra.mxu0 0.0
      %771 = vmatprep.subr.mxu0 0.0
      %772 = vmatpush1.msra.mxu0 0.0
      %773 = vmatprep.subr.mxu0 0.0
      %774 = vmatpush1.msra.mxu0 0.0
      %775 = vmatprep.subr.mxu0 0.0
      %776 = vmatpush1.msra.mxu0 0.0
      %777 = vmatprep.subr.mxu0 0.0
      %778 = vmatpush1.msra.mxu0 0.0
      %779 = vmatprep.subr.mxu0 0.0
      %780 = vmatpush1.msra.mxu0 0.0
      %781 = vmatprep.subr.mxu0 0.0
      %782 = vmatpush1.msra.mxu0 0.0
      %783 = vmatprep.subr.mxu0 0.0
      %784 = vmatpush1.msra.mxu0 0.0
      %785 = vmatprep.subr.mxu0 0.0
      %786 = vmatpush1.msra.mxu0 0.0
      %787 = vmatprep.subr.mxu0 0.0
      %788 = vmatpush1.msra.mxu0 0.0
      %789 = vmatprep.subr.mxu0 0.0
      %790 = vmatpush1.msra.mxu0 %v752
      %791 = vmatprep.subr.mxu0 0.0
      %792 = vmatpush1.msra.mxu0 %v750
      %793 = vmatprep.subr.mxu0 0.0
      %794 = vmatpush2.msra.mxu0 0.0
      %795 = vmatprep.subr.mxu0 0.0
      %796 = vmatpush2.msra.mxu0 0.0
      %797 = vmatprep.subr.mxu0 0.0
      %798 = vmatpush2.msra.mxu0 0.0
      %799 = vmatprep.subr.mxu0 0.0
      %800 = vmatpush2.msra.mxu0 0.0
      %801 = vmatprep.subr.mxu0 0.0
      %802 = vmatpush2.msra.mxu0 0.0
      %803 = vmatprep.subr.mxu0 0.0
      %804 = vmatpush2.msra.mxu0 0.0
      %805 = vmatprep.subr.mxu0 0.0
      %806 = vmatpush2.msra.mxu0 0.0
      %807 = vmatprep.subr.mxu0 0.0
      %808 = vmatpush2.msra.mxu0 0.0
      %809 = vmatprep.subr.mxu0 0.0
      %810 = vmatpush2.msra.mxu0 0.0
      %811 = vmatprep.subr.mxu0 0.0
      %812 = vmatpush2.msra.mxu0 0.0
      %813 = vmatprep.subr.mxu0 0.0
      %814 = vmatpush2.msra.mxu0 0.0
      %815 = vmatprep.subr.mxu0 0.0
      %816 = vmatpush2.msra.mxu0 0.0
      %817 = vmatprep.subr.mxu0 0.0
      %818 = vmatpush2.msra.mxu0 0.0
      %819 = vmatprep.subr.mxu0 0.0
      %820 = vmatpush2.msra.mxu0 0.0
      %821 = vmatprep.subr.mxu0 0.0
      %822 = vmatpush2.msra.mxu0 0.0
      %823 = vmatprep.subr.mxu0 0.0
      %824 = vmatpush2.msra.mxu0 0.0
      %825 = vmatprep.mubr.f32.mxu0 0.0
      %826 = vmatmul.mubr.f32.gmra.mxu0 %v756
      %v827 = vpop.f32.mrf.mxu0
      %v828 = vadd.f32 0.0, %v827
      %v829 = vpop.f32.mrf.mxu0
      %830 = vmatprep.mubr.f32.mxu0 0.0
      %831 = vmatmul.mubr.f32.gmra.mxu0 %v759
      %v832 = vpop.f32.mrf.mxu0
      %v833 = vadd.f32 0.0, %v832
      %v834 = vpop.f32.mrf.mxu0
      %835 = vdwg.mxu0
      %v836 = vld [vmem:[%s6] sm:$0xff]
      %837 = vrot.lane.b32.xlu0 %v632, 120
      %v838 = vpop.permute.xlu0 %837
      %839 = vrot.lane.b32.xlu0 %v633, 120
      %v840 = vpop.permute.xlu0 %839
      %841 = vrot.lane.b32.xlu0 %v624, 88
      %v842 = vpop.permute.xlu0 %841
      %843 = vrot.lane.b32.xlu0 %v629, 88
      %v844 = vpop.permute.xlu0 %843
      %v845 = vsel %vm640, %v838, 0
      %v847 = vsel %vm640, %v840, 0
      %v849 = vsel %vm640, %v842, 0
      %v851 = vsel %vm640, %v844, 0
      %853 = vmatprep.subr.mxu0 0.0
      %854 = vmatpush1.xpose.msra.mxu0 0.0
      %855 = vmatprep.subr.mxu0 0.0
      %856 = vmatpush1.xpose.msra.mxu0 0.0
      %857 = vmatprep.subr.mxu0 0.0
      %858 = vmatpush1.xpose.msra.mxu0 0.0
      %859 = vmatprep.subr.mxu0 0.0
      %860 = vmatpush1.xpose.msra.mxu0 0.0
      %861 = vmatprep.subr.mxu0 0.0
      %862 = vmatpush1.xpose.msra.mxu0 0.0
      %863 = vmatprep.subr.mxu0 0.0
      %864 = vmatpush1.xpose.msra.mxu0 0.0
      %865 = vmatprep.subr.mxu0 0.0
      %866 = vmatpush1.xpose.msra.mxu0 0.0
      %867 = vmatprep.subr.mxu0 0.0
      %868 = vmatpush1.xpose.msra.mxu0 0.0
      %869 = vmatprep.subr.mxu0 0.0
      %870 = vmatpush1.xpose.msra.mxu0 0.0
      %871 = vmatprep.subr.mxu0 0.0
      %872 = vmatpush1.xpose.msra.mxu0 0.0
      %873 = vmatprep.subr.mxu0 0.0
      %874 = vmatpush1.xpose.msra.mxu0 0.0
      %875 = vmatprep.subr.mxu0 0.0
      %876 = vmatpush1.xpose.msra.mxu0 0.0
      %877 = vmatprep.subr.mxu0 0.0
      %878 = vmatpush1.xpose.msra.mxu0 0.0
      %879 = vmatprep.subr.mxu0 0.0
      %880 = vmatpush1.xpose.msra.mxu0 0.0
      %881 = vmatprep.subr.mxu0 0.0
      %882 = vmatpush1.xpose.msra.mxu0 %v851
      %883 = vmatprep.subr.mxu0 0.0
      %884 = vmatpush1.xpose.msra.mxu0 %v849
      %885 = vmatprep.subr.mxu0 0.0
      %886 = vmatpush2.xpose.msra.mxu0 0.0
      %887 = vmatprep.subr.mxu0 0.0
      %888 = vmatpush2.xpose.msra.mxu0 0.0
      %889 = vmatprep.subr.mxu0 0.0
      %890 = vmatpush2.xpose.msra.mxu0 0.0
      %891 = vmatprep.subr.mxu0 0.0
      %892 = vmatpush2.xpose.msra.mxu0 0.0
      %893 = vmatprep.subr.mxu0 0.0
      %894 = vmatpush2.xpose.msra.mxu0 0.0
      %895 = vmatprep.subr.mxu0 0.0
      %896 = vmatpush2.xpose.msra.mxu0 0.0
      %897 = vmatprep.subr.mxu0 0.0
      %898 = vmatpush2.xpose.msra.mxu0 0.0
      %899 = vmatprep.subr.mxu0 0.0
      %900 = vmatpush2.xpose.msra.mxu0 0.0
      %901 = vmatprep.subr.mxu0 0.0
      %902 = vmatpush2.xpose.msra.mxu0 0.0
      %903 = vmatprep.subr.mxu0 0.0
      %904 = vmatpush2.xpose.msra.mxu0 0.0
      %905 = vmatprep.subr.mxu0 0.0
      %906 = vmatpush2.xpose.msra.mxu0 0.0
      %907 = vmatprep.subr.mxu0 0.0
      %908 = vmatpush2.xpose.msra.mxu0 0.0
      %909 = vmatprep.subr.mxu0 0.0
      %910 = vmatpush2.xpose.msra.mxu0 0.0
      %911 = vmatprep.subr.mxu0 0.0
      %912 = vmatpush2.xpose.msra.mxu0 0.0
      %913 = vmatprep.subr.mxu0 0.0
      %914 = vmatpush2.xpose.msra.mxu0 0.0
      %915 = vmatprep.subr.mxu0 0.0
      %916 = vmatpush2.xpose.msra.mxu0 0.0
      %917 = vmatprep.mubr.f32.mxu0 0.0
      %918 = vmatmul.mubr.f32.gmra.mxu0 %v845
      %v919 = vpop.f32.mrf.mxu0
      %v920 = vadd.f32 0.0, %v919
      %v921 = vpop.f32.mrf.mxu0
      %922 = vmatprep.mubr.f32.mxu0 0.0
      %923 = vmatmul.mubr.f32.gmra.mxu0 %v847
      %v924 = vpop.f32.mrf.mxu0
      %v925 = vadd.f32 0.0, %v924
      %v926 = vpop.f32.mrf.mxu0
      %927 = vdwg.mxu0
      %v928 = vsel %vm726, %v920, -inf
      %929 = vmax.xlane.f32.xlu0 %v928
      %v930 = vpop.xlane.xlu0 %929
      %v931 = vsel %vm726, %v925, -inf
      %932 = vmax.xlane.f32.xlu0 %v931
      %v933 = vpop.xlane.xlu0 %932
      %v934 = vsub.f32 %v920, %v930
      %v935 = vsub.f32 %v925, %v933
      %v936 = vmul.f32 %v934, 1.442695
      %v937 = vpow.pop %v936
      %v938 = vmul.f32 %v935, 1.442695
      %v939 = vpow.pop %v938
      %v940 = vsel %vm726, %v937, 0.0
      %941 = vadd.xlane.f32.xlu0 %v940
      %v942 = vpop.xlane.xlu0 %941
      %v943 = vsel %vm726, %v939, 0.0
      %944 = vadd.xlane.f32.xlu0 %v943
      %v945 = vpop.xlane.xlu0 %944
      %v946 = vrcp.pop %v942
      %v947 = vrcp.pop %v945
      %v948 = vmul.f32 %v937, %v946
      %v949 = vmul.f32 %v939, %v947
      %950 = vrot.lane.b32.xlu0 %v624, 56
      %v951 = vpop.permute.xlu0 %950
      %952 = vrot.lane.b32.xlu0 %v629, 56
      %v953 = vpop.permute.xlu0 %952
      %v957 = vsel %vm726, %v948, 0
      %v960 = vsel %vm726, %v949, 0
      %962 = vmatprep.subr.mxu0 0.0
      %963 = vmatpush1.msra.mxu0 0.0
      %964 = vmatprep.subr.mxu0 0.0
      %965 = vmatpush1.msra.mxu0 0.0
      %966 = vmatprep.subr.mxu0 0.0
      %967 = vmatpush1.msra.mxu0 0.0
      %968 = vmatprep.subr.mxu0 0.0
      %969 = vmatpush1.msra.mxu0 0.0
      %970 = vmatprep.subr.mxu0 0.0
      %971 = vmatpush1.msra.mxu0 0.0
      %972 = vmatprep.subr.mxu0 0.0
      %973 = vmatpush1.msra.mxu0 0.0
      %974 = vmatprep.subr.mxu0 0.0
      %975 = vmatpush1.msra.mxu0 0.0
      %976 = vmatprep.subr.mxu0 0.0
      %977 = vmatpush1.msra.mxu0 0.0
      %978 = vmatprep.subr.mxu0 0.0
      %979 = vmatpush1.msra.mxu0 0.0
      %980 = vmatprep.subr.mxu0 0.0
      %981 = vmatpush1.msra.mxu0 0.0
      %982 = vmatprep.subr.mxu0 0.0
      %983 = vmatpush1.msra.mxu0 0.0
      %984 = vmatprep.subr.mxu0 0.0
      %985 = vmatpush1.msra.mxu0 0.0
      %986 = vmatprep.subr.mxu0 0.0
      %987 = vmatpush1.msra.mxu0 0.0
      %988 = vmatprep.subr.mxu0 0.0
      %989 = vmatpush1.msra.mxu0 0.0
      %990 = vmatprep.subr.mxu0 0.0
      %991 = vmatpush1.msra.mxu0 %v953
      %992 = vmatprep.subr.mxu0 0.0
      %993 = vmatpush1.msra.mxu0 %v951
      %994 = vmatprep.subr.mxu0 0.0
      %995 = vmatpush2.msra.mxu0 0.0
      %996 = vmatprep.subr.mxu0 0.0
      %997 = vmatpush2.msra.mxu0 0.0
      %998 = vmatprep.subr.mxu0 0.0
      %999 = vmatpush2.msra.mxu0 0.0
      %1000 = vmatprep.subr.mxu0 0.0
      %1001 = vmatpush2.msra.mxu0 0.0
      %1002 = vmatprep.subr.mxu0 0.0
      %1003 = vmatpush2.msra.mxu0 0.0
      %1004 = vmatprep.subr.mxu0 0.0
      %1005 = vmatpush2.msra.mxu0 0.0
      %1006 = vmatprep.subr.mxu0 0.0
      %1007 = vmatpush2.msra.mxu0 0.0
      %1008 = vmatprep.subr.mxu0 0.0
      %1009 = vmatpush2.msra.mxu0 0.0
      %1010 = vmatprep.subr.mxu0 0.0
      %1011 = vmatpush2.msra.mxu0 0.0
      %1012 = vmatprep.subr.mxu0 0.0
      %1013 = vmatpush2.msra.mxu0 0.0
      %1014 = vmatprep.subr.mxu0 0.0
      %1015 = vmatpush2.msra.mxu0 0.0
      %1016 = vmatprep.subr.mxu0 0.0
      %1017 = vmatpush2.msra.mxu0 0.0
      %1018 = vmatprep.subr.mxu0 0.0
      %1019 = vmatpush2.msra.mxu0 0.0
      %1020 = vmatprep.subr.mxu0 0.0
      %1021 = vmatpush2.msra.mxu0 0.0
      %1022 = vmatprep.subr.mxu0 0.0
      %1023 = vmatpush2.msra.mxu0 0.0
      %1024 = vmatprep.subr.mxu0 0.0
      %1025 = vmatpush2.msra.mxu0 0.0
      %1026 = vmatprep.mubr.f32.mxu0 0.0
      %1027 = vmatmul.mubr.f32.gmra.mxu0 %v957
      %v1028 = vpop.f32.mrf.mxu0
      %v1029 = vadd.f32 0.0, %v1028
      %v1030 = vpop.f32.mrf.mxu0
      %1031 = vmatprep.mubr.f32.mxu0 0.0
      %1032 = vmatmul.mubr.f32.gmra.mxu0 %v960
      %v1033 = vpop.f32.mrf.mxu0
      %v1034 = vadd.f32 0.0, %v1033
      %v1035 = vpop.f32.mrf.mxu0
      %1036 = vdwg.mxu0
      %v1037 = vld [vmem:[%s6 + $0x8] sm:$0xff]
      %v1039 = vsel %vm640, %v1029, 0
      %v1042 = vsel %vm640, %v1034, 0
      %1044 = vmatprep.subr.mxu0 0.0
      %1045 = vmatpush1.msra.mxu0 0.0
      %1046 = vmatprep.subr.mxu0 0.0
      %1047 = vmatpush1.msra.mxu0 0.0
      %1048 = vmatprep.subr.mxu0 0.0
      %1049 = vmatpush1.msra.mxu0 0.0
      %1050 = vmatprep.subr.mxu0 0.0
      %1051 = vmatpush1.msra.mxu0 0.0
      %1052 = vmatprep.subr.mxu0 0.0
      %1053 = vmatpush1.msra.mxu0 0.0
      %1054 = vmatprep.subr.mxu0 0.0
      %1055 = vmatpush1.msra.mxu0 0.0
      %1056 = vmatprep.subr.mxu0 0.0
      %1057 = vmatpush1.msra.mxu0 0.0
      %1058 = vmatprep.subr.mxu0 0.0
      %1059 = vmatpush1.msra.mxu0 0.0
      %1060 = vmatprep.subr.mxu0 0.0
      %1061 = vmatpush1.msra.mxu0 0.0
      %1062 = vmatprep.subr.mxu0 0.0
      %1063 = vmatpush1.msra.mxu0 0.0
      %1064 = vmatprep.subr.mxu0 0.0
      %1065 = vmatpush1.msra.mxu0 0.0
      %1066 = vmatprep.subr.mxu0 0.0
      %1067 = vmatpush1.msra.mxu0 0.0
      %1068 = vmatprep.subr.mxu0 0.0
      %1069 = vmatpush1.msra.mxu0 0.0
      %1070 = vmatprep.subr.mxu0 0.0
      %1071 = vmatpush1.msra.mxu0 0.0
      %1072 = vmatprep.subr.mxu0 0.0
      %1073 = vmatpush1.msra.mxu0 0.0
      %1074 = vmatprep.subr.mxu0 0.0
      %1075 = vmatpush1.msra.mxu0 %v1037
      %1076 = vmatprep.subr.mxu0 0.0
      %1077 = vmatpush2.msra.mxu0 0.0
      %1078 = vmatprep.subr.mxu0 0.0
      %1079 = vmatpush2.msra.mxu0 0.0
      %1080 = vmatprep.subr.mxu0 0.0
      %1081 = vmatpush2.msra.mxu0 0.0
      %1082 = vmatprep.subr.mxu0 0.0
      %1083 = vmatpush2.msra.mxu0 0.0
      %1084 = vmatprep.subr.mxu0 0.0
      %1085 = vmatpush2.msra.mxu0 0.0
      %1086 = vmatprep.subr.mxu0 0.0
      %1087 = vmatpush2.msra.mxu0 0.0
      %1088 = vmatprep.subr.mxu0 0.0
      %1089 = vmatpush2.msra.mxu0 0.0
      %1090 = vmatprep.subr.mxu0 0.0
      %1091 = vmatpush2.msra.mxu0 0.0
      %1092 = vmatprep.subr.mxu0 0.0
      %1093 = vmatpush2.msra.mxu0 0.0
      %1094 = vmatprep.subr.mxu0 0.0
      %1095 = vmatpush2.msra.mxu0 0.0
      %1096 = vmatprep.subr.mxu0 0.0
      %1097 = vmatpush2.msra.mxu0 0.0
      %1098 = vmatprep.subr.mxu0 0.0
      %1099 = vmatpush2.msra.mxu0 0.0
      %1100 = vmatprep.subr.mxu0 0.0
      %1101 = vmatpush2.msra.mxu0 0.0
      %1102 = vmatprep.subr.mxu0 0.0
      %1103 = vmatpush2.msra.mxu0 0.0
      %1104 = vmatprep.subr.mxu0 0.0
      %1105 = vmatpush2.msra.mxu0 0.0
      %1106 = vmatprep.subr.mxu0 0.0
      %1107 = vmatpush2.msra.mxu0 0.0
      %1108 = vmatprep.mubr.f32.mxu0 0.0
      %1109 = vmatmul.mubr.f32.gmra.mxu0 %v1039
      %v1110 = vpop.f32.mrf.mxu0
      %v1111 = vadd.f32 0.0, %v1110
      %v1112 = vpop.f32.mrf.mxu0
      %1113 = vmatprep.mubr.f32.mxu0 0.0
      %1114 = vmatmul.mubr.f32.gmra.mxu0 %v1042
      %v1115 = vpop.f32.mrf.mxu0
      %v1116 = vadd.f32 0.0, %v1115
      %v1117 = vpop.f32.mrf.mxu0
      %1118 = vdwg.mxu0
      %v1120 = vsel %vm640, %v828, 0
      %v1123 = vsel %vm640, %v833, 0
      %1125 = vmatprep.subr.mxu0 0.0
      %1126 = vmatpush1.msra.mxu0 0.0
      %1127 = vmatprep.subr.mxu0 0.0
      %1128 = vmatpush1.msra.mxu0 0.0
      %1129 = vmatprep.subr.mxu0 0.0
      %1130 = vmatpush1.msra.mxu0 0.0
      %1131 = vmatprep.subr.mxu0 0.0
      %1132 = vmatpush1.msra.mxu0 0.0
      %1133 = vmatprep.subr.mxu0 0.0
      %1134 = vmatpush1.msra.mxu0 0.0
      %1135 = vmatprep.subr.mxu0 0.0
      %1136 = vmatpush1.msra.mxu0 0.0
      %1137 = vmatprep.subr.mxu0 0.0
      %1138 = vmatpush1.msra.mxu0 0.0
      %1139 = vmatprep.subr.mxu0 0.0
      %1140 = vmatpush1.msra.mxu0 0.0
      %1141 = vmatprep.subr.mxu0 0.0
      %1142 = vmatpush1.msra.mxu0 0.0
      %1143 = vmatprep.subr.mxu0 0.0
      %1144 = vmatpush1.msra.mxu0 0.0
      %1145 = vmatprep.subr.mxu0 0.0
      %1146 = vmatpush1.msra.mxu0 0.0
      %1147 = vmatprep.subr.mxu0 0.0
      %1148 = vmatpush1.msra.mxu0 0.0
      %1149 = vmatprep.subr.mxu0 0.0
      %1150 = vmatpush1.msra.mxu0 0.0
      %1151 = vmatprep.subr.mxu0 0.0
      %1152 = vmatpush1.msra.mxu0 0.0
      %1153 = vmatprep.subr.mxu0 0.0
      %1154 = vmatpush1.msra.mxu0 0.0
      %1155 = vmatprep.subr.mxu0 0.0
      %1156 = vmatpush1.msra.mxu0 %v836
      %1157 = vmatprep.subr.mxu0 0.0
      %1158 = vmatpush2.msra.mxu0 0.0
      %1159 = vmatprep.subr.mxu0 0.0
      %1160 = vmatpush2.msra.mxu0 0.0
      %1161 = vmatprep.subr.mxu0 0.0
      %1162 = vmatpush2.msra.mxu0 0.0
      %1163 = vmatprep.subr.mxu0 0.0
      %1164 = vmatpush2.msra.mxu0 0.0
      %1165 = vmatprep.subr.mxu0 0.0
      %1166 = vmatpush2.msra.mxu0 0.0
      %1167 = vmatprep.subr.mxu0 0.0
      %1168 = vmatpush2.msra.mxu0 0.0
      %1169 = vmatprep.subr.mxu0 0.0
      %1170 = vmatpush2.msra.mxu0 0.0
      %1171 = vmatprep.subr.mxu0 0.0
      %1172 = vmatpush2.msra.mxu0 0.0
      %1173 = vmatprep.subr.mxu0 0.0
      %1174 = vmatpush2.msra.mxu0 0.0
      %1175 = vmatprep.subr.mxu0 0.0
      %1176 = vmatpush2.msra.mxu0 0.0
      %1177 = vmatprep.subr.mxu0 0.0
      %1178 = vmatpush2.msra.mxu0 0.0
      %1179 = vmatprep.subr.mxu0 0.0
      %1180 = vmatpush2.msra.mxu0 0.0
      %1181 = vmatprep.subr.mxu0 0.0
      %1182 = vmatpush2.msra.mxu0 0.0
      %1183 = vmatprep.subr.mxu0 0.0
      %1184 = vmatpush2.msra.mxu0 0.0
      %1185 = vmatprep.subr.mxu0 0.0
      %1186 = vmatpush2.msra.mxu0 0.0
      %1187 = vmatprep.subr.mxu0 0.0
      %1188 = vmatpush2.msra.mxu0 0.0
      %1189 = vmatprep.mubr.f32.mxu0 0.0
      %1190 = vmatmul.mubr.f32.gmra.mxu0 %v1120
      %v1191 = vpop.f32.mrf.mxu0
      %v1192 = vadd.f32 %v1111, %v1191
      %v1193 = vpop.f32.mrf.mxu0
      %1194 = vmatprep.mubr.f32.mxu0 0.0
      %1195 = vmatmul.mubr.f32.gmra.mxu0 %v1123
      %v1196 = vpop.f32.mrf.mxu0
      %v1197 = vadd.f32 %v1116, %v1196
      %v1198 = vpop.f32.mrf.mxu0
      %1199 = vdwg.mxu0
      %1200 = vrot.lane.b32.xlu0 %v632, 112
      %v1201 = vpop.permute.xlu0 %1200
      %1202 = vrot.lane.b32.xlu0 %v633, 112
      %v1203 = vpop.permute.xlu0 %1202
      %1204 = vrot.lane.b32.xlu0 %v624, 80
      %v1205 = vpop.permute.xlu0 %1204
      %1206 = vrot.lane.b32.xlu0 %v629, 80
      %v1207 = vpop.permute.xlu0 %1206
      %v1208 = vsel %vm640, %v1201, 0
      %v1210 = vsel %vm640, %v1203, 0
      %v1212 = vsel %vm640, %v1205, 0
      %v1214 = vsel %vm640, %v1207, 0
      %1216 = vmatprep.subr.mxu0 0.0
      %1217 = vmatpush1.xpose.msra.mxu0 0.0
      %1218 = vmatprep.subr.mxu0 0.0
      %1219 = vmatpush1.xpose.msra.mxu0 0.0
      %1220 = vmatprep.subr.mxu0 0.0
      %1221 = vmatpush1.xpose.msra.mxu0 0.0
      %1222 = vmatprep.subr.mxu0 0.0
      %1223 = vmatpush1.xpose.msra.mxu0 0.0
      %1224 = vmatprep.subr.mxu0 0.0
      %1225 = vmatpush1.xpose.msra.mxu0 0.0
      %1226 = vmatprep.subr.mxu0 0.0
      %1227 = vmatpush1.xpose.msra.mxu0 0.0
      %1228 = vmatprep.subr.mxu0 0.0
      %1229 = vmatpush1.xpose.msra.mxu0 0.0
      %1230 = vmatprep.subr.mxu0 0.0
      %1231 = vmatpush1.xpose.msra.mxu0 0.0
      %1232 = vmatprep.subr.mxu0 0.0
      %1233 = vmatpush1.xpose.msra.mxu0 0.0
      %1234 = vmatprep.subr.mxu0 0.0
      %1235 = vmatpush1.xpose.msra.mxu0 0.0
      %1236 = vmatprep.subr.mxu0 0.0
      %1237 = vmatpush1.xpose.msra.mxu0 0.0
      %1238 = vmatprep.subr.mxu0 0.0
      %1239 = vmatpush1.xpose.msra.mxu0 0.0
      %1240 = vmatprep.subr.mxu0 0.0
      %1241 = vmatpush1.xpose.msra.mxu0 0.0
      %1242 = vmatprep.subr.mxu0 0.0
      %1243 = vmatpush1.xpose.msra.mxu0 0.0
      %1244 = vmatprep.subr.mxu0 0.0
      %1245 = vmatpush1.xpose.msra.mxu0 %v1214
      %1246 = vmatprep.subr.mxu0 0.0
      %1247 = vmatpush1.xpose.msra.mxu0 %v1212
      %1248 = vmatprep.subr.mxu0 0.0
      %1249 = vmatpush2.xpose.msra.mxu0 0.0
      %1250 = vmatprep.subr.mxu0 0.0
      %1251 = vmatpush2.xpose.msra.mxu0 0.0
      %1252 = vmatprep.subr.mxu0 0.0
      %1253 = vmatpush2.xpose.msra.mxu0 0.0
      %1254 = vmatprep.subr.mxu0 0.0
      %1255 = vmatpush2.xpose.msra.mxu0 0.0
      %1256 = vmatprep.subr.mxu0 0.0
      %1257 = vmatpush2.xpose.msra.mxu0 0.0
      %1258 = vmatprep.subr.mxu0 0.0
      %1259 = vmatpush2.xpose.msra.mxu0 0.0
      %1260 = vmatprep.subr.mxu0 0.0
      %1261 = vmatpush2.xpose.msra.mxu0 0.0
      %1262 = vmatprep.subr.mxu0 0.0
      %1263 = vmatpush2.xpose.msra.mxu0 0.0
      %1264 = vmatprep.subr.mxu0 0.0
      %1265 = vmatpush2.xpose.msra.mxu0 0.0
      %1266 = vmatprep.subr.mxu0 0.0
      %1267 = vmatpush2.xpose.msra.mxu0 0.0
      %1268 = vmatprep.subr.mxu0 0.0
      %1269 = vmatpush2.xpose.msra.mxu0 0.0
      %1270 = vmatprep.subr.mxu0 0.0
      %1271 = vmatpush2.xpose.msra.mxu0 0.0
      %1272 = vmatprep.subr.mxu0 0.0
      %1273 = vmatpush2.xpose.msra.mxu0 0.0
      %1274 = vmatprep.subr.mxu0 0.0
      %1275 = vmatpush2.xpose.msra.mxu0 0.0
      %1276 = vmatprep.subr.mxu0 0.0
      %1277 = vmatpush2.xpose.msra.mxu0 0.0
      %1278 = vmatprep.subr.mxu0 0.0
      %1279 = vmatpush2.xpose.msra.mxu0 0.0
      %1280 = vmatprep.mubr.f32.mxu0 0.0
      %1281 = vmatmul.mubr.f32.gmra.mxu0 %v1208
      %v1282 = vpop.f32.mrf.mxu0
      %v1283 = vadd.f32 0.0, %v1282
      %v1284 = vpop.f32.mrf.mxu0
      %1285 = vmatprep.mubr.f32.mxu0 0.0
      %1286 = vmatmul.mubr.f32.gmra.mxu0 %v1210
      %v1287 = vpop.f32.mrf.mxu0
      %v1288 = vadd.f32 0.0, %v1287
      %v1289 = vpop.f32.mrf.mxu0
      %1290 = vdwg.mxu0
      %v1291 = vsel %vm726, %v1283, -inf
      %1292 = vmax.xlane.f32.xlu0 %v1291
      %v1293 = vpop.xlane.xlu0 %1292
      %v1294 = vsel %vm726, %v1288, -inf
      %1295 = vmax.xlane.f32.xlu0 %v1294
      %v1296 = vpop.xlane.xlu0 %1295
      %v1297 = vsub.f32 %v1283, %v1293
      %v1298 = vsub.f32 %v1288, %v1296
      %v1299 = vmul.f32 %v1297, 1.442695
      %v1300 = vpow.pop %v1299
      %v1301 = vmul.f32 %v1298, 1.442695
      %v1302 = vpow.pop %v1301
      %v1303 = vsel %vm726, %v1300, 0.0
      %1304 = vadd.xlane.f32.xlu0 %v1303
      %v1305 = vpop.xlane.xlu0 %1304
      %v1306 = vsel %vm726, %v1302, 0.0
      %1307 = vadd.xlane.f32.xlu0 %v1306
      %v1308 = vpop.xlane.xlu0 %1307
      %v1309 = vrcp.pop %v1305
      %v1310 = vrcp.pop %v1308
      %v1311 = vmul.f32 %v1300, %v1309
      %v1312 = vmul.f32 %v1302, %v1310
      %1313 = vrot.lane.b32.xlu0 %v624, 48
      %v1314 = vpop.permute.xlu0 %1313
      %1315 = vrot.lane.b32.xlu0 %v629, 48
      %v1316 = vpop.permute.xlu0 %1315
      %v1320 = vsel %vm726, %v1311, 0
      %v1323 = vsel %vm726, %v1312, 0
      %1325 = vmatprep.subr.mxu0 0.0
      %1326 = vmatpush1.msra.mxu0 0.0
      %1327 = vmatprep.subr.mxu0 0.0
      %1328 = vmatpush1.msra.mxu0 0.0
      %1329 = vmatprep.subr.mxu0 0.0
      %1330 = vmatpush1.msra.mxu0 0.0
      %1331 = vmatprep.subr.mxu0 0.0
      %1332 = vmatpush1.msra.mxu0 0.0
      %1333 = vmatprep.subr.mxu0 0.0
      %1334 = vmatpush1.msra.mxu0 0.0
      %1335 = vmatprep.subr.mxu0 0.0
      %1336 = vmatpush1.msra.mxu0 0.0
      %1337 = vmatprep.subr.mxu0 0.0
      %1338 = vmatpush1.msra.mxu0 0.0
      %1339 = vmatprep.subr.mxu0 0.0
      %1340 = vmatpush1.msra.mxu0 0.0
      %1341 = vmatprep.subr.mxu0 0.0
      %1342 = vmatpush1.msra.mxu0 0.0
      %1343 = vmatprep.subr.mxu0 0.0
      %1344 = vmatpush1.msra.mxu0 0.0
      %1345 = vmatprep.subr.mxu0 0.0
      %1346 = vmatpush1.msra.mxu0 0.0
      %1347 = vmatprep.subr.mxu0 0.0
      %1348 = vmatpush1.msra.mxu0 0.0
      %1349 = vmatprep.subr.mxu0 0.0
      %1350 = vmatpush1.msra.mxu0 0.0
      %1351 = vmatprep.subr.mxu0 0.0
      %1352 = vmatpush1.msra.mxu0 0.0
      %1353 = vmatprep.subr.mxu0 0.0
      %1354 = vmatpush1.msra.mxu0 %v1316
      %1355 = vmatprep.subr.mxu0 0.0
      %1356 = vmatpush1.msra.mxu0 %v1314
      %1357 = vmatprep.subr.mxu0 0.0
      %1358 = vmatpush2.msra.mxu0 0.0
      %1359 = vmatprep.subr.mxu0 0.0
      %1360 = vmatpush2.msra.mxu0 0.0
      %1361 = vmatprep.subr.mxu0 0.0
      %1362 = vmatpush2.msra.mxu0 0.0
      %1363 = vmatprep.subr.mxu0 0.0
      %1364 = vmatpush2.msra.mxu0 0.0
      %1365 = vmatprep.subr.mxu0 0.0
      %1366 = vmatpush2.msra.mxu0 0.0
      %1367 = vmatprep.subr.mxu0 0.0
      %1368 = vmatpush2.msra.mxu0 0.0
      %1369 = vmatprep.subr.mxu0 0.0
      %1370 = vmatpush2.msra.mxu0 0.0
      %1371 = vmatprep.subr.mxu0 0.0
      %1372 = vmatpush2.msra.mxu0 0.0
      %1373 = vmatprep.subr.mxu0 0.0
      %1374 = vmatpush2.msra.mxu0 0.0
      %1375 = vmatprep.subr.mxu0 0.0
      %1376 = vmatpush2.msra.mxu0 0.0
      %1377 = vmatprep.subr.mxu0 0.0
      %1378 = vmatpush2.msra.mxu0 0.0
      %1379 = vmatprep.subr.mxu0 0.0
      %1380 = vmatpush2.msra.mxu0 0.0
      %1381 = vmatprep.subr.mxu0 0.0
      %1382 = vmatpush2.msra.mxu0 0.0
      %1383 = vmatprep.subr.mxu0 0.0
      %1384 = vmatpush2.msra.mxu0 0.0
      %1385 = vmatprep.subr.mxu0 0.0
      %1386 = vmatpush2.msra.mxu0 0.0
      %1387 = vmatprep.subr.mxu0 0.0
      %1388 = vmatpush2.msra.mxu0 0.0
      %1389 = vmatprep.mubr.f32.mxu0 0.0
      %1390 = vmatmul.mubr.f32.gmra.mxu0 %v1320
      %v1391 = vpop.f32.mrf.mxu0
      %v1392 = vadd.f32 0.0, %v1391
      %v1393 = vpop.f32.mrf.mxu0
      %1394 = vmatprep.mubr.f32.mxu0 0.0
      %1395 = vmatmul.mubr.f32.gmra.mxu0 %v1323
      %v1396 = vpop.f32.mrf.mxu0
      %v1397 = vadd.f32 0.0, %v1396
      %v1398 = vpop.f32.mrf.mxu0
      %1399 = vdwg.mxu0
      %v1400 = vld [vmem:[%s6 + $0x10] sm:$0xff]
      %v1402 = vsel %vm640, %v1392, 0
      %v1405 = vsel %vm640, %v1397, 0
      %1407 = vmatprep.subr.mxu0 0.0
      %1408 = vmatpush1.msra.mxu0 0.0
      %1409 = vmatprep.subr.mxu0 0.0
      %1410 = vmatpush1.msra.mxu0 0.0
      %1411 = vmatprep.subr.mxu0 0.0
      %1412 = vmatpush1.msra.mxu0 0.0
      %1413 = vmatprep.subr.mxu0 0.0
      %1414 = vmatpush1.msra.mxu0 0.0
      %1415 = vmatprep.subr.mxu0 0.0
      %1416 = vmatpush1.msra.mxu0 0.0
      %1417 = vmatprep.subr.mxu0 0.0
      %1418 = vmatpush1.msra.mxu0 0.0
      %1419 = vmatprep.subr.mxu0 0.0
      %1420 = vmatpush1.msra.mxu0 0.0
      %1421 = vmatprep.subr.mxu0 0.0
      %1422 = vmatpush1.msra.mxu0 0.0
      %1423 = vmatprep.subr.mxu0 0.0
      %1424 = vmatpush1.msra.mxu0 0.0
      %1425 = vmatprep.subr.mxu0 0.0
      %1426 = vmatpush1.msra.mxu0 0.0
      %1427 = vmatprep.subr.mxu0 0.0
      %1428 = vmatpush1.msra.mxu0 0.0
      %1429 = vmatprep.subr.mxu0 0.0
      %1430 = vmatpush1.msra.mxu0 0.0
      %1431 = vmatprep.subr.mxu0 0.0
      %1432 = vmatpush1.msra.mxu0 0.0
      %1433 = vmatprep.subr.mxu0 0.0
      %1434 = vmatpush1.msra.mxu0 0.0
      %1435 = vmatprep.subr.mxu0 0.0
      %1436 = vmatpush1.msra.mxu0 0.0
      %1437 = vmatprep.subr.mxu0 0.0
      %1438 = vmatpush1.msra.mxu0 %v1400
      %1439 = vmatprep.subr.mxu0 0.0
      %1440 = vmatpush2.msra.mxu0 0.0
      %1441 = vmatprep.subr.mxu0 0.0
      %1442 = vmatpush2.msra.mxu0 0.0
      %1443 = vmatprep.subr.mxu0 0.0
      %1444 = vmatpush2.msra.mxu0 0.0
      %1445 = vmatprep.subr.mxu0 0.0
      %1446 = vmatpush2.msra.mxu0 0.0
      %1447 = vmatprep.subr.mxu0 0.0
      %1448 = vmatpush2.msra.mxu0 0.0
      %1449 = vmatprep.subr.mxu0 0.0
      %1450 = vmatpush2.msra.mxu0 0.0
      %1451 = vmatprep.subr.mxu0 0.0
      %1452 = vmatpush2.msra.mxu0 0.0
      %1453 = vmatprep.subr.mxu0 0.0
      %1454 = vmatpush2.msra.mxu0 0.0
      %1455 = vmatprep.subr.mxu0 0.0
      %1456 = vmatpush2.msra.mxu0 0.0
      %1457 = vmatprep.subr.mxu0 0.0
      %1458 = vmatpush2.msra.mxu0 0.0
      %1459 = vmatprep.subr.mxu0 0.0
      %1460 = vmatpush2.msra.mxu0 0.0
      %1461 = vmatprep.subr.mxu0 0.0
      %1462 = vmatpush2.msra.mxu0 0.0
      %1463 = vmatprep.subr.mxu0 0.0
      %1464 = vmatpush2.msra.mxu0 0.0
      %1465 = vmatprep.subr.mxu0 0.0
      %1466 = vmatpush2.msra.mxu0 0.0
      %1467 = vmatprep.subr.mxu0 0.0
      %1468 = vmatpush2.msra.mxu0 0.0
      %1469 = vmatprep.subr.mxu0 0.0
      %1470 = vmatpush2.msra.mxu0 0.0
      %1471 = vmatprep.mubr.f32.mxu0 0.0
      %1472 = vmatmul.mubr.f32.gmra.mxu0 %v1402
      %v1473 = vpop.f32.mrf.mxu0
      %v1474 = vadd.f32 0.0, %v1473
      %v1475 = vpop.f32.mrf.mxu0
      %1476 = vmatprep.mubr.f32.mxu0 0.0
      %1477 = vmatmul.mubr.f32.gmra.mxu0 %v1405
      %v1478 = vpop.f32.mrf.mxu0
      %v1479 = vadd.f32 0.0, %v1478
      %v1480 = vpop.f32.mrf.mxu0
      %1481 = vdwg.mxu0
      %v1482 = vadd.f32 %v1192, %v1474
      %v1483 = vadd.f32 %v1197, %v1479
      %1484 = vrot.lane.b32.xlu0 %v632, 104
      %v1485 = vpop.permute.xlu0 %1484
      %1486 = vrot.lane.b32.xlu0 %v633, 104
      %v1487 = vpop.permute.xlu0 %1486
      %1488 = vrot.lane.b32.xlu0 %v624, 72
      %v1489 = vpop.permute.xlu0 %1488
      %1490 = vrot.lane.b32.xlu0 %v629, 72
      %v1491 = vpop.permute.xlu0 %1490
      %v1492 = vsel %vm640, %v1485, 0
      %v1494 = vsel %vm640, %v1487, 0
      %v1496 = vsel %vm640, %v1489, 0
      %v1498 = vsel %vm640, %v1491, 0
      %1500 = vmatprep.subr.mxu0 0.0
      %1501 = vmatpush1.xpose.msra.mxu0 0.0
      %1502 = vmatprep.subr.mxu0 0.0
      %1503 = vmatpush1.xpose.msra.mxu0 0.0
      %1504 = vmatprep.subr.mxu0 0.0
      %1505 = vmatpush1.xpose.msra.mxu0 0.0
      %1506 = vmatprep.subr.mxu0 0.0
      %1507 = vmatpush1.xpose.msra.mxu0 0.0
      %1508 = vmatprep.subr.mxu0 0.0
      %1509 = vmatpush1.xpose.msra.mxu0 0.0
      %1510 = vmatprep.subr.mxu0 0.0
      %1511 = vmatpush1.xpose.msra.mxu0 0.0
      %1512 = vmatprep.subr.mxu0 0.0
      %1513 = vmatpush1.xpose.msra.mxu0 0.0
      %1514 = vmatprep.subr.mxu0 0.0
      %1515 = vmatpush1.xpose.msra.mxu0 0.0
      %1516 = vmatprep.subr.mxu0 0.0
      %1517 = vmatpush1.xpose.msra.mxu0 0.0
      %1518 = vmatprep.subr.mxu0 0.0
      %1519 = vmatpush1.xpose.msra.mxu0 0.0
      %1520 = vmatprep.subr.mxu0 0.0
      %1521 = vmatpush1.xpose.msra.mxu0 0.0
      %1522 = vmatprep.subr.mxu0 0.0
      %1523 = vmatpush1.xpose.msra.mxu0 0.0
      %1524 = vmatprep.subr.mxu0 0.0
      %1525 = vmatpush1.xpose.msra.mxu0 0.0
      %1526 = vmatprep.subr.mxu0 0.0
      %1527 = vmatpush1.xpose.msra.mxu0 0.0
      %1528 = vmatprep.subr.mxu0 0.0
      %1529 = vmatpush1.xpose.msra.mxu0 %v1498
      %1530 = vmatprep.subr.mxu0 0.0
      %1531 = vmatpush1.xpose.msra.mxu0 %v1496
      %1532 = vmatprep.subr.mxu0 0.0
      %1533 = vmatpush2.xpose.msra.mxu0 0.0
      %1534 = vmatprep.subr.mxu0 0.0
      %1535 = vmatpush2.xpose.msra.mxu0 0.0
      %1536 = vmatprep.subr.mxu0 0.0
      %1537 = vmatpush2.xpose.msra.mxu0 0.0
      %1538 = vmatprep.subr.mxu0 0.0
      %1539 = vmatpush2.xpose.msra.mxu0 0.0
      %1540 = vmatprep.subr.mxu0 0.0
      %1541 = vmatpush2.xpose.msra.mxu0 0.0
      %1542 = vmatprep.subr.mxu0 0.0
      %1543 = vmatpush2.xpose.msra.mxu0 0.0
      %1544 = vmatprep.subr.mxu0 0.0
      %1545 = vmatpush2.xpose.msra.mxu0 0.0
      %1546 = vmatprep.subr.mxu0 0.0
      %1547 = vmatpush2.xpose.msra.mxu0 0.0
      %1548 = vmatprep.subr.mxu0 0.0
      %1549 = vmatpush2.xpose.msra.mxu0 0.0
      %1550 = vmatprep.subr.mxu0 0.0
      %1551 = vmatpush2.xpose.msra.mxu0 0.0
      %1552 = vmatprep.subr.mxu0 0.0
      %1553 = vmatpush2.xpose.msra.mxu0 0.0
      %1554 = vmatprep.subr.mxu0 0.0
      %1555 = vmatpush2.xpose.msra.mxu0 0.0
      %1556 = vmatprep.subr.mxu0 0.0
      %1557 = vmatpush2.xpose.msra.mxu0 0.0
      %1558 = vmatprep.subr.mxu0 0.0
      %1559 = vmatpush2.xpose.msra.mxu0 0.0
      %1560 = vmatprep.subr.mxu0 0.0
      %1561 = vmatpush2.xpose.msra.mxu0 0.0
      %1562 = vmatprep.subr.mxu0 0.0
      %1563 = vmatpush2.xpose.msra.mxu0 0.0
      %1564 = vmatprep.mubr.f32.mxu0 0.0
      %1565 = vmatmul.mubr.f32.gmra.mxu0 %v1492
      %v1566 = vpop.f32.mrf.mxu0
      %v1567 = vadd.f32 0.0, %v1566
      %v1568 = vpop.f32.mrf.mxu0
      %1569 = vmatprep.mubr.f32.mxu0 0.0
      %1570 = vmatmul.mubr.f32.gmra.mxu0 %v1494
      %v1571 = vpop.f32.mrf.mxu0
      %v1572 = vadd.f32 0.0, %v1571
      %v1573 = vpop.f32.mrf.mxu0
      %1574 = vdwg.mxu0
      %v1575 = vsel %vm726, %v1567, -inf
      %1576 = vmax.xlane.f32.xlu0 %v1575
      %v1577 = vpop.xlane.xlu0 %1576
      %v1578 = vsel %vm726, %v1572, -inf
      %1579 = vmax.xlane.f32.xlu0 %v1578
      %v1580 = vpop.xlane.xlu0 %1579
      %v1581 = vsub.f32 %v1567, %v1577
      %v1582 = vsub.f32 %v1572, %v1580
      %v1583 = vmul.f32 %v1581, 1.442695
      %v1584 = vpow.pop %v1583
      %v1585 = vmul.f32 %v1582, 1.442695
      %v1586 = vpow.pop %v1585
      %v1587 = vsel %vm726, %v1584, 0.0
      %1588 = vadd.xlane.f32.xlu0 %v1587
      %v1589 = vpop.xlane.xlu0 %1588
      %v1590 = vsel %vm726, %v1586, 0.0
      %1591 = vadd.xlane.f32.xlu0 %v1590
      %v1592 = vpop.xlane.xlu0 %1591
      %v1593 = vrcp.pop %v1589
      %v1594 = vrcp.pop %v1592
      %v1595 = vmul.f32 %v1584, %v1593
      %v1596 = vmul.f32 %v1586, %v1594
      %1597 = vrot.lane.b32.xlu0 %v624, 40
      %v1598 = vpop.permute.xlu0 %1597
      %1599 = vrot.lane.b32.xlu0 %v629, 40
      %v1600 = vpop.permute.xlu0 %1599
      %v1604 = vsel %vm726, %v1595, 0
      %v1607 = vsel %vm726, %v1596, 0
      %1609 = vmatprep.subr.mxu0 0.0
      %1610 = vmatpush1.msra.mxu0 0.0
      %1611 = vmatprep.subr.mxu0 0.0
      %1612 = vmatpush1.msra.mxu0 0.0
      %1613 = vmatprep.subr.mxu0 0.0
      %1614 = vmatpush1.msra.mxu0 0.0
      %1615 = vmatprep.subr.mxu0 0.0
      %1616 = vmatpush1.msra.mxu0 0.0
      %1617 = vmatprep.subr.mxu0 0.0
      %1618 = vmatpush1.msra.mxu0 0.0
      %1619 = vmatprep.subr.mxu0 0.0
      %1620 = vmatpush1.msra.mxu0 0.0
      %1621 = vmatprep.subr.mxu0 0.0
      %1622 = vmatpush1.msra.mxu0 0.0
      %1623 = vmatprep.subr.mxu0 0.0
      %1624 = vmatpush1.msra.mxu0 0.0
      %1625 = vmatprep.subr.mxu0 0.0
      %1626 = vmatpush1.msra.mxu0 0.0
      %1627 = vmatprep.subr.mxu0 0.0
      %1628 = vmatpush1.msra.mxu0 0.0
      %1629 = vmatprep.subr.mxu0 0.0
      %1630 = vmatpush1.msra.mxu0 0.0
      %1631 = vmatprep.subr.mxu0 0.0
      %1632 = vmatpush1.msra.mxu0 0.0
      %1633 = vmatprep.subr.mxu0 0.0
      %1634 = vmatpush1.msra.mxu0 0.0
      %1635 = vmatprep.subr.mxu0 0.0
      %1636 = vmatpush1.msra.mxu0 0.0
      %1637 = vmatprep.subr.mxu0 0.0
      %1638 = vmatpush1.msra.mxu0 %v1600
      %1639 = vmatprep.subr.mxu0 0.0
      %1640 = vmatpush1.msra.mxu0 %v1598
      %1641 = vmatprep.subr.mxu0 0.0
      %1642 = vmatpush2.msra.mxu0 0.0
      %1643 = vmatprep.subr.mxu0 0.0
      %1644 = vmatpush2.msra.mxu0 0.0
      %1645 = vmatprep.subr.mxu0 0.0
      %1646 = vmatpush2.msra.mxu0 0.0
      %1647 = vmatprep.subr.mxu0 0.0
      %1648 = vmatpush2.msra.mxu0 0.0
      %1649 = vmatprep.subr.mxu0 0.0
      %1650 = vmatpush2.msra.mxu0 0.0
      %1651 = vmatprep.subr.mxu0 0.0
      %1652 = vmatpush2.msra.mxu0 0.0
      %1653 = vmatprep.subr.mxu0 0.0
      %1654 = vmatpush2.msra.mxu0 0.0
      %1655 = vmatprep.subr.mxu0 0.0
      %1656 = vmatpush2.msra.mxu0 0.0
      %1657 = vmatprep.subr.mxu0 0.0
      %1658 = vmatpush2.msra.mxu0 0.0
      %1659 = vmatprep.subr.mxu0 0.0
      %1660 = vmatpush2.msra.mxu0 0.0
      %1661 = vmatprep.subr.mxu0 0.0
      %1662 = vmatpush2.msra.mxu0 0.0
      %1663 = vmatprep.subr.mxu0 0.0
      %1664 = vmatpush2.msra.mxu0 0.0
      %1665 = vmatprep.subr.mxu0 0.0
      %1666 = vmatpush2.msra.mxu0 0.0
      %1667 = vmatprep.subr.mxu0 0.0
      %1668 = vmatpush2.msra.mxu0 0.0
      %1669 = vmatprep.subr.mxu0 0.0
      %1670 = vmatpush2.msra.mxu0 0.0
      %1671 = vmatprep.subr.mxu0 0.0
      %1672 = vmatpush2.msra.mxu0 0.0
      %1673 = vmatprep.mubr.f32.mxu0 0.0
      %1674 = vmatmul.mubr.f32.gmra.mxu0 %v1604
      %v1675 = vpop.f32.mrf.mxu0
      %v1676 = vadd.f32 0.0, %v1675
      %v1677 = vpop.f32.mrf.mxu0
      %1678 = vmatprep.mubr.f32.mxu0 0.0
      %1679 = vmatmul.mubr.f32.gmra.mxu0 %v1607
      %v1680 = vpop.f32.mrf.mxu0
      %v1681 = vadd.f32 0.0, %v1680
      %v1682 = vpop.f32.mrf.mxu0
      %1683 = vdwg.mxu0
      %v1684 = vld [vmem:[%s6 + $0x18] sm:$0xff]
      %v1686 = vsel %vm640, %v1676, 0
      %v1689 = vsel %vm640, %v1681, 0
      %1691 = vmatprep.subr.mxu0 0.0
      %1692 = vmatpush1.msra.mxu0 0.0
      %1693 = vmatprep.subr.mxu0 0.0
      %1694 = vmatpush1.msra.mxu0 0.0
      %1695 = vmatprep.subr.mxu0 0.0
      %1696 = vmatpush1.msra.mxu0 0.0
      %1697 = vmatprep.subr.mxu0 0.0
      %1698 = vmatpush1.msra.mxu0 0.0
      %1699 = vmatprep.subr.mxu0 0.0
      %1700 = vmatpush1.msra.mxu0 0.0
      %1701 = vmatprep.subr.mxu0 0.0
      %1702 = vmatpush1.msra.mxu0 0.0
      %1703 = vmatprep.subr.mxu0 0.0
      %1704 = vmatpush1.msra.mxu0 0.0
      %1705 = vmatprep.subr.mxu0 0.0
      %1706 = vmatpush1.msra.mxu0 0.0
      %1707 = vmatprep.subr.mxu0 0.0
      %1708 = vmatpush1.msra.mxu0 0.0
      %1709 = vmatprep.subr.mxu0 0.0
      %1710 = vmatpush1.msra.mxu0 0.0
      %1711 = vmatprep.subr.mxu0 0.0
      %1712 = vmatpush1.msra.mxu0 0.0
      %1713 = vmatprep.subr.mxu0 0.0
      %1714 = vmatpush1.msra.mxu0 0.0
      %1715 = vmatprep.subr.mxu0 0.0
      %1716 = vmatpush1.msra.mxu0 0.0
      %1717 = vmatprep.subr.mxu0 0.0
      %1718 = vmatpush1.msra.mxu0 0.0
      %1719 = vmatprep.subr.mxu0 0.0
      %1720 = vmatpush1.msra.mxu0 0.0
      %1721 = vmatprep.subr.mxu0 0.0
      %1722 = vmatpush1.msra.mxu0 %v1684
      %1723 = vmatprep.subr.mxu0 0.0
      %1724 = vmatpush2.msra.mxu0 0.0
      %1725 = vmatprep.subr.mxu0 0.0
      %1726 = vmatpush2.msra.mxu0 0.0
      %1727 = vmatprep.subr.mxu0 0.0
      %1728 = vmatpush2.msra.mxu0 0.0
      %1729 = vmatprep.subr.mxu0 0.0
      %1730 = vmatpush2.msra.mxu0 0.0
      %1731 = vmatprep.subr.mxu0 0.0
      %1732 = vmatpush2.msra.mxu0 0.0
      %1733 = vmatprep.subr.mxu0 0.0
      %1734 = vmatpush2.msra.mxu0 0.0
      %1735 = vmatprep.subr.mxu0 0.0
      %1736 = vmatpush2.msra.mxu0 0.0
      %1737 = vmatprep.subr.mxu0 0.0
      %1738 = vmatpush2.msra.mxu0 0.0
      %1739 = vmatprep.subr.mxu0 0.0
      %1740 = vmatpush2.msra.mxu0 0.0
      %1741 = vmatprep.subr.mxu0 0.0
      %1742 = vmatpush2.msra.mxu0 0.0
      %1743 = vmatprep.subr.mxu0 0.0
      %1744 = vmatpush2.msra.mxu0 0.0
      %1745 = vmatprep.subr.mxu0 0.0
      %1746 = vmatpush2.msra.mxu0 0.0
      %1747 = vmatprep.subr.mxu0 0.0
      %1748 = vmatpush2.msra.mxu0 0.0
      %1749 = vmatprep.subr.mxu0 0.0
      %1750 = vmatpush2.msra.mxu0 0.0
      %1751 = vmatprep.subr.mxu0 0.0
      %1752 = vmatpush2.msra.mxu0 0.0
      %1753 = vmatprep.subr.mxu0 0.0
      %1754 = vmatpush2.msra.mxu0 0.0
      %1755 = vmatprep.mubr.f32.mxu0 0.0
      %1756 = vmatmul.mubr.f32.gmra.mxu0 %v1686
      %v1757 = vpop.f32.mrf.mxu0
      %v1758 = vadd.f32 0.0, %v1757
      %v1759 = vpop.f32.mrf.mxu0
      %1760 = vmatprep.mubr.f32.mxu0 0.0
      %1761 = vmatmul.mubr.f32.gmra.mxu0 %v1689
      %v1762 = vpop.f32.mrf.mxu0
      %v1763 = vadd.f32 0.0, %v1762
      %v1764 = vpop.f32.mrf.mxu0
      %1765 = vdwg.mxu0
      %v1766 = vadd.f32 %v1482, %v1758
      %v1767 = vadd.f32 %v1483, %v1763
      %v1768 = vadd.f32 %v492, %v1766
      %v1769 = vadd.f32 %v493, %v1767
      %v1770 = vld [vmem:[%s7] sm:$0x1]
      %v1772 = vlaneseq
      %v1773 = vshrl.u32 %v1772, 7
      %v1774 = vsub.s32 0, %v1773
      %v1775 = vrot.slane %v1770, %v1774
      %v1777 = vadd.f32 %v1768, %v1775
      %v1778 = vadd.f32 %v1769, %v1775
      %v1779 = vsel %vm494, %v1777, 0.0
      %1780 = vadd.xlane.f32.xlu0 %v1779
      %v1781 = vpop.xlane.xlu0 %1780
      %v1782 = vsel %vm494, %v1778, 0.0
      %1783 = vadd.xlane.f32.xlu0 %v1782
      %v1784 = vpop.xlane.xlu0 %1783
      %v1785 = vmul.f32 %v1781, %v501
      %v1786 = vmul.f32 %v1784, %v501
      %v1787 = vsub.f32 %v1777, %v1785
      %v1788 = vsub.f32 %v1778, %v1786
      %v1789 = vmul.f32 %v1787, %v1787
      %v1790 = vmul.f32 %v1788, %v1788
      %v1791 = vsel %vm494, %v1789, 0.0
      %1792 = vadd.xlane.f32.xlu0 %v1791
      %v1793 = vpop.xlane.xlu0 %1792
      %v1794 = vsel %vm494, %v1790, 0.0
      %1795 = vadd.xlane.f32.xlu0 %v1794
      %v1796 = vpop.xlane.xlu0 %1795
      %v1797 = vmul.f32 %v1793, %v501
      %v1798 = vmul.f32 %v1796, %v501
      %v1799 = vadd.f32 %v1797, 1e-05
      %v1800 = vadd.f32 %v1798, 1e-05
      %v1801 = vrsqrt.pop %v1799
      %v1802 = vrsqrt.pop %v1800
      %v1803 = vmul.f32 %v1787, %v1801
      %v1804 = vmul.f32 %v1788, %v1802
      %v1805 = vld [vmem:[%s8] sm:$0x1]
      %v1807 = vlaneseq
      %v1808 = vshrl.u32 %v1807, 7
      %v1809 = vsub.s32 0, %v1808
      %v1810 = vrot.slane %v1805, %v1809
      %v1812 = vmul.f32 %v1803, %v1810
      %v1813 = vmul.f32 %v1804, %v1810
      %v1814 = vld [vmem:[%s9] sm:$0x1]
      %v1816 = vlaneseq
      %v1817 = vshrl.u32 %v1816, 7
      %v1818 = vsub.s32 0, %v1817
      %v1819 = vrot.slane %v1814, %v1818
      %v1821 = vadd.f32 %v1812, %v1819
      %v1822 = vadd.f32 %v1813, %v1819
      %v1823 = vld [vmem:[%s10] sm:$0xff]
      %v1824 = vld [vmem:[%s10 + $0x8] sm:$0xff]
      %v1825 = vld [vmem:[%s10 + $0x10] sm:$0xff]
      %v1826 = vld [vmem:[%s10 + $0x18] sm:$0xff]
      %v1827 = vld [vmem:[%s11] sm:$0x1]
      %v1829 = vlaneseq
      %v1830 = vshrl.u32 %v1829, 7
      %v1831 = vsub.s32 0, %v1830
      %v1832 = vrot.slane %v1827, %v1831
      %v1835 = vsel %vm494, %v1821, 0
      %v1838 = vsel %vm494, %v1822, 0
      %1840 = vmatprep.subr.mxu0 0.0
      %1841 = vmatpush1.msra.mxu0 0.0
      %1842 = vmatprep.subr.mxu0 0.0
      %1843 = vmatpush1.msra.mxu0 0.0
      %1844 = vmatprep.subr.mxu0 0.0
      %1845 = vmatpush1.msra.mxu0 0.0
      %1846 = vmatprep.subr.mxu0 0.0
      %1847 = vmatpush1.msra.mxu0 0.0
      %1848 = vmatprep.subr.mxu0 0.0
      %1849 = vmatpush1.msra.mxu0 0.0
      %1850 = vmatprep.subr.mxu0 0.0
      %1851 = vmatpush1.msra.mxu0 0.0
      %1852 = vmatprep.subr.mxu0 0.0
      %1853 = vmatpush1.msra.mxu0 0.0
      %1854 = vmatprep.subr.mxu0 0.0
      %1855 = vmatpush1.msra.mxu0 0.0
      %1856 = vmatprep.subr.mxu0 0.0
      %1857 = vmatpush1.msra.mxu0 0.0
      %1858 = vmatprep.subr.mxu0 0.0
      %1859 = vmatpush1.msra.mxu0 0.0
      %1860 = vmatprep.subr.mxu0 0.0
      %1861 = vmatpush1.msra.mxu0 0.0
      %1862 = vmatprep.subr.mxu0 0.0
      %1863 = vmatpush1.msra.mxu0 0.0
      %1864 = vmatprep.subr.mxu0 0.0
      %1865 = vmatpush1.msra.mxu0 %v1826
      %1866 = vmatprep.subr.mxu0 0.0
      %1867 = vmatpush1.msra.mxu0 %v1825
      %1868 = vmatprep.subr.mxu0 0.0
      %1869 = vmatpush1.msra.mxu0 %v1824
      %1870 = vmatprep.subr.mxu0 0.0
      %1871 = vmatpush1.msra.mxu0 %v1823
      %1872 = vmatprep.subr.mxu0 0.0
      %1873 = vmatpush2.msra.mxu0 0.0
      %1874 = vmatprep.subr.mxu0 0.0
      %1875 = vmatpush2.msra.mxu0 0.0
      %1876 = vmatprep.subr.mxu0 0.0
      %1877 = vmatpush2.msra.mxu0 0.0
      %1878 = vmatprep.subr.mxu0 0.0
      %1879 = vmatpush2.msra.mxu0 0.0
      %1880 = vmatprep.subr.mxu0 0.0
      %1881 = vmatpush2.msra.mxu0 0.0
      %1882 = vmatprep.subr.mxu0 0.0
      %1883 = vmatpush2.msra.mxu0 0.0
      %1884 = vmatprep.subr.mxu0 0.0
      %1885 = vmatpush2.msra.mxu0 0.0
      %1886 = vmatprep.subr.mxu0 0.0
      %1887 = vmatpush2.msra.mxu0 0.0
      %1888 = vmatprep.subr.mxu0 0.0
      %1889 = vmatpush2.msra.mxu0 0.0
      %1890 = vmatprep.subr.mxu0 0.0
      %1891 = vmatpush2.msra.mxu0 0.0
      %1892 = vmatprep.subr.mxu0 0.0
      %1893 = vmatpush2.msra.mxu0 0.0
      %1894 = vmatprep.subr.mxu0 0.0
      %1895 = vmatpush2.msra.mxu0 0.0
      %1896 = vmatprep.subr.mxu0 0.0
      %1897 = vmatpush2.msra.mxu0 0.0
      %1898 = vmatprep.subr.mxu0 0.0
      %1899 = vmatpush2.msra.mxu0 0.0
      %1900 = vmatprep.subr.mxu0 0.0
      %1901 = vmatpush2.msra.mxu0 0.0
      %1902 = vmatprep.subr.mxu0 0.0
      %1903 = vmatpush2.msra.mxu0 0.0
      %1904 = vmatprep.mubr.f32.mxu0 0.0
      %1905 = vmatmul.mubr.f32.gmra.mxu0 %v1835
      %v1906 = vpop.f32.mrf.mxu0
      %v1907 = vadd.f32 %v1832, %v1906
      %v1908 = vpop.f32.mrf.mxu0
      %1909 = vmatprep.mubr.f32.mxu0 0.0
      %1910 = vmatmul.mubr.f32.gmra.mxu0 %v1838
      %v1911 = vpop.f32.mrf.mxu0
      %v1912 = vadd.f32 %v1832, %v1911
      %v1913 = vpop.f32.mrf.mxu0
      %1914 = vdwg.mxu0
      %v1915 = vmul.f32 %v1907, 0.5
      %v1916 = vmul.f32 %v1912, 0.5
      %v1917 = vmul.f32 %v1907, 0.70710677
      %v1918 = vmul.f32 %v1912, 0.70710677
      %vm1919 = vcmp.ge.f32.partialorder %v1917, 0.0
      %vm1920 = vcmp.ge.f32.partialorder %v1918, 0.0
      %v1921 = vsel %vm1919, 1.0, -1.0
      %v1922 = vsel %vm1920, 1.0, -1.0
      %v1923 = vand.u32 2147483647, %v1917
      %v1924 = vand.u32 2147483647, %v1918
      %v1925 = vmul.f32 %v1923, 0.3275911
      %v1926 = vmul.f32 %v1924, 0.3275911
      %v1927 = vadd.f32 %v1925, 1.0
      %v1928 = vadd.f32 %v1926, 1.0
      %v1929 = vrcp.pop %v1927
      %v1930 = vmul.f32 1.0, %v1929
      %v1931 = vrcp.pop %v1928
      %v1932 = vmul.f32 1.0, %v1931
      %v1933 = vmul.f32 %v1930, 1.0614054
      %v1934 = vmul.f32 %v1932, 1.0614054
      %v1935 = vadd.f32 %v1933, -1.4531521
      %v1936 = vadd.f32 %v1934, -1.4531521
      %v1937 = vmul.f32 %v1935, %v1930
      %v1938 = vmul.f32 %v1936, %v1932
      %v1939 = vadd.f32 %v1937, 1.4214138
      %v1940 = vadd.f32 %v1938, 1.4214138
      %v1941 = vmul.f32 %v1939, %v1930
      %v1942 = vmul.f32 %v1940, %v1932
      %v1943 = vadd.f32 %v1941, -0.28449672
      %v1944 = vadd.f32 %v1942, -0.28449672
      %v1945 = vmul.f32 %v1943, %v1930
      %v1946 = vmul.f32 %v1944, %v1932
      %v1947 = vadd.f32 %v1945, 0.2548296
      %v1948 = vadd.f32 %v1946, 0.2548296
      %v1949 = vmul.f32 %v1947, %v1930
      %v1950 = vmul.f32 %v1948, %v1932
      %v1951 = vsub.f32 0.0, %v1923
      %v1952 = vsub.f32 0.0, %v1924
      %v1953 = vmul.f32 %v1951, %v1923
      %v1954 = vmul.f32 %v1952, %v1924
      %v1955 = vmul.f32 %v1953, 1.442695
      %v1956 = vpow.pop %v1955
      %v1957 = vmul.f32 %v1954, 1.442695
      %v1958 = vpow.pop %v1957
      %v1959 = vmul.f32 %v1949, %v1956
      %v1960 = vmul.f32 %v1950, %v1958
      %v1961 = vsub.f32 1.0, %v1959
      %v1962 = vsub.f32 1.0, %v1960
      %v1963 = vmul.f32 %v1921, %v1961
      %v1964 = vmul.f32 %v1922, %v1962
      %v1965 = vadd.f32 %v1963, 1.0
      %v1966 = vadd.f32 %v1964, 1.0
      %v1967 = vmul.f32 %v1915, %v1965
      %v1968 = vmul.f32 %v1916, %v1966
      %v1969 = vld [vmem:[%s12] sm:$0xff]
      %v1970 = vld [vmem:[%s12 + $0x8] sm:$0xff]
      %v1971 = vld [vmem:[%s12 + $0x10] sm:$0xff]
      %v1972 = vld [vmem:[%s12 + $0x18] sm:$0xff]
      %v1973 = vld [vmem:[%s12 + $0x20] sm:$0xff]
      %v1974 = vld [vmem:[%s12 + $0x28] sm:$0xff]
      %v1975 = vld [vmem:[%s12 + $0x30] sm:$0xff]
      %v1976 = vld [vmem:[%s12 + $0x38] sm:$0xff]
      %v1977 = vld [vmem:[%s12 + $0x40] sm:$0xff]
      %v1978 = vld [vmem:[%s12 + $0x48] sm:$0xff]
      %v1979 = vld [vmem:[%s12 + $0x50] sm:$0xff]
      %v1980 = vld [vmem:[%s12 + $0x58] sm:$0xff]
      %v1981 = vld [vmem:[%s12 + $0x60] sm:$0xff]
      %v1982 = vld [vmem:[%s12 + $0x68] sm:$0xff]
      %v1983 = vld [vmem:[%s12 + $0x70] sm:$0xff]
      %v1984 = vld [vmem:[%s12 + $0x78] sm:$0xff]
      %1985 = vmatprep.subr.mxu0 0.0
      %1986 = vmatpush1.msra.mxu0 %v1984
      %1987 = vmatprep.subr.mxu0 0.0
      %1988 = vmatpush1.msra.mxu0 %v1983
      %1989 = vmatprep.subr.mxu0 0.0
      %1990 = vmatpush1.msra.mxu0 %v1982
      %1991 = vmatprep.subr.mxu0 0.0
      %1992 = vmatpush1.msra.mxu0 %v1981
      %1993 = vmatprep.subr.mxu0 0.0
      %1994 = vmatpush1.msra.mxu0 %v1980
      %1995 = vmatprep.subr.mxu0 0.0
      %1996 = vmatpush1.msra.mxu0 %v1979
      %1997 = vmatprep.subr.mxu0 0.0
      %1998 = vmatpush1.msra.mxu0 %v1978
      %1999 = vmatprep.subr.mxu0 0.0
      %2000 = vmatpush1.msra.mxu0 %v1977
      %2001 = vmatprep.subr.mxu0 0.0
      %2002 = vmatpush1.msra.mxu0 %v1976
      %2003 = vmatprep.subr.mxu0 0.0
      %2004 = vmatpush1.msra.mxu0 %v1975
      %2005 = vmatprep.subr.mxu0 0.0
      %2006 = vmatpush1.msra.mxu0 %v1974
      %2007 = vmatprep.subr.mxu0 0.0
      %2008 = vmatpush1.msra.mxu0 %v1973
      %2009 = vmatprep.subr.mxu0 0.0
      %2010 = vmatpush1.msra.mxu0 %v1972
      %2011 = vmatprep.subr.mxu0 0.0
      %2012 = vmatpush1.msra.mxu0 %v1971
      %2013 = vmatprep.subr.mxu0 0.0
      %2014 = vmatpush1.msra.mxu0 %v1970
      %2015 = vmatprep.subr.mxu0 0.0
      %2016 = vmatpush1.msra.mxu0 %v1969
      %2017 = vmatprep.subr.mxu0 0.0
      %2018 = vmatpush2.msra.mxu0 0.0
      %2019 = vmatprep.subr.mxu0 0.0
      %2020 = vmatpush2.msra.mxu0 0.0
      %2021 = vmatprep.subr.mxu0 0.0
      %2022 = vmatpush2.msra.mxu0 0.0
      %2023 = vmatprep.subr.mxu0 0.0
      %2024 = vmatpush2.msra.mxu0 0.0
      %2025 = vmatprep.subr.mxu0 0.0
      %2026 = vmatpush2.msra.mxu0 0.0
      %2027 = vmatprep.subr.mxu0 0.0
      %2028 = vmatpush2.msra.mxu0 0.0
      %2029 = vmatprep.subr.mxu0 0.0
      %2030 = vmatpush2.msra.mxu0 0.0
      %2031 = vmatprep.subr.mxu0 0.0
      %2032 = vmatpush2.msra.mxu0 0.0
      %2033 = vmatprep.subr.mxu0 0.0
      %2034 = vmatpush2.msra.mxu0 0.0
      %2035 = vmatprep.subr.mxu0 0.0
      %2036 = vmatpush2.msra.mxu0 0.0
      %2037 = vmatprep.subr.mxu0 0.0
      %2038 = vmatpush2.msra.mxu0 0.0
      %2039 = vmatprep.subr.mxu0 0.0
      %2040 = vmatpush2.msra.mxu0 0.0
      %2041 = vmatprep.subr.mxu0 0.0
      %2042 = vmatpush2.msra.mxu0 0.0
      %2043 = vmatprep.subr.mxu0 0.0
      %2044 = vmatpush2.msra.mxu0 0.0
      %2045 = vmatprep.subr.mxu0 0.0
      %2046 = vmatpush2.msra.mxu0 0.0
      %2047 = vmatprep.subr.mxu0 0.0
      %2048 = vmatpush2.msra.mxu0 0.0
      %2049 = vmatprep.mubr.f32.mxu0 0.0
      %2050 = vmatmul.mubr.f32.gmra.mxu0 %v1967
      %v2051 = vpop.f32.mrf.mxu0
      %v2052 = vadd.f32 0.0, %v2051
      %v2053 = vpop.f32.mrf.mxu0
      %2054 = vmatprep.mubr.f32.mxu0 0.0
      %2055 = vmatmul.mubr.f32.gmra.mxu0 %v1968
      %v2056 = vpop.f32.mrf.mxu0
      %v2057 = vadd.f32 0.0, %v2056
      %v2058 = vpop.f32.mrf.mxu0
      %2059 = vdwg.mxu0
      %v2060 = vadd.f32 %v1777, %v2052
      %v2061 = vadd.f32 %v1778, %v2057
      %v2062 = vld [vmem:[%s13] sm:$0x1]
      %v2064 = vlaneseq
      %v2065 = vshrl.u32 %v2064, 7
      %v2066 = vsub.s32 0, %v2065
      %v2067 = vrot.slane %v2062, %v2066
      %v2069 = vadd.f32 %v2060, %v2067
      %v2070 = vadd.f32 %v2061, %v2067
      %2071 = vst.msk [vmem:[%s487] sm:$0xff] %vm494, %v2069
      %2072 = vst.msk [vmem:[%s487 + $0x8] sm:$0xff] %vm494, %v2070
      %p2073 = scmp.lt.s32.totalorder %s25, 1
      %s2074 = scalar_select %p2073, %s25, 1
      %s2075 = smul.addr %s2074, 2
      %s2076 = smul.addr %s2075, 8
      %s2077 = scalar_lea.vmem %s14, %s2076
      // Predicated region
      $region77: #{mae_branch_forward.9} parent=75 // pred_check
        %p2078 = pneg %p347
      $region78: #{mae_branch_forward.9} parent=75 // pred_check_branch
        %2080 = sbr.rel (%p2078) target = $region80
      $region79: #{mae_branch_forward.9} parent=75 // pred_region
        _
      $region80: #{mae_branch_forward.9} parent=75 // pred_fallthru
        _
    $region76: #{mae_branch_forward.9} parent=5 // pred_fallthru
      _
    %p2081 = scmp.le.s32.totalorder 2, %s20
    // Predicated region
    $region81: #{mae_branch_forward.9} parent=5 // pred_check
      %p2082 = pneg %p2081
    $region82: #{mae_branch_forward.9} parent=5 // pred_check_branch
      %2084 = sbr.rel (%p2082) target = $region84
    $region83: #{mae_branch_forward.9} parent=5 // pred_region
      %s2085 = ssub.s32 %s20, 2
      // Predicated region
      $region85: #{mae_branch_forward.9} parent=83 // pred_check
        %p2086 = pneg %p353
      $region86: #{mae_branch_forward.9} parent=83 // pred_check_branch
        %2088 = sbr.rel (%p2086) target = $region88
      $region87: #{mae_branch_forward.9} parent=83 // pred_region
        %p2089 = scmp.lt.s32.totalorder %s26, 1
        %s2090 = scalar_select %p2089, %s26, 1
        %s2091 = smul.addr %s2090, 2
        %s2092 = smul.addr %s2091, 8
        %s2093 = scalar_lea.vmem %s14, %s2092
      $region88: #{mae_branch_forward.9} parent=83 // pred_fallthru
        _
    $region84: #{mae_branch_forward.9} parent=5 // pred_fallthru
      _
  $region6: #{mae_branch_forward.9} parent=0 // loop_footer
    %s24 = sadd.s32 1, %s20
  $region7: #{mae_branch_forward.9} parent=0 // loop_footer_branch
    %19 = sbr.rel target = $region3
  $region8: #{mae_branch_forward.9} parent=0 // loop_exit
    _

// kernel: mae_branch_forward.11
$region0: #{mae_branch_forward.11}
  #allocation0 [shape = 'u32[]', space=smem, size = 0x4, offset = 0x4, fixed_abs, tag = 'smem constant byte address 0x4 - core index']
  #allocation1 [shape = 'u32[144,128]{1,0:T(1,128)}', space=vmem, size = 0x12000, scoped, tag = 'internal scratch']
  %s0 = inlined_call_operand.vmem [shape: f32[2,8,32], index: 0, kind: input, shape index: {}]
  %s1 = inlined_call_operand.vmem [shape: f32[32,8], index: 1, kind: input, shape index: {}]
  %s2 = inlined_call_operand.vmem [shape: f32[32,1], index: 2, kind: input, shape index: {}]
  %s3 = inlined_call_operand.vmem [shape: f32[32,16], index: 3, kind: input, shape index: {}]
  %s4 = inlined_call_operand.vmem [shape: f32[1,16], index: 4, kind: input, shape index: {}]
  %s5 = inlined_call_operand.vmem [shape: f32[16,3], index: 5, kind: input, shape index: {}]
  %s6 = inlined_call_operand.vmem [shape: f32[1,3], index: 6, kind: input, shape index: {}]
  %s7 = inlined_call_operand.vmem [shape: f32[2,32,3], index: 7, kind: output, shape index: {}]
  %s8 = sld [smem:[#allocation0]]
  $region61: #{mae_branch_forward.11} parent=0
    _
  %s10 = ssub.s32 1, %s8
  %s11 = scalar_select 0, %s10, %s8
  loop: start=0, step=1, limit=4
  $region2: #{mae_branch_forward.11} parent=0 // loop_pre_header
    _
  $region3: #{mae_branch_forward.11} parent=0 // loop_header
    %s13 = sphi 0, %s17
    %p14 = scmp.ge.s32.totalorder %s13, 4
    %s23 = sphi 0, %s25
    %s26 = sphi 0, %s23
    %s27 = sphi 0, %s26
    %s43 = sphi 0, %s27
    %s47 = sphi 0, %s47
    %s49 = sphi 0, %s47
    %s50 = sphi 0, %s49
    %s64 = sphi 0, %s50
    %s68 = sphi 0, %s68
    %s70 = sphi 0, %s68
    %s71 = sphi 0, %s70
    %s85 = sphi 0, %s71
    %s89 = sphi 0, %s89
    %s91 = sphi 0, %s89
    %s92 = sphi 0, %s91
    %s106 = sphi 0, %s92
    %s110 = sphi 0, %s110
    %s112 = sphi 0, %s110
    %s113 = sphi 0, %s112
    %s127 = sphi 0, %s113
    %s131 = sphi 0, %s131
    %s133 = sphi 0, %s131
    %s134 = sphi 0, %s133
    %s148 = sphi 0, %s134
    %s152 = sphi 0, %s152
    %s154 = sphi 0, %s152
    %s155 = sphi 0, %s154
    %s169 = sphi 0, %s155
    %s175 = sphi 0, %s177
    %s178 = sphi 0, %s175
    %s179 = sphi 0, %s178
    %s195 = sphi 0, %s179
  $region4: #{mae_branch_forward.11} parent=0 // loop_header_branch
    %16 = sbr.rel (%p14) target = $region8
  $region5: #{mae_branch_forward.11} parent=0 // loop_body
    %s18 = ssub.s32 %s13, 1
    %s19 = ssub.s32 %s13, 2
    %s20 = sadd.s32 %s13, 1
    %s21 = ssub.s32 %s13, %s20
    %p22 = scmp.eq.s32.totalorder %s21, 0
    %s24 = sadd.s32 %s23, 1
    %s25 = scalar_select %p22, %s23, %s24
    %p28 = pneg %p22
    %p29 = scmp.eq.s32.totalorder %s13, 1
    %p30 = por %p28, %p29
    %p31 = scmp.ne.s32.totalorder %s23, %s26
    %p32 = scmp.eq.s32.totalorder %s13, 0
    %p33 = por %p31, %p32
    %p34 = scmp.ne.s32.totalorder %s23, %s26
    %p35 = scmp.eq.s32.totalorder %s18, 1
    %p36 = por %p34, %p35
    %p37 = scmp.ne.s32.totalorder %s26, %s27
    %p38 = scmp.eq.s32.totalorder %s18, 0
    %p39 = por %p37, %p38
    %p40 = scmp.ne.s32.totalorder %s26, %s27
    %p41 = scmp.eq.s32.totalorder %s19, 1
    %p42 = por %p40, %p41
    %p44 = scmp.ne.s32.totalorder %s27, %s43
    %p45 = scmp.eq.s32.totalorder %s19, 0
    %p46 = por %p44, %p45
    %s48 = sadd.s32 %s47, 1
    %p51 = scmp.eq.s32.totalorder %s13, 1
    %p52 = scmp.ne.s32.totalorder %s47, %s49
    %p53 = scmp.eq.s32.totalorder %s13, 0
    %p54 = por %p52, %p53
    %p55 = scmp.ne.s32.totalorder %s47, %s49
    %p56 = scmp.eq.s32.totalorder %s18, 1
    %p57 = por %p55, %p56
    %p58 = scmp.ne.s32.totalorder %s49, %s50
    %p59 = scmp.eq.s32.totalorder %s18, 0
    %p60 = por %p58, %p59
    %p61 = scmp.ne.s32.totalorder %s49, %s50
    %p62 = scmp.eq.s32.totalorder %s19, 1
    %p63 = por %p61, %p62
    %p65 = scmp.ne.s32.totalorder %s50, %s64
    %p66 = scmp.eq.s32.totalorder %s19, 0
    %p67 = por %p65, %p66
    %s69 = sadd.s32 %s68, 1
    %p72 = scmp.eq.s32.totalorder %s13, 1
    %p73 = scmp.ne.s32.totalorder %s68, %s70
    %p74 = scmp.eq.s32.totalorder %s13, 0
    %p75 = por %p73, %p74
    %p76 = scmp.ne.s32.totalorder %s68, %s70
    %p77 = scmp.eq.s32.totalorder %s18, 1
    %p78 = por %p76, %p77
    %p79 = scmp.ne.s32.totalorder %s70, %s71
    %p80 = scmp.eq.s32.totalorder %s18, 0
    %p81 = por %p79, %p80
    %p82 = scmp.ne.s32.totalorder %s70, %s71
    %p83 = scmp.eq.s32.totalorder %s19, 1
    %p84 = por %p82, %p83
    %p86 = scmp.ne.s32.totalorder %s71, %s85
    %p87 = scmp.eq.s32.totalorder %s19, 0
    %p88 = por %p86, %p87
    %s90 = sadd.s32 %s89, 1
    %p93 = scmp.eq.s32.totalorder %s13, 1
    %p94 = scmp.ne.s32.totalorder %s89, %s91
    %p95 = scmp.eq.s32.totalorder %s13, 0
    %p96 = por %p94, %p95
    %p97 = scmp.ne.s32.totalorder %s89, %s91
    %p98 = scmp.eq.s32.totalorder %s18, 1
    %p99 = por %p97, %p98
    %p100 = scmp.ne.s32.totalorder %s91, %s92
    %p101 = scmp.eq.s32.totalorder %s18, 0
    %p102 = por %p100, %p101
    %p103 = scmp.ne.s32.totalorder %s91, %s92
    %p104 = scmp.eq.s32.totalorder %s19, 1
    %p105 = por %p103, %p104
    %p107 = scmp.ne.s32.totalorder %s92, %s106
    %p108 = scmp.eq.s32.totalorder %s19, 0
    %p109 = por %p107, %p108
    %s111 = sadd.s32 %s110, 1
    %p114 = scmp.eq.s32.totalorder %s13, 1
    %p115 = scmp.ne.s32.totalorder %s110, %s112
    %p116 = scmp.eq.s32.totalorder %s13, 0
    %p117 = por %p115, %p116
    %p118 = scmp.ne.s32.totalorder %s110, %s112
    %p119 = scmp.eq.s32.totalorder %s18, 1
    %p120 = por %p118, %p119
    %p121 = scmp.ne.s32.totalorder %s112, %s113
    %p122 = scmp.eq.s32.totalorder %s18, 0
    %p123 = por %p121, %p122
    %p124 = scmp.ne.s32.totalorder %s112, %s113
    %p125 = scmp.eq.s32.totalorder %s19, 1
    %p126 = por %p124, %p125
    %p128 = scmp.ne.s32.totalorder %s113, %s127
    %p129 = scmp.eq.s32.totalorder %s19, 0
    %p130 = por %p128, %p129
    %s132 = sadd.s32 %s131, 1
    %p135 = scmp.eq.s32.totalorder %s13, 1
    %p136 = scmp.ne.s32.totalorder %s131, %s133
    %p137 = scmp.eq.s32.totalorder %s13, 0
    %p138 = por %p136, %p137
    %p139 = scmp.ne.s32.totalorder %s131, %s133
    %p140 = scmp.eq.s32.totalorder %s18, 1
    %p141 = por %p139, %p140
    %p142 = scmp.ne.s32.totalorder %s133, %s134
    %p143 = scmp.eq.s32.totalorder %s18, 0
    %p144 = por %p142, %p143
    %p145 = scmp.ne.s32.totalorder %s133, %s134
    %p146 = scmp.eq.s32.totalorder %s19, 1
    %p147 = por %p145, %p146
    %p149 = scmp.ne.s32.totalorder %s134, %s148
    %p150 = scmp.eq.s32.totalorder %s19, 0
    %p151 = por %p149, %p150
    %s153 = sadd.s32 %s152, 1
    %p156 = scmp.eq.s32.totalorder %s13, 1
    %p157 = scmp.ne.s32.totalorder %s152, %s154
    %p158 = scmp.eq.s32.totalorder %s13, 0
    %p159 = por %p157, %p158
    %p160 = scmp.ne.s32.totalorder %s152, %s154
    %p161 = scmp.eq.s32.totalorder %s18, 1
    %p162 = por %p160, %p161
    %p163 = scmp.ne.s32.totalorder %s154, %s155
    %p164 = scmp.eq.s32.totalorder %s18, 0
    %p165 = por %p163, %p164
    %p166 = scmp.ne.s32.totalorder %s154, %s155
    %p167 = scmp.eq.s32.totalorder %s19, 1
    %p168 = por %p166, %p167
    %p170 = scmp.ne.s32.totalorder %s155, %s169
    %p171 = scmp.eq.s32.totalorder %s19, 0
    %p172 = por %p170, %p171
    %s173 = ssub.s32 %s13, %s20
    %p174 = scmp.eq.s32.totalorder %s173, 0
    %s176 = sadd.s32 %s175, 1
    %s177 = scalar_select %p174, %s175, %s176
    %p180 = pneg %p174
    %p181 = scmp.eq.s32.totalorder %s13, 1
    %p182 = por %p180, %p181
    %p183 = scmp.ne.s32.totalorder %s175, %s178
    %p184 = scmp.eq.s32.totalorder %s13, 0
    %p185 = por %p183, %p184
    %p186 = scmp.ne.s32.totalorder %s175, %s178
    %p187 = scmp.eq.s32.totalorder %s18, 1
    %p188 = por %p186, %p187
    %p189 = scmp.ne.s32.totalorder %s178, %s179
    %p190 = scmp.eq.s32.totalorder %s18, 0
    %p191 = por %p189, %p190
    %p192 = scmp.ne.s32.totalorder %s178, %s179
    %p193 = scmp.eq.s32.totalorder %s19, 1
    %p194 = por %p192, %p193
    %p196 = scmp.ne.s32.totalorder %s179, %s195
    %p197 = scmp.eq.s32.totalorder %s19, 0
    %p198 = por %p196, %p197
    %p199 = scmp.le.s32.totalorder 1, %s13
    %p200 = scmp.lt.s32.totalorder %s13, 3
    %p201 = pnand %p199, %p200
    %p202 = pneg %p201
    // Predicated region
    $region9: #{mae_branch_forward.11} parent=5 // pred_check
      _
    $region10: #{mae_branch_forward.11} parent=5 // pred_check_branch
      %204 = sbr.rel (%p201) target = $region12
    $region11: #{mae_branch_forward.11} parent=5 // pred_region
      %s205 = ssub.s32 %s13, 1
      // Predicated region
      $region13: #{mae_branch_forward.11} parent=11 // pred_check
        %p206 = pneg %p60
      $region14: #{mae_branch_forward.11} parent=11 // pred_check_branch
        %208 = sbr.rel (%p206) target = $region16
      $region15: #{mae_branch_forward.11} parent=11 // pred_region
        _
      $region16: #{mae_branch_forward.11} parent=11 // pred_fallthru
        _
      // Predicated region
      $region17: #{mae_branch_forward.11} parent=11 // pred_check
        %p209 = pneg %p81
      $region18: #{mae_branch_forward.11} parent=11 // pred_check_branch
        %211 = sbr.rel (%p209) target = $region20
      $region19: #{mae_branch_forward.11} parent=11 // pred_region
        _
      $region20: #{mae_branch_forward.11} parent=11 // pred_fallthru
        _
      // Predicated region
      $region21: #{mae_branch_forward.11} parent=11 // pred_check
        %p212 = pneg %p102
      $region22: #{mae_branch_forward.11} parent=11 // pred_check_branch
        %214 = sbr.rel (%p212) target = $region24
      $region23: #{mae_branch_forward.11} parent=11 // pred_region
        _
      $region24: #{mae_branch_forward.11} parent=11 // pred_fallthru
        _
      // Predicated region
      $region25: #{mae_branch_forward.11} parent=11 // pred_check
        %p215 = pneg %p123
      $region26: #{mae_branch_forward.11} parent=11 // pred_check_branch
        %217 = sbr.rel (%p215) target = $region28
      $region27: #{mae_branch_forward.11} parent=11 // pred_region
        _
      $region28: #{mae_branch_forward.11} parent=11 // pred_fallthru
        _
      // Predicated region
      $region29: #{mae_branch_forward.11} parent=11 // pred_check
        %p218 = pneg %p144
      $region30: #{mae_branch_forward.11} parent=11 // pred_check_branch
        %220 = sbr.rel (%p218) target = $region32
      $region31: #{mae_branch_forward.11} parent=11 // pred_region
        _
      $region32: #{mae_branch_forward.11} parent=11 // pred_fallthru
        _
      // Predicated region
      $region33: #{mae_branch_forward.11} parent=11 // pred_check
        %p221 = pneg %p165
      $region34: #{mae_branch_forward.11} parent=11 // pred_check_branch
        %223 = sbr.rel (%p221) target = $region36
      $region35: #{mae_branch_forward.11} parent=11 // pred_region
        _
      $region36: #{mae_branch_forward.11} parent=11 // pred_fallthru
        _
    $region12: #{mae_branch_forward.11} parent=5 // pred_fallthru
      _
    %p224 = scmp.lt.s32.totalorder %s13, 2
    // Predicated region
    $region37: #{mae_branch_forward.11} parent=5 // pred_check
      %p225 = pneg %p224
    $region38: #{mae_branch_forward.11} parent=5 // pred_check_branch
      %227 = sbr.rel (%p225) target = $region40
    $region39: #{mae_branch_forward.11} parent=5 // pred_region
      // Predicated region
      $region41: #{mae_branch_forward.11} parent=39 // pred_check
        %p228 = pneg %p33
      $region42: #{mae_branch_forward.11} parent=39 // pred_check_branch
        %230 = sbr.rel (%p228) target = $region44
      $region43: #{mae_branch_forward.11} parent=39 // pred_region
        %p231 = scmp.lt.s32.totalorder %s13, 1
        %s232 = scalar_select %p231, %s13, 1
        %s233 = smul.addr %s232, 8
        %s234 = scalar_lea.vmem %s0, %s233
      $region44: #{mae_branch_forward.11} parent=39 // pred_fallthru
        _
    $region40: #{mae_branch_forward.11} parent=5 // pred_fallthru
      _
    %p235 = scmp.le.s32.totalorder 1, %s13
    %p236 = scmp.lt.s32.totalorder %s13, 3
    %p237 = pnand %p235, %p236
    %p238 = pneg %p237
    // Predicated region
    $region45: #{mae_branch_forward.11} parent=5 // pred_check
      _
    $region46: #{mae_branch_forward.11} parent=5 // pred_check_branch
      %240 = sbr.rel (%p237) target = $region48
    $region47: #{mae_branch_forward.11} parent=5 // pred_region
      %s241 = ssub.s32 %s13, 1
      %p242 = scmp.lt.s32.totalorder %s18, 1
      %s243 = scalar_select %p242, %s18, 1
      %s244 = smul.addr %s243, 8
      %s245 = scalar_lea.vmem %s0, %s244
      %p246 = pneg %p39
      %p247 = pneg %p36
      %p248 = pneg %p60
      %p249 = pneg %p57
      %p250 = pneg %p81
      %p251 = pneg %p78
      %p252 = pneg %p102
      %p253 = pneg %p99
      %p254 = pneg %p123
      %p255 = pneg %p120
      %p256 = pneg %p144
      %p257 = pneg %p141
      %p258 = pneg %p165
      %p259 = pneg %p162
      %p260 = pneg %p191
      %p261 = pneg %p188
      %p262 = scmp.lt.s32.totalorder %s18, 1
      %s263 = scalar_select %p262, %s18, 1
      %s264 = smul.addr %s263, 4
      %s265 = smul.addr %s264, 8
      %s266 = scalar_lea.vmem %s7, %s265
      %p267 = scmp.lt.s32.totalorder %s18, 1
      %s268 = scalar_select %p267, %s18, 1
      %s269 = smul.addr %s268, 8
      %s270 = scalar_lea.vmem %s0, %s269
      %p271 = scmp.lt.s32.totalorder %s18, 1
      %s272 = scalar_select %p271, %s18, 1
      %s273 = smul.addr %s272, 4
      %s274 = smul.addr %s273, 8
      %s275 = scalar_lea.vmem %s7, %s274
      %v276 = vld [vmem:[%s270] sm:$0xff]
      %v277 = vld [vmem:[%s1] sm:$0xff]
      %v278 = vld [vmem:[%s1 + $0x8] sm:$0xff]
      %v279 = vld [vmem:[%s1 + $0x10] sm:$0xff]
      %v280 = vld [vmem:[%s1 + $0x18] sm:$0xff]
      %v281 = vld [vmem:[%s2] sm:$0xff]
      %v282 = vld [vmem:[%s2 + $0x8] sm:$0xff]
      %v283 = vld [vmem:[%s2 + $0x10] sm:$0xff]
      %v284 = vld [vmem:[%s2 + $0x18] sm:$0xff]
      %286 = vset.pattern.permute.xlu0 0
      %287 = vperm.xlu0 %286, %v281
      %v288 = vpop.permute.xlu0 %287
      %291 = vset.pattern.permute.xlu0 0
      %292 = vperm.xlu0 %291, %v282
      %v293 = vpop.permute.xlu0 %292
      %296 = vset.pattern.permute.xlu0 0
      %297 = vperm.xlu0 %296, %v283
      %v298 = vpop.permute.xlu0 %297
      %301 = vset.pattern.permute.xlu0 0
      %302 = vperm.xlu0 %301, %v284
      %v303 = vpop.permute.xlu0 %302
      %vm305 = vcmask 64512
      %v307 = vsel %vm305, %v277, 0
      %v310 = vsel %vm305, %v278, 0
      %v313 = vsel %vm305, %v279, 0
      %v316 = vsel %vm305, %v280, 0
      %318 = vmatprep.subr.mxu0 0.0
      %319 = vmatpush1.msra.mxu0 0.0
      %320 = vmatprep.subr.mxu0 0.0
      %321 = vmatpush1.msra.mxu0 0.0
      %322 = vmatprep.subr.mxu0 0.0
      %323 = vmatpush1.msra.mxu0 0.0
      %324 = vmatprep.subr.mxu0 0.0
      %325 = vmatpush1.msra.mxu0 0.0
      %326 = vmatprep.subr.mxu0 0.0
      %327 = vmatpush1.msra.mxu0 0.0
      %328 = vmatprep.subr.mxu0 0.0
      %329 = vmatpush1.msra.mxu0 0.0
      %330 = vmatprep.subr.mxu0 0.0
      %331 = vmatpush1.msra.mxu0 0.0
      %332 = vmatprep.subr.mxu0 0.0
      %333 = vmatpush1.msra.mxu0 0.0
      %334 = vmatprep.subr.mxu0 0.0
      %335 = vmatpush1.msra.mxu0 0.0
      %336 = vmatprep.subr.mxu0 0.0
      %337 = vmatpush1.msra.mxu0 0.0
      %338 = vmatprep.subr.mxu0 0.0
      %339 = vmatpush1.msra.mxu0 0.0
      %340 = vmatprep.subr.mxu0 0.0
      %341 = vmatpush1.msra.mxu0 0.0
      %342 = vmatprep.subr.mxu0 0.0
      %343 = vmatpush1.msra.mxu0 0.0
      %344 = vmatprep.subr.mxu0 0.0
      %345 = vmatpush1.msra.mxu0 0.0
      %346 = vmatprep.subr.mxu0 0.0
      %347 = vmatpush1.msra.mxu0 0.0
      %348 = vmatprep.subr.mxu0 0.0
      %349 = vmatpush1.msra.mxu0 %v276
      %350 = vmatprep.subr.mxu0 0.0
      %351 = vmatpush2.msra.mxu0 0.0
      %352 = vmatprep.subr.mxu0 0.0
      %353 = vmatpush2.msra.mxu0 0.0
      %354 = vmatprep.subr.mxu0 0.0
      %355 = vmatpush2.msra.mxu0 0.0
      %356 = vmatprep.subr.mxu0 0.0
      %357 = vmatpush2.msra.mxu0 0.0
      %358 = vmatprep.subr.mxu0 0.0
      %359 = vmatpush2.msra.mxu0 0.0
      %360 = vmatprep.subr.mxu0 0.0
      %361 = vmatpush2.msra.mxu0 0.0
      %362 = vmatprep.subr.mxu0 0.0
      %363 = vmatpush2.msra.mxu0 0.0
      %364 = vmatprep.subr.mxu0 0.0
      %365 = vmatpush2.msra.mxu0 0.0
      %366 = vmatprep.subr.mxu0 0.0
      %367 = vmatpush2.msra.mxu0 0.0
      %368 = vmatprep.subr.mxu0 0.0
      %369 = vmatpush2.msra.mxu0 0.0
      %370 = vmatprep.subr.mxu0 0.0
      %371 = vmatpush2.msra.mxu0 0.0
      %372 = vmatprep.subr.mxu0 0.0
      %373 = vmatpush2.msra.mxu0 0.0
      %374 = vmatprep.subr.mxu0 0.0
      %375 = vmatpush2.msra.mxu0 0.0
      %376 = vmatprep.subr.mxu0 0.0
      %377 = vmatpush2.msra.mxu0 0.0
      %378 = vmatprep.subr.mxu0 0.0
      %379 = vmatpush2.msra.mxu0 0.0
      %380 = vmatprep.subr.mxu0 0.0
      %381 = vmatpush2.msra.mxu0 0.0
      %382 = vmatprep.mubr.f32.mxu0 0.0
      %383 = vmatmul.mubr.f32.gmra.mxu0 %v307
      %v384 = vpop.f32.mrf.mxu0
      %v385 = vadd.f32 %v288, %v384
      %v386 = vpop.f32.mrf.mxu0
      %387 = vmatprep.mubr.f32.mxu0 0.0
      %388 = vmatmul.mubr.f32.gmra.mxu0 %v310
      %v389 = vpop.f32.mrf.mxu0
      %v390 = vadd.f32 %v293, %v389
      %v391 = vpop.f32.mrf.mxu0
      %392 = vmatprep.mubr.f32.mxu0 0.0
      %393 = vmatmul.mubr.f32.gmra.mxu0 %v313
      %v394 = vpop.f32.mrf.mxu0
      %v395 = vadd.f32 %v298, %v394
      %v396 = vpop.f32.mrf.mxu0
      %397 = vmatprep.mubr.f32.mxu0 0.0
      %398 = vmatmul.mubr.f32.gmra.mxu0 %v316
      %v399 = vpop.f32.mrf.mxu0
      %v400 = vadd.f32 %v303, %v399
      %v401 = vpop.f32.mrf.mxu0
      %402 = vdwg.mxu0
      %v403 = vld [vmem:[%s3] sm:$0xff]
      %v404 = vld [vmem:[%s3 + $0x8] sm:$0xff]
      %v405 = vld [vmem:[%s3 + $0x10] sm:$0xff]
      %v406 = vld [vmem:[%s3 + $0x18] sm:$0xff]
      %v407 = vld [vmem:[%s4] sm:$0x1]
      %v409 = vlaneseq
      %v410 = vshrl.u32 %v409, 7
      %v411 = vsub.s32 0, %v410
      %v412 = vrot.slane %v407, %v411
      %vm414 = vcmask 261120
      %v416 = vsel %vm414, %v385, 0
      %v419 = vsel %vm414, %v390, 0
      %v422 = vsel %vm414, %v395, 0
      %v425 = vsel %vm414, %v400, 0
      %427 = vmatprep.subr.mxu0 0.0
      %428 = vmatpush1.msra.mxu0 0.0
      %429 = vmatprep.subr.mxu0 0.0
      %430 = vmatpush1.msra.mxu0 0.0
      %431 = vmatprep.subr.mxu0 0.0
      %432 = vmatpush1.msra.mxu0 0.0
      %433 = vmatprep.subr.mxu0 0.0
      %434 = vmatpush1.msra.mxu0 0.0
      %435 = vmatprep.subr.mxu0 0.0
      %436 = vmatpush1.msra.mxu0 0.0
      %437 = vmatprep.subr.mxu0 0.0
      %438 = vmatpush1.msra.mxu0 0.0
      %439 = vmatprep.subr.mxu0 0.0
      %440 = vmatpush1.msra.mxu0 0.0
      %441 = vmatprep.subr.mxu0 0.0
      %442 = vmatpush1.msra.mxu0 0.0
      %443 = vmatprep.subr.mxu0 0.0
      %444 = vmatpush1.msra.mxu0 0.0
      %445 = vmatprep.subr.mxu0 0.0
      %446 = vmatpush1.msra.mxu0 0.0
      %447 = vmatprep.subr.mxu0 0.0
      %448 = vmatpush1.msra.mxu0 0.0
      %449 = vmatprep.subr.mxu0 0.0
      %450 = vmatpush1.msra.mxu0 0.0
      %451 = vmatprep.subr.mxu0 0.0
      %452 = vmatpush1.msra.mxu0 %v406
      %453 = vmatprep.subr.mxu0 0.0
      %454 = vmatpush1.msra.mxu0 %v405
      %455 = vmatprep.subr.mxu0 0.0
      %456 = vmatpush1.msra.mxu0 %v404
      %457 = vmatprep.subr.mxu0 0.0
      %458 = vmatpush1.msra.mxu0 %v403
      %459 = vmatprep.subr.mxu0 0.0
      %460 = vmatpush2.msra.mxu0 0.0
      %461 = vmatprep.subr.mxu0 0.0
      %462 = vmatpush2.msra.mxu0 0.0
      %463 = vmatprep.subr.mxu0 0.0
      %464 = vmatpush2.msra.mxu0 0.0
      %465 = vmatprep.subr.mxu0 0.0
      %466 = vmatpush2.msra.mxu0 0.0
      %467 = vmatprep.subr.mxu0 0.0
      %468 = vmatpush2.msra.mxu0 0.0
      %469 = vmatprep.subr.mxu0 0.0
      %470 = vmatpush2.msra.mxu0 0.0
      %471 = vmatprep.subr.mxu0 0.0
      %472 = vmatpush2.msra.mxu0 0.0
      %473 = vmatprep.subr.mxu0 0.0
      %474 = vmatpush2.msra.mxu0 0.0
      %475 = vmatprep.subr.mxu0 0.0
      %476 = vmatpush2.msra.mxu0 0.0
      %477 = vmatprep.subr.mxu0 0.0
      %478 = vmatpush2.msra.mxu0 0.0
      %479 = vmatprep.subr.mxu0 0.0
      %480 = vmatpush2.msra.mxu0 0.0
      %481 = vmatprep.subr.mxu0 0.0
      %482 = vmatpush2.msra.mxu0 0.0
      %483 = vmatprep.subr.mxu0 0.0
      %484 = vmatpush2.msra.mxu0 0.0
      %485 = vmatprep.subr.mxu0 0.0
      %486 = vmatpush2.msra.mxu0 0.0
      %487 = vmatprep.subr.mxu0 0.0
      %488 = vmatpush2.msra.mxu0 0.0
      %489 = vmatprep.subr.mxu0 0.0
      %490 = vmatpush2.msra.mxu0 0.0
      %491 = vmatprep.mubr.f32.mxu0 0.0
      %492 = vmatmul.mubr.f32.gmra.mxu0 %v416
      %v493 = vpop.f32.mrf.mxu0
      %v494 = vadd.f32 %v412, %v493
      %v495 = vpop.f32.mrf.mxu0
      %496 = vmatprep.mubr.f32.mxu0 0.0
      %497 = vmatmul.mubr.f32.gmra.mxu0 %v419
      %v498 = vpop.f32.mrf.mxu0
      %v499 = vadd.f32 %v412, %v498
      %v500 = vpop.f32.mrf.mxu0
      %501 = vmatprep.mubr.f32.mxu0 0.0
      %502 = vmatmul.mubr.f32.gmra.mxu0 %v422
      %v503 = vpop.f32.mrf.mxu0
      %v504 = vadd.f32 %v412, %v503
      %v505 = vpop.f32.mrf.mxu0
      %506 = vmatprep.mubr.f32.mxu0 0.0
      %507 = vmatmul.mubr.f32.gmra.mxu0 %v425
      %v508 = vpop.f32.mrf.mxu0
      %v509 = vadd.f32 %v412, %v508
      %v510 = vpop.f32.mrf.mxu0
      %511 = vdwg.mxu0
      %v512 = vmul.f32 %v494, 0.5
      %v513 = vmul.f32 %v499, 0.5
      %v514 = vmul.f32 %v504, 0.5
      %v515 = vmul.f32 %v509, 0.5
      %v516 = vmul.f32 %v494, 0.70710677
      %v517 = vmul.f32 %v499, 0.70710677
      %v518 = vmul.f32 %v504, 0.70710677
      %v519 = vmul.f32 %v509, 0.70710677
      %vm520 = vcmp.ge.f32.partialorder %v516, 0.0
      %vm521 = vcmp.ge.f32.partialorder %v517, 0.0
      %vm522 = vcmp.ge.f32.partialorder %v518, 0.0
      %vm523 = vcmp.ge.f32.partialorder %v519, 0.0
      %v524 = vsel %vm520, 1.0, -1.0
      %v525 = vsel %vm521, 1.0, -1.0
      %v526 = vsel %vm522, 1.0, -1.0
      %v527 = vsel %vm523, 1.0, -1.0
      %v528 = vand.u32 2147483647, %v516
      %v529 = vand.u32 2147483647, %v517
      %v530 = vand.u32 2147483647, %v518
      %v531 = vand.u32 2147483647, %v519
      %v532 = vmul.f32 %v528, 0.3275911
      %v533 = vmul.f32 %v529, 0.3275911
      %v534 = vmul.f32 %v530, 0.3275911
      %v535 = vmul.f32 %v531, 0.3275911
      %v536 = vadd.f32 %v532, 1.0
      %v537 = vadd.f32 %v533, 1.0
      %v538 = vadd.f32 %v534, 1.0
      %v539 = vadd.f32 %v535, 1.0
      %v540 = vrcp.pop %v536
      %v541 = vmul.f32 1.0, %v540
      %v542 = vrcp.pop %v537
      %v543 = vmul.f32 1.0, %v542
      %v544 = vrcp.pop %v538
      %v545 = vmul.f32 1.0, %v544
      %v546 = vrcp.pop %v539
      %v547 = vmul.f32 1.0, %v546
      %v548 = vmul.f32 %v541, 1.0614054
      %v549 = vmul.f32 %v543, 1.0614054
      %v550 = vmul.f32 %v545, 1.0614054
      %v551 = vmul.f32 %v547, 1.0614054
      %v552 = vadd.f32 %v548, -1.4531521
      %v553 = vadd.f32 %v549, -1.4531521
      %v554 = vadd.f32 %v550, -1.4531521
      %v555 = vadd.f32 %v551, -1.4531521
      %v556 = vmul.f32 %v552, %v541
      %v557 = vmul.f32 %v553, %v543
      %v558 = vmul.f32 %v554, %v545
      %v559 = vmul.f32 %v555, %v547
      %v560 = vadd.f32 %v556, 1.4214138
      %v561 = vadd.f32 %v557, 1.4214138
      %v562 = vadd.f32 %v558, 1.4214138
      %v563 = vadd.f32 %v559, 1.4214138
      %v564 = vmul.f32 %v560, %v541
      %v565 = vmul.f32 %v561, %v543
      %v566 = vmul.f32 %v562, %v545
      %v567 = vmul.f32 %v563, %v547
      %v568 = vadd.f32 %v564, -0.28449672
      %v569 = vadd.f32 %v565, -0.28449672
      %v570 = vadd.f32 %v566, -0.28449672
      %v571 = vadd.f32 %v567, -0.28449672
      %v572 = vmul.f32 %v568, %v541
      %v573 = vmul.f32 %v569, %v543
      %v574 = vmul.f32 %v570, %v545
      %v575 = vmul.f32 %v571, %v547
      %v576 = vadd.f32 %v572, 0.2548296
      %v577 = vadd.f32 %v573, 0.2548296
      %v578 = vadd.f32 %v574, 0.2548296
      %v579 = vadd.f32 %v575, 0.2548296
      %v580 = vmul.f32 %v576, %v541
      %v581 = vmul.f32 %v577, %v543
      %v582 = vmul.f32 %v578, %v545
      %v583 = vmul.f32 %v579, %v547
      %v584 = vsub.f32 0.0, %v528
      %v585 = vsub.f32 0.0, %v529
      %v586 = vsub.f32 0.0, %v530
      %v587 = vsub.f32 0.0, %v531
      %v588 = vmul.f32 %v584, %v528
      %v589 = vmul.f32 %v585, %v529
      %v590 = vmul.f32 %v586, %v530
      %v591 = vmul.f32 %v587, %v531
      %v592 = vmul.f32 %v588, 1.442695
      %v593 = vpow.pop %v592
      %v594 = vmul.f32 %v589, 1.442695
      %v595 = vpow.pop %v594
      %v596 = vmul.f32 %v590, 1.442695
      %v597 = vpow.pop %v596
      %v598 = vmul.f32 %v591, 1.442695
      %v599 = vpow.pop %v598
      %v600 = vmul.f32 %v580, %v593
      %v601 = vmul.f32 %v581, %v595
      %v602 = vmul.f32 %v582, %v597
      %v603 = vmul.f32 %v583, %v599
      %v604 = vsub.f32 1.0, %v600
      %v605 = vsub.f32 1.0, %v601
      %v606 = vsub.f32 1.0, %v602
      %v607 = vsub.f32 1.0, %v603
      %v608 = vmul.f32 %v524, %v604
      %v609 = vmul.f32 %v525, %v605
      %v610 = vmul.f32 %v526, %v606
      %v611 = vmul.f32 %v527, %v607
      %v612 = vadd.f32 %v608, 1.0
      %v613 = vadd.f32 %v609, 1.0
      %v614 = vadd.f32 %v610, 1.0
      %v615 = vadd.f32 %v611, 1.0
      %v616 = vmul.f32 %v512, %v612
      %v617 = vmul.f32 %v513, %v613
      %v618 = vmul.f32 %v514, %v614
      %v619 = vmul.f32 %v515, %v615
      %v620 = vld [vmem:[%s5] sm:$0xff]
      %v621 = vld [vmem:[%s5 + $0x8] sm:$0xff]
      %v622 = vld [vmem:[%s6] sm:$0x1]
      %v624 = vlaneseq
      %v625 = vshrl.u32 %v624, 7
      %v626 = vsub.s32 0, %v625
      %v627 = vrot.slane %v622, %v626
      %vm629 = vcmask 130048
      %v631 = vsel %vm629, %v616, 0
      %v634 = vsel %vm629, %v617, 0
      %v637 = vsel %vm629, %v618, 0
      %v640 = vsel %vm629, %v619, 0
      %642 = vmatprep.subr.mxu0 0.0
      %643 = vmatpush1.msra.mxu0 0.0
      %644 = vmatprep.subr.mxu0 0.0
      %645 = vmatpush1.msra.mxu0 0.0
      %646 = vmatprep.subr.mxu0 0.0
      %647 = vmatpush1.msra.mxu0 0.0
      %648 = vmatprep.subr.mxu0 0.0
      %649 = vmatpush1.msra.mxu0 0.0
      %650 = vmatprep.subr.mxu0 0.0
      %651 = vmatpush1.msra.mxu0 0.0
      %652 = vmatprep.subr.mxu0 0.0
      %653 = vmatpush1.msra.mxu0 0.0
      %654 = vmatprep.subr.mxu0 0.0
      %655 = vmatpush1.msra.mxu0 0.0
      %656 = vmatprep.subr.mxu0 0.0
      %657 = vmatpush1.msra.mxu0 0.0
      %658 = vmatprep.subr.mxu0 0.0
      %659 = vmatpush1.msra.mxu0 0.0
      %660 = vmatprep.subr.mxu0 0.0
      %661 = vmatpush1.msra.mxu0 0.0
      %662 = vmatprep.subr.mxu0 0.0
      %663 = vmatpush1.msra.mxu0 0.0
      %664 = vmatprep.subr.mxu0 0.0
      %665 = vmatpush1.msra.mxu0 0.0
      %666 = vmatprep.subr.mxu0 0.0
      %667 = vmatpush1.msra.mxu0 0.0
      %668 = vmatprep.subr.mxu0 0.0
      %669 = vmatpush1.msra.mxu0 0.0
      %670 = vmatprep.subr.mxu0 0.0
      %671 = vmatpush1.msra.mxu0 %v621
      %672 = vmatprep.subr.mxu0 0.0
      %673 = vmatpush1.msra.mxu0 %v620
      %674 = vmatprep.subr.mxu0 0.0
      %675 = vmatpush2.msra.mxu0 0.0
      %676 = vmatprep.subr.mxu0 0.0
      %677 = vmatpush2.msra.mxu0 0.0
      %678 = vmatprep.subr.mxu0 0.0
      %679 = vmatpush2.msra.mxu0 0.0
      %680 = vmatprep.subr.mxu0 0.0
      %681 = vmatpush2.msra.mxu0 0.0
      %682 = vmatprep.subr.mxu0 0.0
      %683 = vmatpush2.msra.mxu0 0.0
      %684 = vmatprep.subr.mxu0 0.0
      %685 = vmatpush2.msra.mxu0 0.0
      %686 = vmatprep.subr.mxu0 0.0
      %687 = vmatpush2.msra.mxu0 0.0
      %688 = vmatprep.subr.mxu0 0.0
      %689 = vmatpush2.msra.mxu0 0.0
      %690 = vmatprep.subr.mxu0 0.0
      %691 = vmatpush2.msra.mxu0 0.0
      %692 = vmatprep.subr.mxu0 0.0
      %693 = vmatpush2.msra.mxu0 0.0
      %694 = vmatprep.subr.mxu0 0.0
      %695 = vmatpush2.msra.mxu0 0.0
      %696 = vmatprep.subr.mxu0 0.0
      %697 = vmatpush2.msra.mxu0 0.0
      %698 = vmatprep.subr.mxu0 0.0
      %699 = vmatpush2.msra.mxu0 0.0
      %700 = vmatprep.subr.mxu0 0.0
      %701 = vmatpush2.msra.mxu0 0.0
      %702 = vmatprep.subr.mxu0 0.0
      %703 = vmatpush2.msra.mxu0 0.0
      %704 = vmatprep.subr.mxu0 0.0
      %705 = vmatpush2.msra.mxu0 0.0
      %706 = vmatprep.mubr.f32.mxu0 0.0
      %707 = vmatmul.mubr.f32.gmra.mxu0 %v631
      %v708 = vpop.f32.mrf.mxu0
      %v709 = vadd.f32 %v627, %v708
      %v710 = vpop.f32.mrf.mxu0
      %711 = vmatprep.mubr.f32.mxu0 0.0
      %712 = vmatmul.mubr.f32.gmra.mxu0 %v634
      %v713 = vpop.f32.mrf.mxu0
      %v714 = vadd.f32 %v627, %v713
      %v715 = vpop.f32.mrf.mxu0
      %716 = vmatprep.mubr.f32.mxu0 0.0
      %717 = vmatmul.mubr.f32.gmra.mxu0 %v637
      %v718 = vpop.f32.mrf.mxu0
      %v719 = vadd.f32 %v627, %v718
      %v720 = vpop.f32.mrf.mxu0
      %721 = vmatprep.mubr.f32.mxu0 0.0
      %722 = vmatmul.mubr.f32.gmra.mxu0 %v640
      %v723 = vpop.f32.mrf.mxu0
      %v724 = vadd.f32 %v627, %v723
      %v725 = vpop.f32.mrf.mxu0
      %726 = vdwg.mxu0
      %vm727 = vcmask 23552
      %728 = vst.msk [vmem:[%s275] sm:$0xff] %vm727, %v709
      %729 = vst.msk [vmem:[%s275 + $0x8] sm:$0xff] %vm727, %v714
      %730 = vst.msk [vmem:[%s275 + $0x10] sm:$0xff] %vm727, %v719
      %731 = vst.msk [vmem:[%s275 + $0x18] sm:$0xff] %vm727, %v724
      %p732 = scmp.lt.s32.totalorder %s18, 1
      %s733 = scalar_select %p732, %s18, 1
      %s734 = smul.addr %s733, 4
      %s735 = smul.addr %s734, 8
      %s736 = scalar_lea.vmem %s7, %s735
      // Predicated region
      $region49: #{mae_branch_forward.11} parent=47 // pred_check
        %p737 = pneg %p188
      $region50: #{mae_branch_forward.11} parent=47 // pred_check_branch
        %739 = sbr.rel (%p737) target = $region52
      $region51: #{mae_branch_forward.11} parent=47 // pred_region
        _
      $region52: #{mae_branch_forward.11} parent=47 // pred_fallthru
        _
    $region48: #{mae_branch_forward.11} parent=5 // pred_fallthru
      _
    %p740 = scmp.le.s32.totalorder 2, %s13
    // Predicated region
    $region53: #{mae_branch_forward.11} parent=5 // pred_check
      %p741 = pneg %p740
    $region54: #{mae_branch_forward.11} parent=5 // pred_check_branch
      %743 = sbr.rel (%p741) target = $region56
    $region55: #{mae_branch_forward.11} parent=5 // pred_region
      %s744 = ssub.s32 %s13, 2
      // Predicated region
      $region57: #{mae_branch_forward.11} parent=55 // pred_check
        %p745 = pneg %p194
      $region58: #{mae_branch_forward.11} parent=55 // pred_check_branch
        %747 = sbr.rel (%p745) target = $region60
      $region59: #{mae_branch_forward.11} parent=55 // pred_region
        %p748 = scmp.lt.s32.totalorder %s19, 1
        %s749 = scalar_select %p748, %s19, 1
        %s750 = smul.addr %s749, 4
        %s751 = smul.addr %s750, 8
        %s752 = scalar_lea.vmem %s7, %s751
      $region60: #{mae_branch_forward.11} parent=55 // pred_fallthru
        _
    $region56: #{mae_branch_forward.11} parent=5 // pred_fallthru
      _
  $region6: #{mae_branch_forward.11} parent=0 // loop_footer
    %s17 = sadd.s32 1, %s13
  $region7: #{mae_branch_forward.11} parent=0 // loop_footer_branch
    %12 = sbr.rel target = $region3
  $region8: #{mae_branch_forward.11} parent=0 // loop_exit
    _

</llo_original>
